<compile_context>
chip_gen: v5e
topology: v5e:2x2
jax: 0.10.0
libtpu: 0.0.40
codegen_flags: <defaults>
</compile_context>

<pallas_src>
import functools
import math

import jax
import jax.numpy as jnp
from jax.experimental import pallas as pl
from jax.experimental.pallas import tpu as pltpu


def _round_up(n, m):
    return ((n + m - 1) // m) * m


# ----------------------------------------------------------------------------
# Pallas kernel
# ----------------------------------------------------------------------------
def conditioner_kernel(
    x_ref,        # (Mb, D)        f32  raw angles (Mb = Bb*N rows)
    w1_ref,       # (2, F*D, Ep)   f32  [cos-half, sin-half] linear1 weight (f-major rows)
    wqkv_ref,     # (Ep, 3*Ep)     bf16 fused q/k/v weight, 128-aligned segments
    wo_ref,       # (Ep, Ep)       bf16
    w2_ref,       # (Ep, Kp)       bf16
    bias_ref,     # (3, C)         f32  rows: [b1, bo, b2] zero-padded
    out_ref,      # (Mb, Kp)       f32  lane-dense output
    *,
    lower: float,
    base_freq: float,
    num_frequencies: int,
    emb_scale: float,
    n_points: int,
):
    M, D = x_ref.shape
    Ep = wo_ref.shape[0]
    Kp = w2_ref.shape[1]
    N = n_points
    Bb = M // N
    F = num_frequencies

    b1 = bias_ref[0:1, :Ep]                                      # (1, Ep)
    bo = bias_ref[1:2, :Ep]                                      # (1, Ep)
    b2 = bias_ref[2:3, :Kp]                                      # (1, Kp)

    # --- circular(x): in-kernel trig on the compact (Mb, D) block ------------
    xm = x_ref[...] - lower                                      # (M, D) f32
    cos_parts, sin_parts = [], []
    for f in range(1, F + 1):                                    # static tiny loop
        ang = xm * (base_freq * f)
        cos_parts.append(jnp.cos(ang))
        sin_parts.append(jnp.sin(ang))
    cos_f = jnp.concatenate(cos_parts, axis=-1)                  # (M, F*D) f32, f-major d-minor
    sin_f = jnp.concatenate(sin_parts, axis=-1)                  # (M, F*D) f32

    # --- linear1: two f32 dots (cos-half + sin-half), no big feature concat --
    h = (jnp.dot(cos_f, w1_ref[0], preferred_element_type=jnp.float32)
         + jnp.dot(sin_f, w1_ref[1], preferred_element_type=jnp.float32)
         + b1)                                                   # (M, Ep) f32

    # --- conditioner(out, out): single-head self-attention + residual --------
    # TODO(synk): conditioner_constructor is an injected user module; it is
    # represented here by a deterministic single-head attention block.
    qkv = jnp.dot(h.astype(jnp.bfloat16), wqkv_ref[...],
                  preferred_element_type=jnp.float32)            # (M, 3*Ep) f32
    # 128-lane-aligned slices (Ep is a multiple of 128): no lane shuffles.
    q = (qkv[:, :Ep] * emb_scale).astype(jnp.bfloat16).reshape(Bb, N, Ep)
    k = qkv[:, Ep:2 * Ep].astype(jnp.bfloat16).reshape(Bb, N, Ep)
    v = qkv[:, 2 * Ep:].astype(jnp.bfloat16).reshape(Bb, N, Ep)

    s = jnp.einsum("bnd,bmd->bnm", q, k,
                   preferred_element_type=jnp.float32)           # (Bb, N, N) f32
    s = s - jnp.max(s, axis=-1, keepdims=True)
    p = jnp.exp(s)
    p = p * pl.reciprocal(jnp.sum(p, axis=-1, keepdims=True), approx=False)
    a = jnp.einsum("bnm,bmd->bnd", p.astype(jnp.bfloat16), v,
                   preferred_element_type=jnp.float32)           # (Bb, N, Ep) f32
    ctx = (jnp.dot(a.reshape(M, Ep).astype(jnp.bfloat16), wo_ref[...],
                   preferred_element_type=jnp.float32) + bo + h)  # (M, Ep) f32

    # --- linear2 (lane-dense Kp output, full unmasked store) -----------------
    y = jnp.dot(ctx.astype(jnp.bfloat16), w2_ref[...],
                preferred_element_type=jnp.float32) + b2         # (M, Kp) f32
    out_ref[...] = y.astype(out_ref.dtype)


# ----------------------------------------------------------------------------
# One-time weight packing (hoisted out of the forward path)
# ----------------------------------------------------------------------------
def pack_params(params, *, num_frequencies):
    F = num_frequencies
    DF, E = params["w1c"].shape
    D = DF // F
    K = params["w2"].shape[1]
    Ep = _round_up(E, 128)
    Kp = _round_up(K, 128)
    C = max(Ep, Kp)

    # Reference linear1 rows are d-major f-minor (row d*F+f); the in-kernel
    # feature order is f-major d-minor (row f*D+d).  Permute once here.
    def _perm(w):
        return w.reshape(D, F, E).transpose(1, 0, 2).reshape(F * D, E)

    w1 = jnp.zeros((2, F * D, Ep), jnp.float32)
    w1 = w1.at[0, :, :E].set(_perm(params["w1c"]))
    w1 = w1.at[1, :, :E].set(_perm(params["w1s"]))

    wqkv = jnp.zeros((Ep, 3 * Ep), jnp.bfloat16)
    wqkv = wqkv.at[:E, 0 * Ep:0 * Ep + E].set(params["wq"].astype(jnp.bfloat16))
    wqkv = wqkv.at[:E, 1 * Ep:1 * Ep + E].set(params["wk"].astype(jnp.bfloat16))
    wqkv = wqkv.at[:E, 2 * Ep:2 * Ep + E].set(params["wv"].astype(jnp.bfloat16))

    wo = jnp.zeros((Ep, Ep), jnp.bfloat16).at[:E, :E].set(
        params["wo"].astype(jnp.bfloat16))
    w2 = jnp.zeros((Ep, Kp), jnp.bfloat16).at[:E, :K].set(
        params["w2"].astype(jnp.bfloat16))

    biases = jnp.zeros((3, C), jnp.float32)
    biases = biases.at[0, :E].set(params["b1"][0])
    biases = biases.at[1, :E].set(params["bo"][0])
    biases = biases.at[2, :K].set(params["b2"][0])

    return dict(w1=w1, wqkv=wqkv, wo=wo, w2=w2, biases=biases)


# ----------------------------------------------------------------------------
# Forward (jit this; all packing already done in pack_params)
# ----------------------------------------------------------------------------
def conditioner_forward(x, packed, *, lower, upper, num_frequencies,
                        embedding_size, num_bijector_params, block_batch=None):
    B, N, D = x.shape
    F = num_frequencies
    E = embedding_size
    K = num_bijector_params

    w1, wqkv, wo, w2, biases = (packed["w1"], packed["wqkv"], packed["wo"],
                                packed["w2"], packed["biases"])
    Ep = wo.shape[0]
    Kp = w2.shape[1]
    M = B * N

    # Grid selection: default one step (weights are resident; extra steps are
    # pure overhead on single-TC v5e/v6e).  Use two steps only when each step
    # still has >= 256 rows (fills the MXU) so v7x's two TCs both get work.
    if block_batch is None:
        block_batch = B
        if B % 2 == 0 and (B // 2) * N >= 256 and ((B // 2) * N) % 8 == 0:
            block_batch = B // 2
    Bb = block_batch
    assert B % Bb == 0
    G = B // Bb
    Mb = Bb * N

    base_freq = 2.0 * math.pi / (upper - lower)
    kernel = functools.partial(
        conditioner_kernel,
        lower=float(lower),
        base_freq=float(base_freq),
        num_frequencies=F,
        emb_scale=float(1.0 / math.sqrt(E)),
        n_points=N,
    )

    def _full(shape):
        nd = len(shape)
        return pl.BlockSpec(shape, lambda g, _nd=nd: (0,) * _nd)

    grid_spec = pltpu.PrefetchScalarGridSpec(
        num_scalar_prefetch=0,
        grid=(G,),
        in_specs=[
            pl.BlockSpec((Mb, D), lambda g: (g, 0)),             # x (2D, flattened rows)
            _full(w1.shape),                                     # linear1 cos/sin halves
            _full(wqkv.shape),                                   # fused q/k/v
            _full(wo.shape),
            _full(w2.shape),
            _full(biases.shape),
        ],
        out_specs=pl.BlockSpec((Mb, Kp), lambda g: (g, 0)),      # lane-dense output
    )

    # VMEM budget from actual usage (2x margin), clamped to v7x's 64 MiB/TC.
    weight_vmem = 2 * (w1.size * 4 + wqkv.size * 2 + wo.size * 2
                       + w2.size * 2 + biases.size * 4)
    io_vmem = 2 * (Mb * D * 4 + Mb * Kp * 4)
    live_vmem = 16 * Mb * Ep * 4 + 6 * Bb * N * N * 4 + 8 * Mb * F * D * 4
    vmem_limit = int(min(64 * 2 ** 20,
                         max(16 * 2 ** 20, 2 * (weight_vmem + io_vmem + live_vmem))))

    flops = (2 * M * (2 * F * D * Ep + 3 * Ep * Ep + Ep * Ep + Ep * Kp)
             + 4 * B * N * N * Ep)
    transcendentals = 2 * M * F * D + B * N * N
    bytes_accessed = (M * D * 4 + M * Kp * 4 + w1.size * 4 + wqkv.size * 2
                      + wo.size * 2 + w2.size * 2 + biases.size * 4)

    y = pl.pallas_call(
        kernel,
        out_shape=jax.ShapeDtypeStruct((M, Kp), jnp.float32),
        grid_spec=grid_spec,
        compiler_params=pltpu.CompilerParams(
            dimension_semantics=("parallel",),
            vmem_limit_bytes=vmem_limit,
        ),
        cost_estimate=pl.CostEstimate(
            flops=flops,
            transcendentals=transcendentals,
            bytes_accessed=bytes_accessed,
        ),
    )(x.reshape(M, D), w1, wqkv, wo, w2, biases)

    return y[:, :K].reshape(B, N, K)


# ----------------------------------------------------------------------------
# Plain-JAX reference (mirrors the PyTorch forward exactly) for validation
# ----------------------------------------------------------------------------
def reference_forward(x, params, *, lower, upper, num_frequencies):
    base = 2.0 * jnp.pi / (upper - lower)
    freqs = base * jnp.arange(1, num_frequencies + 1, dtype=jnp.float32)
    ang = freqs * (x[..., None] - lower)                      # (..., D, F)
    ang = ang.reshape(x.shape[:-1] + (-1,))                   # (..., D*F)
    feat = jnp.concatenate([jnp.cos(ang), jnp.sin(ang)], axis=-1)
    w1 = jnp.concatenate([params["w1c"], params["w1s"]], axis=0)
    h = feat @ w1 + params["b1"]
    q = h @ params["wq"]
    k = h @ params["wk"]
    v = h @ params["wv"]
    e_dim = h.shape[-1]
    s = jnp.einsum("bnd,bmd->bnm", q, k) / jnp.sqrt(jnp.float32(e_dim))
    p = jax.nn.softmax(s, axis=-1)
    a = jnp.einsum("bnm,bmd->bnd", p, v)
    ctx = a @ params["wo"] + params["bo"] + h
    return ctx @ params["w2"] + params["b2"]


# ----------------------------------------------------------------------------
# Deterministic parameter init
# ----------------------------------------------------------------------------
def init_params(key, D, F, E, K):
    ks = jax.random.split(key, 11)
    scale = 0.1
    n = lambda k, shape: (scale * jax.random.normal(k, shape, jnp.float32))
    return dict(
        w1c=n(ks[0], (D * F, E)),
        w1s=n(ks[1], (D * F, E)),
        b1=n(ks[2], (1, E)),
        wq=n(ks[3], (E, E)),
        wk=n(ks[4], (E, E)),
        wv=n(ks[5], (E, E)),
        wo=n(ks[6], (E, E)),
        bo=n(ks[7], (1, E)),
        w2=n(ks[8], (E, K)),
        b2=n(ks[9], (1, K)),
    )


if __name__ == "__main__":
    # Small deterministic config.
    B, N, D = 4, 8, 4            # batch, points N, angle dim D1
    F = 2                        # num_frequencies
    E = 32                       # embedding_size
    K = 6                        # num_bijector_params
    lower, upper = -1.0, 1.0

    key = jax.random.PRNGKey(0)
    kx, kp = jax.random.split(key)
    x = jax.random.uniform(kx, (B, N, D), jnp.float32, minval=lower, maxval=upper)
    params = init_params(kp, D, F, E, K)

    # One-time packing (padding / permute / bf16 casts), then a jitted forward.
    packed = pack_params(params, num_frequencies=F)

    fwd = jax.jit(functools.partial(
        conditioner_forward, lower=lower, upper=upper, num_frequencies=F,
        embedding_size=E, num_bijector_params=K))

    out = jax.block_until_ready(fwd(x, packed))

    ref = jax.block_until_ready(
        reference_forward(x, params, lower=lower, upper=upper, num_frequencies=F))

    assert out.shape == (B, N, K), out.shape
    max_err = float(jnp.max(jnp.abs(out - ref)))
    # bf16 MXU operands -> slightly looser tolerance than pure f32.
    assert jnp.allclose(out, ref, rtol=2e-2, atol=2e-2), max_err
    print("KERNEL_OK")
</pallas_src>

<mosaic_0001>
module attributes {stable_mosaic.version = 11 : i64} {
  func.func @conditioner_kernel(%arg0: i32, %arg1: memref<32x4xf32, #tpu.memory_space<vmem>>, %arg2: memref<2x8x128xf32, #tpu.memory_space<vmem>>, %arg3: memref<128x384xbf16, #tpu.memory_space<vmem>>, %arg4: memref<128x128xbf16, #tpu.memory_space<vmem>>, %arg5: memref<128x128xbf16, #tpu.memory_space<vmem>>, %arg6: memref<3x128xf32, #tpu.memory_space<vmem>>, %arg7: memref<32x128xf32, #tpu.memory_space<vmem>>) attributes {dimension_semantics = [#tpu.dimension_semantics<parallel>], iteration_bounds = array<i64: 1>, scalar_prefetch = 0 : i64, scratch_operands = 0 : i64, tpu.core_type = #tpu.core_type<tc>, window_params = [{transform_indices = @transform_0, window_bounds = array<i64: 32, 4>}, {pipeline_mode = #tpu.pipeline_mode<synchronous>, transform_indices = @transform_1, window_bounds = array<i64: 2, 8, 128>}, {pipeline_mode = #tpu.pipeline_mode<synchronous>, transform_indices = @transform_2, window_bounds = array<i64: 128, 384>}, {pipeline_mode = #tpu.pipeline_mode<synchronous>, transform_indices = @transform_3, window_bounds = array<i64: 128, 128>}, {pipeline_mode = #tpu.pipeline_mode<synchronous>, transform_indices = @transform_4, window_bounds = array<i64: 128, 128>}, {pipeline_mode = #tpu.pipeline_mode<synchronous>, transform_indices = @transform_5, window_bounds = array<i64: 3, 128>}, {transform_indices = @transform_6, window_bounds = array<i64: 32, 128>}]} {
    %c0 = arith.constant 0 : index
    %c0_0 = arith.constant 0 : index
    %0 = vector.load %arg6[%c0, %c0_0] : memref<3x128xf32, #tpu.memory_space<vmem>>, vector<1x128xf32>
    %c1 = arith.constant 1 : index
    %c0_1 = arith.constant 0 : index
    %1 = vector.load %arg6[%c1, %c0_1] : memref<3x128xf32, #tpu.memory_space<vmem>>, vector<1x128xf32>
    %c2 = arith.constant 2 : index
    %c0_2 = arith.constant 0 : index
    %2 = vector.load %arg6[%c2, %c0_2] : memref<3x128xf32, #tpu.memory_space<vmem>>, vector<1x128xf32>
    %c0_3 = arith.constant 0 : index
    %c0_4 = arith.constant 0 : index
    %3 = vector.load %arg1[%c0_3, %c0_4] : memref<32x4xf32, #tpu.memory_space<vmem>>, vector<32x4xf32>
    %cst = arith.constant -1.000000e+00 : f32
    %4 = vector.broadcast %cst : f32 to vector<32x4xf32>
    %5 = arith.subf %3, %4 : vector<32x4xf32>
    %cst_5 = arith.constant 3.14159274 : f32
    %6 = vector.broadcast %cst_5 : f32 to vector<32x4xf32>
    %7 = arith.mulf %5, %6 : vector<32x4xf32>
    %8 = math.cos %7 : vector<32x4xf32>
    %9 = math.sin %7 : vector<32x4xf32>
    %cst_6 = arith.constant 6.28318548 : f32
    %10 = vector.broadcast %cst_6 : f32 to vector<32x4xf32>
    %11 = arith.mulf %5, %10 : vector<32x4xf32>
    %12 = math.cos %11 : vector<32x4xf32>
    %13 = math.sin %11 : vector<32x4xf32>
    %14 = tpu.concatenate %8, %12 in 1 : vector<32x4xf32>, vector<32x4xf32> -> vector<32x8xf32>
    %15 = tpu.concatenate %9, %13 in 1 : vector<32x4xf32>, vector<32x4xf32> -> vector<32x8xf32>
    %c0_7 = arith.constant 0 : index
    %c0_8 = arith.constant 0 : index
    %c0_9 = arith.constant 0 : index
    %16 = vector.load %arg2[%c0_7, %c0_8, %c0_9] : memref<2x8x128xf32, #tpu.memory_space<vmem>>, vector<1x8x128xf32>
    %17 = vector.shape_cast %16 : vector<1x8x128xf32> to vector<8x128xf32>
    %cst_10 = arith.constant dense<0.000000e+00> : vector<32x128xf32>
    %18 = tpu.matmul %14, %17, %cst_10 {dimension_numbers = #tpu.dot_dimension_numbers<[1], [0], [0], [1], [0, 0, 1, 1], [], []>} : vector<32x8xf32>, vector<8x128xf32>, vector<32x128xf32> -> vector<32x128xf32>
    %c1_11 = arith.constant 1 : index
    %c0_12 = arith.constant 0 : index
    %c0_13 = arith.constant 0 : index
    %19 = vector.load %arg2[%c1_11, %c0_12, %c0_13] : memref<2x8x128xf32, #tpu.memory_space<vmem>>, vector<1x8x128xf32>
    %20 = vector.shape_cast %19 : vector<1x8x128xf32> to vector<8x128xf32>
    %cst_14 = arith.constant dense<0.000000e+00> : vector<32x128xf32>
    %21 = tpu.matmul %15, %20, %cst_14 {dimension_numbers = #tpu.dot_dimension_numbers<[1], [0], [0], [1], [0, 0, 1, 1], [], []>} : vector<32x8xf32>, vector<8x128xf32>, vector<32x128xf32> -> vector<32x128xf32>
    %22 = arith.addf %18, %21 : vector<32x128xf32>
    %23 = vector.broadcast %0 : vector<1x128xf32> to vector<32x128xf32>
    %24 = arith.addf %22, %23 : vector<32x128xf32>
    %25 = arith.truncf %24 : vector<32x128xf32> to vector<32x128xbf16>
    %c0_15 = arith.constant 0 : index
    %c0_16 = arith.constant 0 : index
    %26 = vector.load %arg3[%c0_15, %c0_16] : memref<128x384xbf16, #tpu.memory_space<vmem>>, vector<128x384xbf16>
    %cst_17 = arith.constant dense<0.000000e+00> : vector<32x384xf32>
    %27 = tpu.matmul %25, %26, %cst_17 {dimension_numbers = #tpu.dot_dimension_numbers<[1], [0], [0], [1], [0, 0, 1, 1], [], []>} : vector<32x128xbf16>, vector<128x384xbf16>, vector<32x384xf32> -> vector<32x384xf32>
    %28 = vector.extract_strided_slice %27 {offsets = [0, 0], sizes = [32, 128], strides = [1, 1]} : vector<32x384xf32> to vector<32x128xf32>
    %cst_18 = arith.constant 0.176776692 : f32
    %29 = vector.broadcast %cst_18 : f32 to vector<32x128xf32>
    %30 = arith.mulf %28, %29 : vector<32x128xf32>
    %31 = arith.truncf %30 : vector<32x128xf32> to vector<32x128xbf16>
    %32 = vector.shape_cast %31 : vector<32x128xbf16> to vector<4x8x128xbf16>
    %33 = vector.extract_strided_slice %27 {offsets = [0, 128], sizes = [32, 128], strides = [1, 1]} : vector<32x384xf32> to vector<32x128xf32>
    %34 = arith.truncf %33 : vector<32x128xf32> to vector<32x128xbf16>
    %35 = vector.shape_cast %34 : vector<32x128xbf16> to vector<4x8x128xbf16>
    %36 = vector.extract_strided_slice %27 {offsets = [0, 256], sizes = [32, 128], strides = [1, 1]} : vector<32x384xf32> to vector<32x128xf32>
    %37 = arith.truncf %36 : vector<32x128xf32> to vector<32x128xbf16>
    %38 = vector.shape_cast %37 : vector<32x128xbf16> to vector<4x8x128xbf16>
    "tpu.trace_start"() <{level = 10 : i32, message = "bnd,bmd->bnm"}> : () -> ()
    %cst_19 = arith.constant dense<0.000000e+00> : vector<4x8x8xf32>
    %39 = tpu.matmul %32, %35, %cst_19 {dimension_numbers = #tpu.dot_dimension_numbers<[2], [2], [1], [1], [0, 0, 0, 1, 1, 1], [0], [0]>} : vector<4x8x128xbf16>, vector<4x8x128xbf16>, vector<4x8x8xf32> -> vector<4x8x8xf32>
    "tpu.trace_stop"() : () -> ()
    %cst_20 = arith.constant dense<0xFF800000> : vector<4x8xf32>
    %40 = vector.multi_reduction <maximumf>, %39, %cst_20 [2] : vector<4x8x8xf32> to vector<4x8xf32>
    %41 = vector.shape_cast %40 : vector<4x8xf32> to vector<4x8x1xf32>
    %42 = vector.broadcast %41 : vector<4x8x1xf32> to vector<4x8x8xf32>
    %43 = arith.subf %39, %42 : vector<4x8x8xf32>
    %44 = math.exp %43 : vector<4x8x8xf32>
    %cst_21 = arith.constant dense<0.000000e+00> : vector<4x8xf32>
    %45 = vector.multi_reduction <add>, %44, %cst_21 [2] : vector<4x8x8xf32> to vector<4x8xf32>
    %46 = vector.shape_cast %45 : vector<4x8xf32> to vector<4x8x1xf32>
    %47 = tpu.reciprocal %46 : vector<4x8x1xf32> -> vector<4x8x1xf32>
    %48 = vector.broadcast %47 : vector<4x8x1xf32> to vector<4x8x8xf32>
    %49 = arith.mulf %44, %48 : vector<4x8x8xf32>
    %50 = arith.truncf %49 : vector<4x8x8xf32> to vector<4x8x8xbf16>
    "tpu.trace_start"() <{level = 10 : i32, message = "bnm,bmd->bnd"}> : () -> ()
    %cst_22 = arith.constant dense<0.000000e+00> : vector<4x8x128xf32>
    %51 = tpu.matmul %50, %38, %cst_22 {dimension_numbers = #tpu.dot_dimension_numbers<[2], [1], [1], [2], [0, 0, 0, 1, 1, 2], [0], [0]>} : vector<4x8x8xbf16>, vector<4x8x128xbf16>, vector<4x8x128xf32> -> vector<4x8x128xf32>
    "tpu.trace_stop"() : () -> ()
    %52 = vector.shape_cast %51 : vector<4x8x128xf32> to vector<32x128xf32>
    %53 = arith.truncf %52 : vector<32x128xf32> to vector<32x128xbf16>
    %c0_23 = arith.constant 0 : index
    %c0_24 = arith.constant 0 : index
    %54 = vector.load %arg4[%c0_23, %c0_24] : memref<128x128xbf16, #tpu.memory_space<vmem>>, vector<128x128xbf16>
    %cst_25 = arith.constant dense<0.000000e+00> : vector<32x128xf32>
    %55 = tpu.matmul %53, %54, %cst_25 {dimension_numbers = #tpu.dot_dimension_numbers<[1], [0], [0], [1], [0, 0, 1, 1], [], []>} : vector<32x128xbf16>, vector<128x128xbf16>, vector<32x128xf32> -> vector<32x128xf32>
    %56 = vector.broadcast %1 : vector<1x128xf32> to vector<32x128xf32>
    %57 = arith.addf %55, %56 : vector<32x128xf32>
    %58 = arith.addf %57, %24 : vector<32x128xf32>
    %59 = arith.truncf %58 : vector<32x128xf32> to vector<32x128xbf16>
    %c0_26 = arith.constant 0 : index
    %c0_27 = arith.constant 0 : index
    %60 = vector.load %arg5[%c0_26, %c0_27] : memref<128x128xbf16, #tpu.memory_space<vmem>>, vector<128x128xbf16>
    %cst_28 = arith.constant dense<0.000000e+00> : vector<32x128xf32>
    %61 = tpu.matmul %59, %60, %cst_28 {dimension_numbers = #tpu.dot_dimension_numbers<[1], [0], [0], [1], [0, 0, 1, 1], [], []>} : vector<32x128xbf16>, vector<128x128xbf16>, vector<32x128xf32> -> vector<32x128xf32>
    %62 = vector.broadcast %2 : vector<1x128xf32> to vector<32x128xf32>
    %63 = arith.addf %61, %62 : vector<32x128xf32>
    %c0_29 = arith.constant 0 : index
    %c0_30 = arith.constant 0 : index
    %64 = vector.load %arg7[%c0_29, %c0_30] : memref<32x128xf32, #tpu.memory_space<vmem>>, vector<32x128xf32>
    tpu.vector_store %arg7[%c0_29, %c0_30], %63 {strides = array<i32>} : memref<32x128xf32, #tpu.memory_space<vmem>>, vector<32x128xf32>,
    return
  }
  func.func @transform_0(%arg0: i32) -> (i32, i32) {
    %c0_i32 = arith.constant 0 : i32
    %c0_i32_0 = arith.constant 0 : i32
    return %arg0, %c0_i32 : i32, i32
  }
  func.func @transform_1(%arg0: i32) -> (i32, i32, i32) {
    %c0_i32 = arith.constant 0 : i32
    %c0_i32_0 = arith.constant 0 : i32
    %c0_i32_1 = arith.constant 0 : i32
    %c0_i32_2 = arith.constant 0 : i32
    return %c0_i32, %c0_i32_0, %c0_i32_1 : i32, i32, i32
  }
  func.func @transform_2(%arg0: i32) -> (i32, i32) {
    %c0_i32 = arith.constant 0 : i32
    %c0_i32_0 = arith.constant 0 : i32
    %c0_i32_1 = arith.constant 0 : i32
    return %c0_i32, %c0_i32_0 : i32, i32
  }
  func.func @transform_3(%arg0: i32) -> (i32, i32) {
    %c0_i32 = arith.constant 0 : i32
    %c0_i32_0 = arith.constant 0 : i32
    %c0_i32_1 = arith.constant 0 : i32
    return %c0_i32, %c0_i32_0 : i32, i32
  }
  func.func @transform_4(%arg0: i32) -> (i32, i32) {
    %c0_i32 = arith.constant 0 : i32
    %c0_i32_0 = arith.constant 0 : i32
    %c0_i32_1 = arith.constant 0 : i32
    return %c0_i32, %c0_i32_0 : i32, i32
  }
  func.func @transform_5(%arg0: i32) -> (i32, i32) {
    %c0_i32 = arith.constant 0 : i32
    %c0_i32_0 = arith.constant 0 : i32
    %c0_i32_1 = arith.constant 0 : i32
    return %c0_i32, %c0_i32_0 : i32, i32
  }
  func.func @transform_6(%arg0: i32) -> (i32, i32) {
    %c0_i32 = arith.constant 0 : i32
    %c0_i32_0 = arith.constant 0 : i32
    return %arg0, %c0_i32 : i32, i32
  }
}

</mosaic_0001>

<llo_original>
// kernel: conditioner_forward.1
$region0: #{conditioner_forward.1}
  #allocation0 [shape = 'u32[]', space=smem, size = 0x4, offset = 0x4, fixed_abs, tag = 'smem constant byte address 0x4 - core index']
  #allocation1 [shape = 'u32[72,128]{1,0:T(1,128)}', space=vmem, size = 0x9000, scoped, tag = 'internal scratch']
  %s0 = inlined_call_operand.vmem [shape: f32[32,4], index: 0, kind: input, shape index: {}]
  %s1 = inlined_call_operand.vmem [shape: f32[2,8,128], index: 1, kind: input, shape index: {}]
  %s2 = inlined_call_operand.hbm [shape: bf16[128,384], index: 2, kind: input, shape index: {}]
  %s3 = inlined_call_operand.hbm [shape: bf16[128,128], index: 3, kind: input, shape index: {}]
  %s4 = inlined_call_operand.hbm [shape: bf16[128,128], index: 4, kind: input, shape index: {}]
  %s5 = inlined_call_operand.vmem [shape: f32[3,128], index: 5, kind: input, shape index: {}]
  %s6 = inlined_call_operand.vmem [shape: f32[32,128], index: 6, kind: output, shape index: {}]
  %s7 = sld [smem:[#allocation0]]
  $region46: #{conditioner_forward.1} parent=0
    _
  %s9 = ssub.s32 1, %s7
  %s10 = scalar_select 0, %s9, %s7
  $region1: #{conditioner_forward.1} parent=0
    #allocation2 [shape = 'u8[98304]{0}', space=vmem, size = 0x18000, scoped, tag = 'input window, operand 2, single buffered']
    #allocation3 [shape = 's32[1]{0}', space=sflag, size = 0x4, scoped, tag = 'scoped memory for conditioner_forward.1']
    #allocation4 [shape = 'u8[32768]{0}', space=vmem, size = 0x8000, scoped, tag = 'input window, operand 3, single buffered']
    #allocation5 [shape = 's32[1]{0}', space=sflag, size = 0x4, scoped, tag = 'scoped memory for conditioner_forward.1']
    #allocation6 [shape = 'u8[32768]{0}', space=vmem, size = 0x8000, scoped, tag = 'input window, operand 4, single buffered']
    %11 = vsyncpa [#allocation3], 0
    %12 = vsyncpa [#allocation5], 0
    // Predicated region
    $region2: #{conditioner_forward.1} parent=1 // pred_check
      _
    $region3: #{conditioner_forward.1} parent=1 // pred_check_branch
      %14 = sbr.rel (0) target = $region5
    $region4: #{conditioner_forward.1} parent=1 // pred_region
      _
    $region5: #{conditioner_forward.1} parent=1 // pred_fallthru
      _
    // Predicated region
    $region6: #{conditioner_forward.1} parent=1 // pred_check
      _
    $region7: #{conditioner_forward.1} parent=1 // pred_check_branch
      %16 = sbr.rel (0) target = $region9
    $region8: #{conditioner_forward.1} parent=1 // pred_region
      _
    $region9: #{conditioner_forward.1} parent=1 // pred_fallthru
      _
    // Predicated region
    $region10: #{conditioner_forward.1} parent=1 // pred_check
      _
    $region11: #{conditioner_forward.1} parent=1 // pred_check_branch
      %18 = sbr.rel (0) target = $region13
    $region12: #{conditioner_forward.1} parent=1 // pred_region
      %20 = vsyncadd [#allocation3], 0
      %s21 = sshll.u32 %s2, 4
      %s22 = int_to_ptr.hbm [resolvable:$true] %s21
      %s23 = sshll.u32 [#allocation2], 4
      %s24 = int_to_ptr.vmem [resolvable:$true] %s23
      %29 = dma.hbm_to_vmem [thread:$0]  %s22, 3072, %s24, [#allocation3], 192, 192, 12
    $region13: #{conditioner_forward.1} parent=1 // pred_fallthru
      _
    // Predicated region
    $region14: #{conditioner_forward.1} parent=1 // pred_check
      _
    $region15: #{conditioner_forward.1} parent=1 // pred_check_branch
      %31 = sbr.rel (0) target = $region17
    $region16: #{conditioner_forward.1} parent=1 // pred_region
      %33 = vsyncadd [#allocation5], 0
      %s34 = sshll.u32 %s3, 4
      %s35 = int_to_ptr.hbm [resolvable:$true] %s34
      %s36 = sshll.u32 [#allocation4], 4
      %s37 = int_to_ptr.vmem [resolvable:$true] %s36
      %42 = dma.hbm_to_vmem [thread:$0]  %s35, 1024, %s37, [#allocation5], 64, 64, 4
    $region17: #{conditioner_forward.1} parent=1 // pred_fallthru
      _
    // Predicated region
    $region18: #{conditioner_forward.1} parent=1 // pred_check
      _
    $region19: #{conditioner_forward.1} parent=1 // pred_check_branch
      %44 = sbr.rel (0) target = $region21
    $region20: #{conditioner_forward.1} parent=1 // pred_region
      %46 = vsyncadd [#allocation5], 0
      %s47 = sshll.u32 %s4, 4
      %s48 = int_to_ptr.hbm [resolvable:$true] %s47
      %s49 = sshll.u32 [#allocation6], 4
      %s50 = int_to_ptr.vmem [resolvable:$true] %s49
      %55 = dma.hbm_to_vmem [thread:$0]  %s48, 1024, %s50, [#allocation5], 64, 64, 4
    $region21: #{conditioner_forward.1} parent=1 // pred_fallthru
      _
    // Predicated region
    $region22: #{conditioner_forward.1} parent=1 // pred_check
      _
    $region23: #{conditioner_forward.1} parent=1 // pred_check_branch
      %57 = sbr.rel (0) target = $region25
    $region24: #{conditioner_forward.1} parent=1 // pred_region
      _
    $region25: #{conditioner_forward.1} parent=1 // pred_fallthru
      _
    // Predicated region
    $region26: #{conditioner_forward.1} parent=1 // pred_check
      _
    $region27: #{conditioner_forward.1} parent=1 // pred_check_branch
      %59 = sbr.rel (0) target = $region29
    $region28: #{conditioner_forward.1} parent=1 // pred_region
      %61 = dma.done [#allocation3], 3072
    $region29: #{conditioner_forward.1} parent=1 // pred_fallthru
      _
    // Predicated region
    $region30: #{conditioner_forward.1} parent=1 // pred_check
      _
    $region31: #{conditioner_forward.1} parent=1 // pred_check_branch
      %63 = sbr.rel (0) target = $region33
    $region32: #{conditioner_forward.1} parent=1 // pred_region
      %65 = dma.done [#allocation5], 1024
    $region33: #{conditioner_forward.1} parent=1 // pred_fallthru
      _
    // Predicated region
    $region34: #{conditioner_forward.1} parent=1 // pred_check
      _
    $region35: #{conditioner_forward.1} parent=1 // pred_check_branch
      %67 = sbr.rel (0) target = $region37
    $region36: #{conditioner_forward.1} parent=1 // pred_region
      %69 = dma.done [#allocation5], 1024
    $region37: #{conditioner_forward.1} parent=1 // pred_fallthru
      _
    %v71 = vld [vmem:[%s5] sm:$0x1]
    %v72 = vld [vmem:[%s5 + $0x1] sm:$0x1]
    %v73 = vld [vmem:[%s5 + $0x2] sm:$0x1]
    %v74 = vld [vmem:[%s0] sm:$0xff]
    %v75 = vld [vmem:[%s0 + $0x8] sm:$0xff]
    %v76 = vld [vmem:[%s0 + $0x10] sm:$0xff]
    %v77 = vld [vmem:[%s0 + $0x18] sm:$0xff]
    %v78 = vsub.f32 %v74, -1.0
    %v79 = vsub.f32 %v75, -1.0
    %v80 = vsub.f32 %v76, -1.0
    %v81 = vsub.f32 %v77, -1.0
    %v82 = vmul.f32 %v78, 3.1415927
    %v83 = vmul.f32 %v79, 3.1415927
    %v84 = vmul.f32 %v80, 3.1415927
    %v85 = vmul.f32 %v81, 3.1415927
    %v86 = vand.u32 2147483647, %v82
    %vm87 = vcmp.le.f32.partialorder %v86, 0.7853982
    %vm88 = vcmp.lt.s32.totalorder %v82, 0
    %v89 = vand.u32 %v82, 2139095040
    %v90 = vshrl.u32 %v89, 23
    %v91 = vsub.s32 %v90, 127
    %v92 = vand.u32 2147483647, %v82
    %v93 = vand.u32 %v92, 8388607
    %v94 = vor.u32 %v93, 8388608
    %v95 = vsub.s32 0, %v94
    %v96 = vadd.s32 %v91, 1
    %vm97 = vcmp.gt.s32.totalorder %v96, 0
    %v98 = vsel %vm97, %v96, 0
    %v99 = vshrl.u32 %v98, 5
    %v100 = vand.u32 %v98, 31
    %v101 = vsub.s32 32, %v100
    %v102 = vshrl.u32 683565275, %v101
    %v103 = vshll.u32 683565275, %v100
    %v104 = vshrl.u32 2475754826, %v101
    %v105 = vor.u32 %v103, %v104
    %v106 = vshll.u32 2475754826, %v100
    %v107 = vshrl.u32 2131351028, %v101
    %v108 = vor.u32 %v106, %v107
    %v109 = vshll.u32 2131351028, %v100
    %v110 = vshrl.u32 2102212464, %v101
    %v111 = vor.u32 %v109, %v110
    %v112 = vshll.u32 2102212464, %v100
    %v113 = vshrl.u32 920167782, %v101
    %v114 = vor.u32 %v112, %v113
    %v115 = vshll.u32 920167782, %v100
    %v116 = vshrl.u32 1326507024, %v101
    %v117 = vor.u32 %v115, %v116
    %vm118 = vcmp.lt.s32.totalorder %v99, 1
    %vm119 = vcmp.lt.s32.totalorder %v99, 2
    %vm120 = vcmp.lt.s32.totalorder %v99, 3
    %vm121 = vcmp.lt.s32.totalorder %v99, 4
    %v122 = vsel %vm118, %v102, %v105
    %v123 = vsel %vm121, %v111, 2102212464
    %v124 = vsel %vm120, %v108, %v123
    %v125 = vsel %vm119, %v122, %v124
    %v126 = vsel %vm118, %v105, %v108
    %v127 = vsel %vm121, %v114, 920167782
    %v128 = vsel %vm120, %v111, %v127
    %v129 = vsel %vm119, %v126, %v128
    %v130 = vsel %vm118, %v108, %v111
    %v131 = vsel %vm121, %v117, 1326507024
    %v132 = vsel %vm120, %v114, %v131
    %v133 = vsel %vm119, %v130, %v132
    %v134 = vshll.u32 %v94, 8
    %v135 = vand.u32 %v134, 65535
    %v136 = vshrl.u32 %v134, 16
    %v137 = vand.u32 %v133, 65535
    %v138 = vshrl.u32 %v133, 16
    %v139 = vmul.u32 %v135, %v137
    %v140 = vmul.u32 %v135, %v138
    %v141 = vmul.u32 %v136, %v137
    %v142 = vmul.u32 %v136, %v138
    %v143 = vshll.u32 %v140, 16
    %v144 = vshrl.u32 %v140, 16
    %v145 = vshll.u32 %v141, 16
    %v146 = vshrl.u32 %v141, 16
    %vm147 = vc.u32 %v139, %v143
    %v148 = vsel %vm147, 1, 0
    %v149 = vadd.s32 %v139, %v143
    %v150 = vadd.s32 %v142, %v148
    %vm151 = vc.u32 %v149, %v145
    %v152 = vsel %vm151, 1, 0
    %v153 = vadd.s32 %v149, %v145
    %v154 = vadd.s32 %v150, %v152
    %v155 = vadd.s32 %v154, %v144
    %v156 = vadd.s32 %v155, %v146
    %v157 = vand.u32 %v134, 65535
    %v158 = vshrl.u32 %v134, 16
    %v159 = vand.u32 %v129, 65535
    %v160 = vshrl.u32 %v129, 16
    %v161 = vmul.u32 %v157, %v159
    %v162 = vmul.u32 %v157, %v160
    %v163 = vmul.u32 %v158, %v159
    %v164 = vmul.u32 %v158, %v160
    %v165 = vshll.u32 %v162, 16
    %v166 = vshrl.u32 %v162, 16
    %v167 = vshll.u32 %v163, 16
    %v168 = vshrl.u32 %v163, 16
    %vm169 = vc.u32 %v161, %v165
    %v170 = vsel %vm169, 1, 0
    %v171 = vadd.s32 %v161, %v165
    %v172 = vadd.s32 %v164, %v170
    %vm173 = vc.u32 %v171, %v167
    %v174 = vsel %vm173, 1, 0
    %v175 = vadd.s32 %v171, %v167
    %v176 = vadd.s32 %v172, %v174
    %v177 = vadd.s32 %v176, %v166
    %v178 = vadd.s32 %v177, %v168
    %v179 = vmul.u32 %v134, %v125
    %v180 = vadd.s32 %v156, %v175
    %vm181 = vc.u32 %v156, %v175
    %v182 = vadd.s32 %v178, 1
    %v183 = vsel %vm181, %v182, %v178
    %v184 = vadd.s32 %v179, %v183
    %v185 = vadd.s32 %v184, 536870912
    %v186 = vshrl.u32 %v185, 30
    %v187 = vshll.u32 %v186, 30
    %v188 = vsub.s32 %v184, %v187
    %vm189 = vcmp.lt.s32.totalorder %v188, 0
    %v190 = vsub.s32 0, %v188
    %v191 = vsel %vm189, %v190, %v188
    %v192 = vclz %v191
    %v193 = vsub.s32 %v192, 2
    %vm194 = vcmp.gt.s32.totalorder 0, %v193
    %v195 = vsel %vm194, 0, %v193
    %v196 = vsub.s32 32, %v195
    %v197 = vshll.u32 %v188, %v195
    %v198 = vshrl.u32 %v180, %v196
    %v199 = vor.u32 %v197, %v198
    %v200 = vsub.s32 4294967266, %v195
    %v201 = vadd.s32 %v200, 127
    %v202 = vshll.u32 %v201, 23
    %v203 = vor.u32 4788187, %v202
    %v204 = vand.u32 2147483647, %v203
    %v206 = vcvt.s32.f32 %v199
    %v207 = vmul.f32 %v206, %v204
    %v208 = vxor.u32 %v207, 2147483648
    %v209 = vsel %vm88, %v208, %v207
    %v210 = vsub.s32 4, %v186
    %v211 = vsel %vm88, %v210, %v186
    %v212 = vsel %vm87, %v82, %v209
    %v213 = vsel %vm87, 0, %v211
    %v214 = vmul.f32 %v212, %v212
    %v215 = vmul.f32 %v214, -0.001358992
    %v216 = vadd.f32 %v215, 0.041655596
    %v217 = vmul.f32 %v214, %v216
    %v218 = vadd.f32 %v217, -0.4999988
    %v219 = vmul.f32 %v214, %v218
    %v220 = vadd.f32 1.0, %v219
    %v221 = vmul.f32 %v212, %v212
    %v222 = vmul.f32 %v221, -0.00019511016
    %v223 = vadd.f32 %v222, 0.008332121
    %v224 = vmul.f32 %v221, %v223
    %v225 = vadd.f32 %v224, -0.16666654
    %v226 = vmul.f32 %v221, %v225
    %v227 = vadd.f32 %v226, 1.0
    %v228 = vmul.f32 %v227, %v212
    %vm229 = vweird.f32 %v82
    %v230 = vand.u32 %v213, 3
    %vm231 = vcmp.lt.s32.totalorder %v230, 2
    %vm232 = vcmp.eq.s32.totalorder %v230, 0
    %v233 = vxor.u32 %v228, 2147483648
    %v234 = vsel %vm232, %v220, %v233
    %vm235 = vcmp.eq.s32.totalorder %v230, 2
    %v236 = vxor.u32 %v220, 2147483648
    %v237 = vsel %vm235, %v236, %v228
    %v238 = vsel %vm231, %v234, %v237
    %v239 = vsel %vm229, nan, %v238
    %v240 = vand.u32 2147483647, %v83
    %vm241 = vcmp.le.f32.partialorder %v240, 0.7853982
    %vm242 = vcmp.lt.s32.totalorder %v83, 0
    %v243 = vand.u32 %v83, 2139095040
    %v244 = vshrl.u32 %v243, 23
    %v245 = vsub.s32 %v244, 127
    %v246 = vand.u32 2147483647, %v83
    %v247 = vand.u32 %v246, 8388607
    %v248 = vor.u32 %v247, 8388608
    %v249 = vsub.s32 0, %v248
    %v250 = vadd.s32 %v245, 1
    %vm251 = vcmp.gt.s32.totalorder %v250, 0
    %v252 = vsel %vm251, %v250, 0
    %v253 = vshrl.u32 %v252, 5
    %v254 = vand.u32 %v252, 31
    %v255 = vsub.s32 32, %v254
    %v256 = vshrl.u32 683565275, %v255
    %v257 = vshll.u32 683565275, %v254
    %v258 = vshrl.u32 2475754826, %v255
    %v259 = vor.u32 %v257, %v258
    %v260 = vshll.u32 2475754826, %v254
    %v261 = vshrl.u32 2131351028, %v255
    %v262 = vor.u32 %v260, %v261
    %v263 = vshll.u32 2131351028, %v254
    %v264 = vshrl.u32 2102212464, %v255
    %v265 = vor.u32 %v263, %v264
    %v266 = vshll.u32 2102212464, %v254
    %v267 = vshrl.u32 920167782, %v255
    %v268 = vor.u32 %v266, %v267
    %v269 = vshll.u32 920167782, %v254
    %v270 = vshrl.u32 1326507024, %v255
    %v271 = vor.u32 %v269, %v270
    %vm272 = vcmp.lt.s32.totalorder %v253, 1
    %vm273 = vcmp.lt.s32.totalorder %v253, 2
    %vm274 = vcmp.lt.s32.totalorder %v253, 3
    %vm275 = vcmp.lt.s32.totalorder %v253, 4
    %v276 = vsel %vm272, %v256, %v259
    %v277 = vsel %vm275, %v265, 2102212464
    %v278 = vsel %vm274, %v262, %v277
    %v279 = vsel %vm273, %v276, %v278
    %v280 = vsel %vm272, %v259, %v262
    %v281 = vsel %vm275, %v268, 920167782
    %v282 = vsel %vm274, %v265, %v281
    %v283 = vsel %vm273, %v280, %v282
    %v284 = vsel %vm272, %v262, %v265
    %v285 = vsel %vm275, %v271, 1326507024
    %v286 = vsel %vm274, %v268, %v285
    %v287 = vsel %vm273, %v284, %v286
    %v288 = vshll.u32 %v248, 8
    %v289 = vand.u32 %v288, 65535
    %v290 = vshrl.u32 %v288, 16
    %v291 = vand.u32 %v287, 65535
    %v292 = vshrl.u32 %v287, 16
    %v293 = vmul.u32 %v289, %v291
    %v294 = vmul.u32 %v289, %v292
    %v295 = vmul.u32 %v290, %v291
    %v296 = vmul.u32 %v290, %v292
    %v297 = vshll.u32 %v294, 16
    %v298 = vshrl.u32 %v294, 16
    %v299 = vshll.u32 %v295, 16
    %v300 = vshrl.u32 %v295, 16
    %vm301 = vc.u32 %v293, %v297
    %v302 = vsel %vm301, 1, 0
    %v303 = vadd.s32 %v293, %v297
    %v304 = vadd.s32 %v296, %v302
    %vm305 = vc.u32 %v303, %v299
    %v306 = vsel %vm305, 1, 0
    %v307 = vadd.s32 %v303, %v299
    %v308 = vadd.s32 %v304, %v306
    %v309 = vadd.s32 %v308, %v298
    %v310 = vadd.s32 %v309, %v300
    %v311 = vand.u32 %v288, 65535
    %v312 = vshrl.u32 %v288, 16
    %v313 = vand.u32 %v283, 65535
    %v314 = vshrl.u32 %v283, 16
    %v315 = vmul.u32 %v311, %v313
    %v316 = vmul.u32 %v311, %v314
    %v317 = vmul.u32 %v312, %v313
    %v318 = vmul.u32 %v312, %v314
    %v319 = vshll.u32 %v316, 16
    %v320 = vshrl.u32 %v316, 16
    %v321 = vshll.u32 %v317, 16
    %v322 = vshrl.u32 %v317, 16
    %vm323 = vc.u32 %v315, %v319
    %v324 = vsel %vm323, 1, 0
    %v325 = vadd.s32 %v315, %v319
    %v326 = vadd.s32 %v318, %v324
    %vm327 = vc.u32 %v325, %v321
    %v328 = vsel %vm327, 1, 0
    %v329 = vadd.s32 %v325, %v321
    %v330 = vadd.s32 %v326, %v328
    %v331 = vadd.s32 %v330, %v320
    %v332 = vadd.s32 %v331, %v322
    %v333 = vmul.u32 %v288, %v279
    %v334 = vadd.s32 %v310, %v329
    %vm335 = vc.u32 %v310, %v329
    %v336 = vadd.s32 %v332, 1
    %v337 = vsel %vm335, %v336, %v332
    %v338 = vadd.s32 %v333, %v337
    %v339 = vadd.s32 %v338, 536870912
    %v340 = vshrl.u32 %v339, 30
    %v341 = vshll.u32 %v340, 30
    %v342 = vsub.s32 %v338, %v341
    %vm343 = vcmp.lt.s32.totalorder %v342, 0
    %v344 = vsub.s32 0, %v342
    %v345 = vsel %vm343, %v344, %v342
    %v346 = vclz %v345
    %v347 = vsub.s32 %v346, 2
    %vm348 = vcmp.gt.s32.totalorder 0, %v347
    %v349 = vsel %vm348, 0, %v347
    %v350 = vsub.s32 32, %v349
    %v351 = vshll.u32 %v342, %v349
    %v352 = vshrl.u32 %v334, %v350
    %v353 = vor.u32 %v351, %v352
    %v354 = vsub.s32 4294967266, %v349
    %v355 = vadd.s32 %v354, 127
    %v356 = vshll.u32 %v355, 23
    %v357 = vor.u32 4788187, %v356
    %v358 = vand.u32 2147483647, %v357
    %v360 = vcvt.s32.f32 %v353
    %v361 = vmul.f32 %v360, %v358
    %v362 = vxor.u32 %v361, 2147483648
    %v363 = vsel %vm242, %v362, %v361
    %v364 = vsub.s32 4, %v340
    %v365 = vsel %vm242, %v364, %v340
    %v366 = vsel %vm241, %v83, %v363
    %v367 = vsel %vm241, 0, %v365
    %v368 = vmul.f32 %v366, %v366
    %v369 = vmul.f32 %v368, -0.001358992
    %v370 = vadd.f32 %v369, 0.041655596
    %v371 = vmul.f32 %v368, %v370
    %v372 = vadd.f32 %v371, -0.4999988
    %v373 = vmul.f32 %v368, %v372
    %v374 = vadd.f32 1.0, %v373
    %v375 = vmul.f32 %v366, %v366
    %v376 = vmul.f32 %v375, -0.00019511016
    %v377 = vadd.f32 %v376, 0.008332121
    %v378 = vmul.f32 %v375, %v377
    %v379 = vadd.f32 %v378, -0.16666654
    %v380 = vmul.f32 %v375, %v379
    %v381 = vadd.f32 %v380, 1.0
    %v382 = vmul.f32 %v381, %v366
    %vm383 = vweird.f32 %v83
    %v384 = vand.u32 %v367, 3
    %vm385 = vcmp.lt.s32.totalorder %v384, 2
    %vm386 = vcmp.eq.s32.totalorder %v384, 0
    %v387 = vxor.u32 %v382, 2147483648
    %v388 = vsel %vm386, %v374, %v387
    %vm389 = vcmp.eq.s32.totalorder %v384, 2
    %v390 = vxor.u32 %v374, 2147483648
    %v391 = vsel %vm389, %v390, %v382
    %v392 = vsel %vm385, %v388, %v391
    %v393 = vsel %vm383, nan, %v392
    %v394 = vand.u32 2147483647, %v84
    %vm395 = vcmp.le.f32.partialorder %v394, 0.7853982
    %vm396 = vcmp.lt.s32.totalorder %v84, 0
    %v397 = vand.u32 %v84, 2139095040
    %v398 = vshrl.u32 %v397, 23
    %v399 = vsub.s32 %v398, 127
    %v400 = vand.u32 2147483647, %v84
    %v401 = vand.u32 %v400, 8388607
    %v402 = vor.u32 %v401, 8388608
    %v403 = vsub.s32 0, %v402
    %v404 = vadd.s32 %v399, 1
    %vm405 = vcmp.gt.s32.totalorder %v404, 0
    %v406 = vsel %vm405, %v404, 0
    %v407 = vshrl.u32 %v406, 5
    %v408 = vand.u32 %v406, 31
    %v409 = vsub.s32 32, %v408
    %v410 = vshrl.u32 683565275, %v409
    %v411 = vshll.u32 683565275, %v408
    %v412 = vshrl.u32 2475754826, %v409
    %v413 = vor.u32 %v411, %v412
    %v414 = vshll.u32 2475754826, %v408
    %v415 = vshrl.u32 2131351028, %v409
    %v416 = vor.u32 %v414, %v415
    %v417 = vshll.u32 2131351028, %v408
    %v418 = vshrl.u32 2102212464, %v409
    %v419 = vor.u32 %v417, %v418
    %v420 = vshll.u32 2102212464, %v408
    %v421 = vshrl.u32 920167782, %v409
    %v422 = vor.u32 %v420, %v421
    %v423 = vshll.u32 920167782, %v408
    %v424 = vshrl.u32 1326507024, %v409
    %v425 = vor.u32 %v423, %v424
    %vm426 = vcmp.lt.s32.totalorder %v407, 1
    %vm427 = vcmp.lt.s32.totalorder %v407, 2
    %vm428 = vcmp.lt.s32.totalorder %v407, 3
    %vm429 = vcmp.lt.s32.totalorder %v407, 4
    %v430 = vsel %vm426, %v410, %v413
    %v431 = vsel %vm429, %v419, 2102212464
    %v432 = vsel %vm428, %v416, %v431
    %v433 = vsel %vm427, %v430, %v432
    %v434 = vsel %vm426, %v413, %v416
    %v435 = vsel %vm429, %v422, 920167782
    %v436 = vsel %vm428, %v419, %v435
    %v437 = vsel %vm427, %v434, %v436
    %v438 = vsel %vm426, %v416, %v419
    %v439 = vsel %vm429, %v425, 1326507024
    %v440 = vsel %vm428, %v422, %v439
    %v441 = vsel %vm427, %v438, %v440
    %v442 = vshll.u32 %v402, 8
    %v443 = vand.u32 %v442, 65535
    %v444 = vshrl.u32 %v442, 16
    %v445 = vand.u32 %v441, 65535
    %v446 = vshrl.u32 %v441, 16
    %v447 = vmul.u32 %v443, %v445
    %v448 = vmul.u32 %v443, %v446
    %v449 = vmul.u32 %v444, %v445
    %v450 = vmul.u32 %v444, %v446
    %v451 = vshll.u32 %v448, 16
    %v452 = vshrl.u32 %v448, 16
    %v453 = vshll.u32 %v449, 16
    %v454 = vshrl.u32 %v449, 16
    %vm455 = vc.u32 %v447, %v451
    %v456 = vsel %vm455, 1, 0
    %v457 = vadd.s32 %v447, %v451
    %v458 = vadd.s32 %v450, %v456
    %vm459 = vc.u32 %v457, %v453
    %v460 = vsel %vm459, 1, 0
    %v461 = vadd.s32 %v457, %v453
    %v462 = vadd.s32 %v458, %v460
    %v463 = vadd.s32 %v462, %v452
    %v464 = vadd.s32 %v463, %v454
    %v465 = vand.u32 %v442, 65535
    %v466 = vshrl.u32 %v442, 16
    %v467 = vand.u32 %v437, 65535
    %v468 = vshrl.u32 %v437, 16
    %v469 = vmul.u32 %v465, %v467
    %v470 = vmul.u32 %v465, %v468
    %v471 = vmul.u32 %v466, %v467
    %v472 = vmul.u32 %v466, %v468
    %v473 = vshll.u32 %v470, 16
    %v474 = vshrl.u32 %v470, 16
    %v475 = vshll.u32 %v471, 16
    %v476 = vshrl.u32 %v471, 16
    %vm477 = vc.u32 %v469, %v473
    %v478 = vsel %vm477, 1, 0
    %v479 = vadd.s32 %v469, %v473
    %v480 = vadd.s32 %v472, %v478
    %vm481 = vc.u32 %v479, %v475
    %v482 = vsel %vm481, 1, 0
    %v483 = vadd.s32 %v479, %v475
    %v484 = vadd.s32 %v480, %v482
    %v485 = vadd.s32 %v484, %v474
    %v486 = vadd.s32 %v485, %v476
    %v487 = vmul.u32 %v442, %v433
    %v488 = vadd.s32 %v464, %v483
    %vm489 = vc.u32 %v464, %v483
    %v490 = vadd.s32 %v486, 1
    %v491 = vsel %vm489, %v490, %v486
    %v492 = vadd.s32 %v487, %v491
    %v493 = vadd.s32 %v492, 536870912
    %v494 = vshrl.u32 %v493, 30
    %v495 = vshll.u32 %v494, 30
    %v496 = vsub.s32 %v492, %v495
    %vm497 = vcmp.lt.s32.totalorder %v496, 0
    %v498 = vsub.s32 0, %v496
    %v499 = vsel %vm497, %v498, %v496
    %v500 = vclz %v499
    %v501 = vsub.s32 %v500, 2
    %vm502 = vcmp.gt.s32.totalorder 0, %v501
    %v503 = vsel %vm502, 0, %v501
    %v504 = vsub.s32 32, %v503
    %v505 = vshll.u32 %v496, %v503
    %v506 = vshrl.u32 %v488, %v504
    %v507 = vor.u32 %v505, %v506
    %v508 = vsub.s32 4294967266, %v503
    %v509 = vadd.s32 %v508, 127
    %v510 = vshll.u32 %v509, 23
    %v511 = vor.u32 4788187, %v510
    %v512 = vand.u32 2147483647, %v511
    %v514 = vcvt.s32.f32 %v507
    %v515 = vmul.f32 %v514, %v512
    %v516 = vxor.u32 %v515, 2147483648
    %v517 = vsel %vm396, %v516, %v515
    %v518 = vsub.s32 4, %v494
    %v519 = vsel %vm396, %v518, %v494
    %v520 = vsel %vm395, %v84, %v517
    %v521 = vsel %vm395, 0, %v519
    %v522 = vmul.f32 %v520, %v520
    %v523 = vmul.f32 %v522, -0.001358992
    %v524 = vadd.f32 %v523, 0.041655596
    %v525 = vmul.f32 %v522, %v524
    %v526 = vadd.f32 %v525, -0.4999988
    %v527 = vmul.f32 %v522, %v526
    %v528 = vadd.f32 1.0, %v527
    %v529 = vmul.f32 %v520, %v520
    %v530 = vmul.f32 %v529, -0.00019511016
    %v531 = vadd.f32 %v530, 0.008332121
    %v532 = vmul.f32 %v529, %v531
    %v533 = vadd.f32 %v532, -0.16666654
    %v534 = vmul.f32 %v529, %v533
    %v535 = vadd.f32 %v534, 1.0
    %v536 = vmul.f32 %v535, %v520
    %vm537 = vweird.f32 %v84
    %v538 = vand.u32 %v521, 3
    %vm539 = vcmp.lt.s32.totalorder %v538, 2
    %vm540 = vcmp.eq.s32.totalorder %v538, 0
    %v541 = vxor.u32 %v536, 2147483648
    %v542 = vsel %vm540, %v528, %v541
    %vm543 = vcmp.eq.s32.totalorder %v538, 2
    %v544 = vxor.u32 %v528, 2147483648
    %v545 = vsel %vm543, %v544, %v536
    %v546 = vsel %vm539, %v542, %v545
    %v547 = vsel %vm537, nan, %v546
    %v548 = vand.u32 2147483647, %v85
    %vm549 = vcmp.le.f32.partialorder %v548, 0.7853982
    %vm550 = vcmp.lt.s32.totalorder %v85, 0
    %v551 = vand.u32 %v85, 2139095040
    %v552 = vshrl.u32 %v551, 23
    %v553 = vsub.s32 %v552, 127
    %v554 = vand.u32 2147483647, %v85
    %v555 = vand.u32 %v554, 8388607
    %v556 = vor.u32 %v555, 8388608
    %v557 = vsub.s32 0, %v556
    %v558 = vadd.s32 %v553, 1
    %vm559 = vcmp.gt.s32.totalorder %v558, 0
    %v560 = vsel %vm559, %v558, 0
    %v561 = vshrl.u32 %v560, 5
    %v562 = vand.u32 %v560, 31
    %v563 = vsub.s32 32, %v562
    %v564 = vshrl.u32 683565275, %v563
    %v565 = vshll.u32 683565275, %v562
    %v566 = vshrl.u32 2475754826, %v563
    %v567 = vor.u32 %v565, %v566
    %v568 = vshll.u32 2475754826, %v562
    %v569 = vshrl.u32 2131351028, %v563
    %v570 = vor.u32 %v568, %v569
    %v571 = vshll.u32 2131351028, %v562
    %v572 = vshrl.u32 2102212464, %v563
    %v573 = vor.u32 %v571, %v572
    %v574 = vshll.u32 2102212464, %v562
    %v575 = vshrl.u32 920167782, %v563
    %v576 = vor.u32 %v574, %v575
    %v577 = vshll.u32 920167782, %v562
    %v578 = vshrl.u32 1326507024, %v563
    %v579 = vor.u32 %v577, %v578
    %vm580 = vcmp.lt.s32.totalorder %v561, 1
    %vm581 = vcmp.lt.s32.totalorder %v561, 2
    %vm582 = vcmp.lt.s32.totalorder %v561, 3
    %vm583 = vcmp.lt.s32.totalorder %v561, 4
    %v584 = vsel %vm580, %v564, %v567
    %v585 = vsel %vm583, %v573, 2102212464
    %v586 = vsel %vm582, %v570, %v585
    %v587 = vsel %vm581, %v584, %v586
    %v588 = vsel %vm580, %v567, %v570
    %v589 = vsel %vm583, %v576, 920167782
    %v590 = vsel %vm582, %v573, %v589
    %v591 = vsel %vm581, %v588, %v590
    %v592 = vsel %vm580, %v570, %v573
    %v593 = vsel %vm583, %v579, 1326507024
    %v594 = vsel %vm582, %v576, %v593
    %v595 = vsel %vm581, %v592, %v594
    %v596 = vshll.u32 %v556, 8
    %v597 = vand.u32 %v596, 65535
    %v598 = vshrl.u32 %v596, 16
    %v599 = vand.u32 %v595, 65535
    %v600 = vshrl.u32 %v595, 16
    %v601 = vmul.u32 %v597, %v599
    %v602 = vmul.u32 %v597, %v600
    %v603 = vmul.u32 %v598, %v599
    %v604 = vmul.u32 %v598, %v600
    %v605 = vshll.u32 %v602, 16
    %v606 = vshrl.u32 %v602, 16
    %v607 = vshll.u32 %v603, 16
    %v608 = vshrl.u32 %v603, 16
    %vm609 = vc.u32 %v601, %v605
    %v610 = vsel %vm609, 1, 0
    %v611 = vadd.s32 %v601, %v605
    %v612 = vadd.s32 %v604, %v610
    %vm613 = vc.u32 %v611, %v607
    %v614 = vsel %vm613, 1, 0
    %v615 = vadd.s32 %v611, %v607
    %v616 = vadd.s32 %v612, %v614
    %v617 = vadd.s32 %v616, %v606
    %v618 = vadd.s32 %v617, %v608
    %v619 = vand.u32 %v596, 65535
    %v620 = vshrl.u32 %v596, 16
    %v621 = vand.u32 %v591, 65535
    %v622 = vshrl.u32 %v591, 16
    %v623 = vmul.u32 %v619, %v621
    %v624 = vmul.u32 %v619, %v622
    %v625 = vmul.u32 %v620, %v621
    %v626 = vmul.u32 %v620, %v622
    %v627 = vshll.u32 %v624, 16
    %v628 = vshrl.u32 %v624, 16
    %v629 = vshll.u32 %v625, 16
    %v630 = vshrl.u32 %v625, 16
    %vm631 = vc.u32 %v623, %v627
    %v632 = vsel %vm631, 1, 0
    %v633 = vadd.s32 %v623, %v627
    %v634 = vadd.s32 %v626, %v632
    %vm635 = vc.u32 %v633, %v629
    %v636 = vsel %vm635, 1, 0
    %v637 = vadd.s32 %v633, %v629
    %v638 = vadd.s32 %v634, %v636
    %v639 = vadd.s32 %v638, %v628
    %v640 = vadd.s32 %v639, %v630
    %v641 = vmul.u32 %v596, %v587
    %v642 = vadd.s32 %v618, %v637
    %vm643 = vc.u32 %v618, %v637
    %v644 = vadd.s32 %v640, 1
    %v645 = vsel %vm643, %v644, %v640
    %v646 = vadd.s32 %v641, %v645
    %v647 = vadd.s32 %v646, 536870912
    %v648 = vshrl.u32 %v647, 30
    %v649 = vshll.u32 %v648, 30
    %v650 = vsub.s32 %v646, %v649
    %vm651 = vcmp.lt.s32.totalorder %v650, 0
    %v652 = vsub.s32 0, %v650
    %v653 = vsel %vm651, %v652, %v650
    %v654 = vclz %v653
    %v655 = vsub.s32 %v654, 2
    %vm656 = vcmp.gt.s32.totalorder 0, %v655
    %v657 = vsel %vm656, 0, %v655
    %v658 = vsub.s32 32, %v657
    %v659 = vshll.u32 %v650, %v657
    %v660 = vshrl.u32 %v642, %v658
    %v661 = vor.u32 %v659, %v660
    %v662 = vsub.s32 4294967266, %v657
    %v663 = vadd.s32 %v662, 127
    %v664 = vshll.u32 %v663, 23
    %v665 = vor.u32 4788187, %v664
    %v666 = vand.u32 2147483647, %v665
    %v668 = vcvt.s32.f32 %v661
    %v669 = vmul.f32 %v668, %v666
    %v670 = vxor.u32 %v669, 2147483648
    %v671 = vsel %vm550, %v670, %v669
    %v672 = vsub.s32 4, %v648
    %v673 = vsel %vm550, %v672, %v648
    %v674 = vsel %vm549, %v85, %v671
    %v675 = vsel %vm549, 0, %v673
    %v676 = vmul.f32 %v674, %v674
    %v677 = vmul.f32 %v676, -0.001358992
    %v678 = vadd.f32 %v677, 0.041655596
    %v679 = vmul.f32 %v676, %v678
    %v680 = vadd.f32 %v679, -0.4999988
    %v681 = vmul.f32 %v676, %v680
    %v682 = vadd.f32 1.0, %v681
    %v683 = vmul.f32 %v674, %v674
    %v684 = vmul.f32 %v683, -0.00019511016
    %v685 = vadd.f32 %v684, 0.008332121
    %v686 = vmul.f32 %v683, %v685
    %v687 = vadd.f32 %v686, -0.16666654
    %v688 = vmul.f32 %v683, %v687
    %v689 = vadd.f32 %v688, 1.0
    %v690 = vmul.f32 %v689, %v674
    %vm691 = vweird.f32 %v85
    %v692 = vand.u32 %v675, 3
    %vm693 = vcmp.lt.s32.totalorder %v692, 2
    %vm694 = vcmp.eq.s32.totalorder %v692, 0
    %v695 = vxor.u32 %v690, 2147483648
    %v696 = vsel %vm694, %v682, %v695
    %vm697 = vcmp.eq.s32.totalorder %v692, 2
    %v698 = vxor.u32 %v682, 2147483648
    %v699 = vsel %vm697, %v698, %v690
    %v700 = vsel %vm693, %v696, %v699
    %v701 = vsel %vm691, nan, %v700
    %v702 = vand.u32 2147483647, %v82
    %vm703 = vcmp.le.f32.partialorder %v702, 0.7853982
    %vm704 = vcmp.lt.s32.totalorder %v82, 0
    %v705 = vand.u32 %v82, 2139095040
    %v706 = vshrl.u32 %v705, 23
    %v707 = vsub.s32 %v706, 127
    %v708 = vand.u32 2147483647, %v82
    %v709 = vand.u32 %v708, 8388607
    %v710 = vor.u32 %v709, 8388608
    %v711 = vsub.s32 0, %v710
    %v712 = vadd.s32 %v707, 1
    %vm713 = vcmp.gt.s32.totalorder %v712, 0
    %v714 = vsel %vm713, %v712, 0
    %v715 = vshrl.u32 %v714, 5
    %v716 = vand.u32 %v714, 31
    %v717 = vsub.s32 32, %v716
    %v718 = vshrl.u32 683565275, %v717
    %v719 = vshll.u32 683565275, %v716
    %v720 = vshrl.u32 2475754826, %v717
    %v721 = vor.u32 %v719, %v720
    %v722 = vshll.u32 2475754826, %v716
    %v723 = vshrl.u32 2131351028, %v717
    %v724 = vor.u32 %v722, %v723
    %v725 = vshll.u32 2131351028, %v716
    %v726 = vshrl.u32 2102212464, %v717
    %v727 = vor.u32 %v725, %v726
    %v728 = vshll.u32 2102212464, %v716
    %v729 = vshrl.u32 920167782, %v717
    %v730 = vor.u32 %v728, %v729
    %v731 = vshll.u32 920167782, %v716
    %v732 = vshrl.u32 1326507024, %v717
    %v733 = vor.u32 %v731, %v732
    %vm734 = vcmp.lt.s32.totalorder %v715, 1
    %vm735 = vcmp.lt.s32.totalorder %v715, 2
    %vm736 = vcmp.lt.s32.totalorder %v715, 3
    %vm737 = vcmp.lt.s32.totalorder %v715, 4
    %v738 = vsel %vm734, %v718, %v721
    %v739 = vsel %vm737, %v727, 2102212464
    %v740 = vsel %vm736, %v724, %v739
    %v741 = vsel %vm735, %v738, %v740
    %v742 = vsel %vm734, %v721, %v724
    %v743 = vsel %vm737, %v730, 920167782
    %v744 = vsel %vm736, %v727, %v743
    %v745 = vsel %vm735, %v742, %v744
    %v746 = vsel %vm734, %v724, %v727
    %v747 = vsel %vm737, %v733, 1326507024
    %v748 = vsel %vm736, %v730, %v747
    %v749 = vsel %vm735, %v746, %v748
    %v750 = vshll.u32 %v710, 8
    %v751 = vand.u32 %v750, 65535
    %v752 = vshrl.u32 %v750, 16
    %v753 = vand.u32 %v749, 65535
    %v754 = vshrl.u32 %v749, 16
    %v755 = vmul.u32 %v751, %v753
    %v756 = vmul.u32 %v751, %v754
    %v757 = vmul.u32 %v752, %v753
    %v758 = vmul.u32 %v752, %v754
    %v759 = vshll.u32 %v756, 16
    %v760 = vshrl.u32 %v756, 16
    %v761 = vshll.u32 %v757, 16
    %v762 = vshrl.u32 %v757, 16
    %vm763 = vc.u32 %v755, %v759
    %v764 = vsel %vm763, 1, 0
    %v765 = vadd.s32 %v755, %v759
    %v766 = vadd.s32 %v758, %v764
    %vm767 = vc.u32 %v765, %v761
    %v768 = vsel %vm767, 1, 0
    %v769 = vadd.s32 %v765, %v761
    %v770 = vadd.s32 %v766, %v768
    %v771 = vadd.s32 %v770, %v760
    %v772 = vadd.s32 %v771, %v762
    %v773 = vand.u32 %v750, 65535
    %v774 = vshrl.u32 %v750, 16
    %v775 = vand.u32 %v745, 65535
    %v776 = vshrl.u32 %v745, 16
    %v777 = vmul.u32 %v773, %v775
    %v778 = vmul.u32 %v773, %v776
    %v779 = vmul.u32 %v774, %v775
    %v780 = vmul.u32 %v774, %v776
    %v781 = vshll.u32 %v778, 16
    %v782 = vshrl.u32 %v778, 16
    %v783 = vshll.u32 %v779, 16
    %v784 = vshrl.u32 %v779, 16
    %vm785 = vc.u32 %v777, %v781
    %v786 = vsel %vm785, 1, 0
    %v787 = vadd.s32 %v777, %v781
    %v788 = vadd.s32 %v780, %v786
    %vm789 = vc.u32 %v787, %v783
    %v790 = vsel %vm789, 1, 0
    %v791 = vadd.s32 %v787, %v783
    %v792 = vadd.s32 %v788, %v790
    %v793 = vadd.s32 %v792, %v782
    %v794 = vadd.s32 %v793, %v784
    %v795 = vmul.u32 %v750, %v741
    %v796 = vadd.s32 %v772, %v791
    %vm797 = vc.u32 %v772, %v791
    %v798 = vadd.s32 %v794, 1
    %v799 = vsel %vm797, %v798, %v794
    %v800 = vadd.s32 %v795, %v799
    %v801 = vadd.s32 %v800, 536870912
    %v802 = vshrl.u32 %v801, 30
    %v803 = vshll.u32 %v802, 30
    %v804 = vsub.s32 %v800, %v803
    %vm805 = vcmp.lt.s32.totalorder %v804, 0
    %v806 = vsub.s32 0, %v804
    %v807 = vsel %vm805, %v806, %v804
    %v808 = vclz %v807
    %v809 = vsub.s32 %v808, 2
    %vm810 = vcmp.gt.s32.totalorder 0, %v809
    %v811 = vsel %vm810, 0, %v809
    %v812 = vsub.s32 32, %v811
    %v813 = vshll.u32 %v804, %v811
    %v814 = vshrl.u32 %v796, %v812
    %v815 = vor.u32 %v813, %v814
    %v816 = vsub.s32 4294967266, %v811
    %v817 = vadd.s32 %v816, 127
    %v818 = vshll.u32 %v817, 23
    %v819 = vor.u32 4788187, %v818
    %v820 = vand.u32 2147483647, %v819
    %v822 = vcvt.s32.f32 %v815
    %v823 = vmul.f32 %v822, %v820
    %v824 = vxor.u32 %v823, 2147483648
    %v825 = vsel %vm704, %v824, %v823
    %v826 = vsub.s32 4, %v802
    %v827 = vsel %vm704, %v826, %v802
    %v828 = vsel %vm703, %v82, %v825
    %v829 = vsel %vm703, 0, %v827
    %v830 = vmul.f32 %v828, %v828
    %v831 = vmul.f32 %v830, -0.001358992
    %v832 = vadd.f32 %v831, 0.041655596
    %v833 = vmul.f32 %v830, %v832
    %v834 = vadd.f32 %v833, -0.4999988
    %v835 = vmul.f32 %v830, %v834
    %v836 = vadd.f32 1.0, %v835
    %v837 = vmul.f32 %v828, %v828
    %v838 = vmul.f32 %v837, -0.00019511016
    %v839 = vadd.f32 %v838, 0.008332121
    %v840 = vmul.f32 %v837, %v839
    %v841 = vadd.f32 %v840, -0.16666654
    %v842 = vmul.f32 %v837, %v841
    %v843 = vadd.f32 %v842, 1.0
    %v844 = vmul.f32 %v843, %v828
    %vm845 = vweird.f32 %v82
    %v846 = vadd.s32 %v829, 3
    %v847 = vand.u32 %v846, 3
    %vm848 = vcmp.lt.s32.totalorder %v847, 2
    %vm849 = vcmp.eq.s32.totalorder %v847, 0
    %v850 = vxor.u32 %v844, 2147483648
    %v851 = vsel %vm849, %v836, %v850
    %vm852 = vcmp.eq.s32.totalorder %v847, 2
    %v853 = vxor.u32 %v836, 2147483648
    %v854 = vsel %vm852, %v853, %v844
    %v855 = vsel %vm848, %v851, %v854
    %v856 = vsel %vm845, nan, %v855
    %v857 = vand.u32 2147483647, %v83
    %vm858 = vcmp.le.f32.partialorder %v857, 0.7853982
    %vm859 = vcmp.lt.s32.totalorder %v83, 0
    %v860 = vand.u32 %v83, 2139095040
    %v861 = vshrl.u32 %v860, 23
    %v862 = vsub.s32 %v861, 127
    %v863 = vand.u32 2147483647, %v83
    %v864 = vand.u32 %v863, 8388607
    %v865 = vor.u32 %v864, 8388608
    %v866 = vsub.s32 0, %v865
    %v867 = vadd.s32 %v862, 1
    %vm868 = vcmp.gt.s32.totalorder %v867, 0
    %v869 = vsel %vm868, %v867, 0
    %v870 = vshrl.u32 %v869, 5
    %v871 = vand.u32 %v869, 31
    %v872 = vsub.s32 32, %v871
    %v873 = vshrl.u32 683565275, %v872
    %v874 = vshll.u32 683565275, %v871
    %v875 = vshrl.u32 2475754826, %v872
    %v876 = vor.u32 %v874, %v875
    %v877 = vshll.u32 2475754826, %v871
    %v878 = vshrl.u32 2131351028, %v872
    %v879 = vor.u32 %v877, %v878
    %v880 = vshll.u32 2131351028, %v871
    %v881 = vshrl.u32 2102212464, %v872
    %v882 = vor.u32 %v880, %v881
    %v883 = vshll.u32 2102212464, %v871
    %v884 = vshrl.u32 920167782, %v872
    %v885 = vor.u32 %v883, %v884
    %v886 = vshll.u32 920167782, %v871
    %v887 = vshrl.u32 1326507024, %v872
    %v888 = vor.u32 %v886, %v887
    %vm889 = vcmp.lt.s32.totalorder %v870, 1
    %vm890 = vcmp.lt.s32.totalorder %v870, 2
    %vm891 = vcmp.lt.s32.totalorder %v870, 3
    %vm892 = vcmp.lt.s32.totalorder %v870, 4
    %v893 = vsel %vm889, %v873, %v876
    %v894 = vsel %vm892, %v882, 2102212464
    %v895 = vsel %vm891, %v879, %v894
    %v896 = vsel %vm890, %v893, %v895
    %v897 = vsel %vm889, %v876, %v879
    %v898 = vsel %vm892, %v885, 920167782
    %v899 = vsel %vm891, %v882, %v898
    %v900 = vsel %vm890, %v897, %v899
    %v901 = vsel %vm889, %v879, %v882
    %v902 = vsel %vm892, %v888, 1326507024
    %v903 = vsel %vm891, %v885, %v902
    %v904 = vsel %vm890, %v901, %v903
    %v905 = vshll.u32 %v865, 8
    %v906 = vand.u32 %v905, 65535
    %v907 = vshrl.u32 %v905, 16
    %v908 = vand.u32 %v904, 65535
    %v909 = vshrl.u32 %v904, 16
    %v910 = vmul.u32 %v906, %v908
    %v911 = vmul.u32 %v906, %v909
    %v912 = vmul.u32 %v907, %v908
    %v913 = vmul.u32 %v907, %v909
    %v914 = vshll.u32 %v911, 16
    %v915 = vshrl.u32 %v911, 16
    %v916 = vshll.u32 %v912, 16
    %v917 = vshrl.u32 %v912, 16
    %vm918 = vc.u32 %v910, %v914
    %v919 = vsel %vm918, 1, 0
    %v920 = vadd.s32 %v910, %v914
    %v921 = vadd.s32 %v913, %v919
    %vm922 = vc.u32 %v920, %v916
    %v923 = vsel %vm922, 1, 0
    %v924 = vadd.s32 %v920, %v916
    %v925 = vadd.s32 %v921, %v923
    %v926 = vadd.s32 %v925, %v915
    %v927 = vadd.s32 %v926, %v917
    %v928 = vand.u32 %v905, 65535
    %v929 = vshrl.u32 %v905, 16
    %v930 = vand.u32 %v900, 65535
    %v931 = vshrl.u32 %v900, 16
    %v932 = vmul.u32 %v928, %v930
    %v933 = vmul.u32 %v928, %v931
    %v934 = vmul.u32 %v929, %v930
    %v935 = vmul.u32 %v929, %v931
    %v936 = vshll.u32 %v933, 16
    %v937 = vshrl.u32 %v933, 16
    %v938 = vshll.u32 %v934, 16
    %v939 = vshrl.u32 %v934, 16
    %vm940 = vc.u32 %v932, %v936
    %v941 = vsel %vm940, 1, 0
    %v942 = vadd.s32 %v932, %v936
    %v943 = vadd.s32 %v935, %v941
    %vm944 = vc.u32 %v942, %v938
    %v945 = vsel %vm944, 1, 0
    %v946 = vadd.s32 %v942, %v938
    %v947 = vadd.s32 %v943, %v945
    %v948 = vadd.s32 %v947, %v937
    %v949 = vadd.s32 %v948, %v939
    %v950 = vmul.u32 %v905, %v896
    %v951 = vadd.s32 %v927, %v946
    %vm952 = vc.u32 %v927, %v946
    %v953 = vadd.s32 %v949, 1
    %v954 = vsel %vm952, %v953, %v949
    %v955 = vadd.s32 %v950, %v954
    %v956 = vadd.s32 %v955, 536870912
    %v957 = vshrl.u32 %v956, 30
    %v958 = vshll.u32 %v957, 30
    %v959 = vsub.s32 %v955, %v958
    %vm960 = vcmp.lt.s32.totalorder %v959, 0
    %v961 = vsub.s32 0, %v959
    %v962 = vsel %vm960, %v961, %v959
    %v963 = vclz %v962
    %v964 = vsub.s32 %v963, 2
    %vm965 = vcmp.gt.s32.totalorder 0, %v964
    %v966 = vsel %vm965, 0, %v964
    %v967 = vsub.s32 32, %v966
    %v968 = vshll.u32 %v959, %v966
    %v969 = vshrl.u32 %v951, %v967
    %v970 = vor.u32 %v968, %v969
    %v971 = vsub.s32 4294967266, %v966
    %v972 = vadd.s32 %v971, 127
    %v973 = vshll.u32 %v972, 23
    %v974 = vor.u32 4788187, %v973
    %v975 = vand.u32 2147483647, %v974
    %v977 = vcvt.s32.f32 %v970
    %v978 = vmul.f32 %v977, %v975
    %v979 = vxor.u32 %v978, 2147483648
    %v980 = vsel %vm859, %v979, %v978
    %v981 = vsub.s32 4, %v957
    %v982 = vsel %vm859, %v981, %v957
    %v983 = vsel %vm858, %v83, %v980
    %v984 = vsel %vm858, 0, %v982
    %v985 = vmul.f32 %v983, %v983
    %v986 = vmul.f32 %v985, -0.001358992
    %v987 = vadd.f32 %v986, 0.041655596
    %v988 = vmul.f32 %v985, %v987
    %v989 = vadd.f32 %v988, -0.4999988
    %v990 = vmul.f32 %v985, %v989
    %v991 = vadd.f32 1.0, %v990
    %v992 = vmul.f32 %v983, %v983
    %v993 = vmul.f32 %v992, -0.00019511016
    %v994 = vadd.f32 %v993, 0.008332121
    %v995 = vmul.f32 %v992, %v994
    %v996 = vadd.f32 %v995, -0.16666654
    %v997 = vmul.f32 %v992, %v996
    %v998 = vadd.f32 %v997, 1.0
    %v999 = vmul.f32 %v998, %v983
    %vm1000 = vweird.f32 %v83
    %v1001 = vadd.s32 %v984, 3
    %v1002 = vand.u32 %v1001, 3
    %vm1003 = vcmp.lt.s32.totalorder %v1002, 2
    %vm1004 = vcmp.eq.s32.totalorder %v1002, 0
    %v1005 = vxor.u32 %v999, 2147483648
    %v1006 = vsel %vm1004, %v991, %v1005
    %vm1007 = vcmp.eq.s32.totalorder %v1002, 2
    %v1008 = vxor.u32 %v991, 2147483648
    %v1009 = vsel %vm1007, %v1008, %v999
    %v1010 = vsel %vm1003, %v1006, %v1009
    %v1011 = vsel %vm1000, nan, %v1010
    %v1012 = vand.u32 2147483647, %v84
    %vm1013 = vcmp.le.f32.partialorder %v1012, 0.7853982
    %vm1014 = vcmp.lt.s32.totalorder %v84, 0
    %v1015 = vand.u32 %v84, 2139095040
    %v1016 = vshrl.u32 %v1015, 23
    %v1017 = vsub.s32 %v1016, 127
    %v1018 = vand.u32 2147483647, %v84
    %v1019 = vand.u32 %v1018, 8388607
    %v1020 = vor.u32 %v1019, 8388608
    %v1021 = vsub.s32 0, %v1020
    %v1022 = vadd.s32 %v1017, 1
    %vm1023 = vcmp.gt.s32.totalorder %v1022, 0
    %v1024 = vsel %vm1023, %v1022, 0
    %v1025 = vshrl.u32 %v1024, 5
    %v1026 = vand.u32 %v1024, 31
    %v1027 = vsub.s32 32, %v1026
    %v1028 = vshrl.u32 683565275, %v1027
    %v1029 = vshll.u32 683565275, %v1026
    %v1030 = vshrl.u32 2475754826, %v1027
    %v1031 = vor.u32 %v1029, %v1030
    %v1032 = vshll.u32 2475754826, %v1026
    %v1033 = vshrl.u32 2131351028, %v1027
    %v1034 = vor.u32 %v1032, %v1033
    %v1035 = vshll.u32 2131351028, %v1026
    %v1036 = vshrl.u32 2102212464, %v1027
    %v1037 = vor.u32 %v1035, %v1036
    %v1038 = vshll.u32 2102212464, %v1026
    %v1039 = vshrl.u32 920167782, %v1027
    %v1040 = vor.u32 %v1038, %v1039
    %v1041 = vshll.u32 920167782, %v1026
    %v1042 = vshrl.u32 1326507024, %v1027
    %v1043 = vor.u32 %v1041, %v1042
    %vm1044 = vcmp.lt.s32.totalorder %v1025, 1
    %vm1045 = vcmp.lt.s32.totalorder %v1025, 2
    %vm1046 = vcmp.lt.s32.totalorder %v1025, 3
    %vm1047 = vcmp.lt.s32.totalorder %v1025, 4
    %v1048 = vsel %vm1044, %v1028, %v1031
    %v1049 = vsel %vm1047, %v1037, 2102212464
    %v1050 = vsel %vm1046, %v1034, %v1049
    %v1051 = vsel %vm1045, %v1048, %v1050
    %v1052 = vsel %vm1044, %v1031, %v1034
    %v1053 = vsel %vm1047, %v1040, 920167782
    %v1054 = vsel %vm1046, %v1037, %v1053
    %v1055 = vsel %vm1045, %v1052, %v1054
    %v1056 = vsel %vm1044, %v1034, %v1037
    %v1057 = vsel %vm1047, %v1043, 1326507024
    %v1058 = vsel %vm1046, %v1040, %v1057
    %v1059 = vsel %vm1045, %v1056, %v1058
    %v1060 = vshll.u32 %v1020, 8
    %v1061 = vand.u32 %v1060, 65535
    %v1062 = vshrl.u32 %v1060, 16
    %v1063 = vand.u32 %v1059, 65535
    %v1064 = vshrl.u32 %v1059, 16
    %v1065 = vmul.u32 %v1061, %v1063
    %v1066 = vmul.u32 %v1061, %v1064
    %v1067 = vmul.u32 %v1062, %v1063
    %v1068 = vmul.u32 %v1062, %v1064
    %v1069 = vshll.u32 %v1066, 16
    %v1070 = vshrl.u32 %v1066, 16
    %v1071 = vshll.u32 %v1067, 16
    %v1072 = vshrl.u32 %v1067, 16
    %vm1073 = vc.u32 %v1065, %v1069
    %v1074 = vsel %vm1073, 1, 0
    %v1075 = vadd.s32 %v1065, %v1069
    %v1076 = vadd.s32 %v1068, %v1074
    %vm1077 = vc.u32 %v1075, %v1071
    %v1078 = vsel %vm1077, 1, 0
    %v1079 = vadd.s32 %v1075, %v1071
    %v1080 = vadd.s32 %v1076, %v1078
    %v1081 = vadd.s32 %v1080, %v1070
    %v1082 = vadd.s32 %v1081, %v1072
    %v1083 = vand.u32 %v1060, 65535
    %v1084 = vshrl.u32 %v1060, 16
    %v1085 = vand.u32 %v1055, 65535
    %v1086 = vshrl.u32 %v1055, 16
    %v1087 = vmul.u32 %v1083, %v1085
    %v1088 = vmul.u32 %v1083, %v1086
    %v1089 = vmul.u32 %v1084, %v1085
    %v1090 = vmul.u32 %v1084, %v1086
    %v1091 = vshll.u32 %v1088, 16
    %v1092 = vshrl.u32 %v1088, 16
    %v1093 = vshll.u32 %v1089, 16
    %v1094 = vshrl.u32 %v1089, 16
    %vm1095 = vc.u32 %v1087, %v1091
    %v1096 = vsel %vm1095, 1, 0
    %v1097 = vadd.s32 %v1087, %v1091
    %v1098 = vadd.s32 %v1090, %v1096
    %vm1099 = vc.u32 %v1097, %v1093
    %v1100 = vsel %vm1099, 1, 0
    %v1101 = vadd.s32 %v1097, %v1093
    %v1102 = vadd.s32 %v1098, %v1100
    %v1103 = vadd.s32 %v1102, %v1092
    %v1104 = vadd.s32 %v1103, %v1094
    %v1105 = vmul.u32 %v1060, %v1051
    %v1106 = vadd.s32 %v1082, %v1101
    %vm1107 = vc.u32 %v1082, %v1101
    %v1108 = vadd.s32 %v1104, 1
    %v1109 = vsel %vm1107, %v1108, %v1104
    %v1110 = vadd.s32 %v1105, %v1109
    %v1111 = vadd.s32 %v1110, 536870912
    %v1112 = vshrl.u32 %v1111, 30
    %v1113 = vshll.u32 %v1112, 30
    %v1114 = vsub.s32 %v1110, %v1113
    %vm1115 = vcmp.lt.s32.totalorder %v1114, 0
    %v1116 = vsub.s32 0, %v1114
    %v1117 = vsel %vm1115, %v1116, %v1114
    %v1118 = vclz %v1117
    %v1119 = vsub.s32 %v1118, 2
    %vm1120 = vcmp.gt.s32.totalorder 0, %v1119
    %v1121 = vsel %vm1120, 0, %v1119
    %v1122 = vsub.s32 32, %v1121
    %v1123 = vshll.u32 %v1114, %v1121
    %v1124 = vshrl.u32 %v1106, %v1122
    %v1125 = vor.u32 %v1123, %v1124
    %v1126 = vsub.s32 4294967266, %v1121
    %v1127 = vadd.s32 %v1126, 127
    %v1128 = vshll.u32 %v1127, 23
    %v1129 = vor.u32 4788187, %v1128
    %v1130 = vand.u32 2147483647, %v1129
    %v1132 = vcvt.s32.f32 %v1125
    %v1133 = vmul.f32 %v1132, %v1130
    %v1134 = vxor.u32 %v1133, 2147483648
    %v1135 = vsel %vm1014, %v1134, %v1133
    %v1136 = vsub.s32 4, %v1112
    %v1137 = vsel %vm1014, %v1136, %v1112
    %v1138 = vsel %vm1013, %v84, %v1135
    %v1139 = vsel %vm1013, 0, %v1137
    %v1140 = vmul.f32 %v1138, %v1138
    %v1141 = vmul.f32 %v1140, -0.001358992
    %v1142 = vadd.f32 %v1141, 0.041655596
    %v1143 = vmul.f32 %v1140, %v1142
    %v1144 = vadd.f32 %v1143, -0.4999988
    %v1145 = vmul.f32 %v1140, %v1144
    %v1146 = vadd.f32 1.0, %v1145
    %v1147 = vmul.f32 %v1138, %v1138
    %v1148 = vmul.f32 %v1147, -0.00019511016
    %v1149 = vadd.f32 %v1148, 0.008332121
    %v1150 = vmul.f32 %v1147, %v1149
    %v1151 = vadd.f32 %v1150, -0.16666654
    %v1152 = vmul.f32 %v1147, %v1151
    %v1153 = vadd.f32 %v1152, 1.0
    %v1154 = vmul.f32 %v1153, %v1138
    %vm1155 = vweird.f32 %v84
    %v1156 = vadd.s32 %v1139, 3
    %v1157 = vand.u32 %v1156, 3
    %vm1158 = vcmp.lt.s32.totalorder %v1157, 2
    %vm1159 = vcmp.eq.s32.totalorder %v1157, 0
    %v1160 = vxor.u32 %v1154, 2147483648
    %v1161 = vsel %vm1159, %v1146, %v1160
    %vm1162 = vcmp.eq.s32.totalorder %v1157, 2
    %v1163 = vxor.u32 %v1146, 2147483648
    %v1164 = vsel %vm1162, %v1163, %v1154
    %v1165 = vsel %vm1158, %v1161, %v1164
    %v1166 = vsel %vm1155, nan, %v1165
    %v1167 = vand.u32 2147483647, %v85
    %vm1168 = vcmp.le.f32.partialorder %v1167, 0.7853982
    %vm1169 = vcmp.lt.s32.totalorder %v85, 0
    %v1170 = vand.u32 %v85, 2139095040
    %v1171 = vshrl.u32 %v1170, 23
    %v1172 = vsub.s32 %v1171, 127
    %v1173 = vand.u32 2147483647, %v85
    %v1174 = vand.u32 %v1173, 8388607
    %v1175 = vor.u32 %v1174, 8388608
    %v1176 = vsub.s32 0, %v1175
    %v1177 = vadd.s32 %v1172, 1
    %vm1178 = vcmp.gt.s32.totalorder %v1177, 0
    %v1179 = vsel %vm1178, %v1177, 0
    %v1180 = vshrl.u32 %v1179, 5
    %v1181 = vand.u32 %v1179, 31
    %v1182 = vsub.s32 32, %v1181
    %v1183 = vshrl.u32 683565275, %v1182
    %v1184 = vshll.u32 683565275, %v1181
    %v1185 = vshrl.u32 2475754826, %v1182
    %v1186 = vor.u32 %v1184, %v1185
    %v1187 = vshll.u32 2475754826, %v1181
    %v1188 = vshrl.u32 2131351028, %v1182
    %v1189 = vor.u32 %v1187, %v1188
    %v1190 = vshll.u32 2131351028, %v1181
    %v1191 = vshrl.u32 2102212464, %v1182
    %v1192 = vor.u32 %v1190, %v1191
    %v1193 = vshll.u32 2102212464, %v1181
    %v1194 = vshrl.u32 920167782, %v1182
    %v1195 = vor.u32 %v1193, %v1194
    %v1196 = vshll.u32 920167782, %v1181
    %v1197 = vshrl.u32 1326507024, %v1182
    %v1198 = vor.u32 %v1196, %v1197
    %vm1199 = vcmp.lt.s32.totalorder %v1180, 1
    %vm1200 = vcmp.lt.s32.totalorder %v1180, 2
    %vm1201 = vcmp.lt.s32.totalorder %v1180, 3
    %vm1202 = vcmp.lt.s32.totalorder %v1180, 4
    %v1203 = vsel %vm1199, %v1183, %v1186
    %v1204 = vsel %vm1202, %v1192, 2102212464
    %v1205 = vsel %vm1201, %v1189, %v1204
    %v1206 = vsel %vm1200, %v1203, %v1205
    %v1207 = vsel %vm1199, %v1186, %v1189
    %v1208 = vsel %vm1202, %v1195, 920167782
    %v1209 = vsel %vm1201, %v1192, %v1208
    %v1210 = vsel %vm1200, %v1207, %v1209
    %v1211 = vsel %vm1199, %v1189, %v1192
    %v1212 = vsel %vm1202, %v1198, 1326507024
    %v1213 = vsel %vm1201, %v1195, %v1212
    %v1214 = vsel %vm1200, %v1211, %v1213
    %v1215 = vshll.u32 %v1175, 8
    %v1216 = vand.u32 %v1215, 65535
    %v1217 = vshrl.u32 %v1215, 16
    %v1218 = vand.u32 %v1214, 65535
    %v1219 = vshrl.u32 %v1214, 16
    %v1220 = vmul.u32 %v1216, %v1218
    %v1221 = vmul.u32 %v1216, %v1219
    %v1222 = vmul.u32 %v1217, %v1218
    %v1223 = vmul.u32 %v1217, %v1219
    %v1224 = vshll.u32 %v1221, 16
    %v1225 = vshrl.u32 %v1221, 16
    %v1226 = vshll.u32 %v1222, 16
    %v1227 = vshrl.u32 %v1222, 16
    %vm1228 = vc.u32 %v1220, %v1224
    %v1229 = vsel %vm1228, 1, 0
    %v1230 = vadd.s32 %v1220, %v1224
    %v1231 = vadd.s32 %v1223, %v1229
    %vm1232 = vc.u32 %v1230, %v1226
    %v1233 = vsel %vm1232, 1, 0
    %v1234 = vadd.s32 %v1230, %v1226
    %v1235 = vadd.s32 %v1231, %v1233
    %v1236 = vadd.s32 %v1235, %v1225
    %v1237 = vadd.s32 %v1236, %v1227
    %v1238 = vand.u32 %v1215, 65535
    %v1239 = vshrl.u32 %v1215, 16
    %v1240 = vand.u32 %v1210, 65535
    %v1241 = vshrl.u32 %v1210, 16
    %v1242 = vmul.u32 %v1238, %v1240
    %v1243 = vmul.u32 %v1238, %v1241
    %v1244 = vmul.u32 %v1239, %v1240
    %v1245 = vmul.u32 %v1239, %v1241
    %v1246 = vshll.u32 %v1243, 16
    %v1247 = vshrl.u32 %v1243, 16
    %v1248 = vshll.u32 %v1244, 16
    %v1249 = vshrl.u32 %v1244, 16
    %vm1250 = vc.u32 %v1242, %v1246
    %v1251 = vsel %vm1250, 1, 0
    %v1252 = vadd.s32 %v1242, %v1246
    %v1253 = vadd.s32 %v1245, %v1251
    %vm1254 = vc.u32 %v1252, %v1248
    %v1255 = vsel %vm1254, 1, 0
    %v1256 = vadd.s32 %v1252, %v1248
    %v1257 = vadd.s32 %v1253, %v1255
    %v1258 = vadd.s32 %v1257, %v1247
    %v1259 = vadd.s32 %v1258, %v1249
    %v1260 = vmul.u32 %v1215, %v1206
    %v1261 = vadd.s32 %v1237, %v1256
    %vm1262 = vc.u32 %v1237, %v1256
    %v1263 = vadd.s32 %v1259, 1
    %v1264 = vsel %vm1262, %v1263, %v1259
    %v1265 = vadd.s32 %v1260, %v1264
    %v1266 = vadd.s32 %v1265, 536870912
    %v1267 = vshrl.u32 %v1266, 30
    %v1268 = vshll.u32 %v1267, 30
    %v1269 = vsub.s32 %v1265, %v1268
    %vm1270 = vcmp.lt.s32.totalorder %v1269, 0
    %v1271 = vsub.s32 0, %v1269
    %v1272 = vsel %vm1270, %v1271, %v1269
    %v1273 = vclz %v1272
    %v1274 = vsub.s32 %v1273, 2
    %vm1275 = vcmp.gt.s32.totalorder 0, %v1274
    %v1276 = vsel %vm1275, 0, %v1274
    %v1277 = vsub.s32 32, %v1276
    %v1278 = vshll.u32 %v1269, %v1276
    %v1279 = vshrl.u32 %v1261, %v1277
    %v1280 = vor.u32 %v1278, %v1279
    %v1281 = vsub.s32 4294967266, %v1276
    %v1282 = vadd.s32 %v1281, 127
    %v1283 = vshll.u32 %v1282, 23
    %v1284 = vor.u32 4788187, %v1283
    %v1285 = vand.u32 2147483647, %v1284
    %v1287 = vcvt.s32.f32 %v1280
    %v1288 = vmul.f32 %v1287, %v1285
    %v1289 = vxor.u32 %v1288, 2147483648
    %v1290 = vsel %vm1169, %v1289, %v1288
    %v1291 = vsub.s32 4, %v1267
    %v1292 = vsel %vm1169, %v1291, %v1267
    %v1293 = vsel %vm1168, %v85, %v1290
    %v1294 = vsel %vm1168, 0, %v1292
    %v1295 = vmul.f32 %v1293, %v1293
    %v1296 = vmul.f32 %v1295, -0.001358992
    %v1297 = vadd.f32 %v1296, 0.041655596
    %v1298 = vmul.f32 %v1295, %v1297
    %v1299 = vadd.f32 %v1298, -0.4999988
    %v1300 = vmul.f32 %v1295, %v1299
    %v1301 = vadd.f32 1.0, %v1300
    %v1302 = vmul.f32 %v1293, %v1293
    %v1303 = vmul.f32 %v1302, -0.00019511016
    %v1304 = vadd.f32 %v1303, 0.008332121
    %v1305 = vmul.f32 %v1302, %v1304
    %v1306 = vadd.f32 %v1305, -0.16666654
    %v1307 = vmul.f32 %v1302, %v1306
    %v1308 = vadd.f32 %v1307, 1.0
    %v1309 = vmul.f32 %v1308, %v1293
    %vm1310 = vweird.f32 %v85
    %v1311 = vadd.s32 %v1294, 3
    %v1312 = vand.u32 %v1311, 3
    %vm1313 = vcmp.lt.s32.totalorder %v1312, 2
    %vm1314 = vcmp.eq.s32.totalorder %v1312, 0
    %v1315 = vxor.u32 %v1309, 2147483648
    %v1316 = vsel %vm1314, %v1301, %v1315
    %vm1317 = vcmp.eq.s32.totalorder %v1312, 2
    %v1318 = vxor.u32 %v1301, 2147483648
    %v1319 = vsel %vm1317, %v1318, %v1309
    %v1320 = vsel %vm1313, %v1316, %v1319
    %v1321 = vsel %vm1310, nan, %v1320
    %v1322 = vmul.f32 %v78, 6.2831855
    %v1323 = vmul.f32 %v79, 6.2831855
    %v1324 = vmul.f32 %v80, 6.2831855
    %v1325 = vmul.f32 %v81, 6.2831855
    %v1326 = vand.u32 2147483647, %v1322
    %vm1327 = vcmp.le.f32.partialorder %v1326, 0.7853982
    %vm1328 = vcmp.lt.s32.totalorder %v1322, 0
    %v1329 = vand.u32 %v1322, 2139095040
    %v1330 = vshrl.u32 %v1329, 23
    %v1331 = vsub.s32 %v1330, 127
    %v1332 = vand.u32 2147483647, %v1322
    %v1333 = vand.u32 %v1332, 8388607
    %v1334 = vor.u32 %v1333, 8388608
    %v1335 = vsub.s32 0, %v1334
    %v1336 = vadd.s32 %v1331, 1
    %vm1337 = vcmp.gt.s32.totalorder %v1336, 0
    %v1338 = vsel %vm1337, %v1336, 0
    %v1339 = vshrl.u32 %v1338, 5
    %v1340 = vand.u32 %v1338, 31
    %v1341 = vsub.s32 32, %v1340
    %v1342 = vshrl.u32 683565275, %v1341
    %v1343 = vshll.u32 683565275, %v1340
    %v1344 = vshrl.u32 2475754826, %v1341
    %v1345 = vor.u32 %v1343, %v1344
    %v1346 = vshll.u32 2475754826, %v1340
    %v1347 = vshrl.u32 2131351028, %v1341
    %v1348 = vor.u32 %v1346, %v1347
    %v1349 = vshll.u32 2131351028, %v1340
    %v1350 = vshrl.u32 2102212464, %v1341
    %v1351 = vor.u32 %v1349, %v1350
    %v1352 = vshll.u32 2102212464, %v1340
    %v1353 = vshrl.u32 920167782, %v1341
    %v1354 = vor.u32 %v1352, %v1353
    %v1355 = vshll.u32 920167782, %v1340
    %v1356 = vshrl.u32 1326507024, %v1341
    %v1357 = vor.u32 %v1355, %v1356
    %vm1358 = vcmp.lt.s32.totalorder %v1339, 1
    %vm1359 = vcmp.lt.s32.totalorder %v1339, 2
    %vm1360 = vcmp.lt.s32.totalorder %v1339, 3
    %vm1361 = vcmp.lt.s32.totalorder %v1339, 4
    %v1362 = vsel %vm1358, %v1342, %v1345
    %v1363 = vsel %vm1361, %v1351, 2102212464
    %v1364 = vsel %vm1360, %v1348, %v1363
    %v1365 = vsel %vm1359, %v1362, %v1364
    %v1366 = vsel %vm1358, %v1345, %v1348
    %v1367 = vsel %vm1361, %v1354, 920167782
    %v1368 = vsel %vm1360, %v1351, %v1367
    %v1369 = vsel %vm1359, %v1366, %v1368
    %v1370 = vsel %vm1358, %v1348, %v1351
    %v1371 = vsel %vm1361, %v1357, 1326507024
    %v1372 = vsel %vm1360, %v1354, %v1371
    %v1373 = vsel %vm1359, %v1370, %v1372
    %v1374 = vshll.u32 %v1334, 8
    %v1375 = vand.u32 %v1374, 65535
    %v1376 = vshrl.u32 %v1374, 16
    %v1377 = vand.u32 %v1373, 65535
    %v1378 = vshrl.u32 %v1373, 16
    %v1379 = vmul.u32 %v1375, %v1377
    %v1380 = vmul.u32 %v1375, %v1378
    %v1381 = vmul.u32 %v1376, %v1377
    %v1382 = vmul.u32 %v1376, %v1378
    %v1383 = vshll.u32 %v1380, 16
    %v1384 = vshrl.u32 %v1380, 16
    %v1385 = vshll.u32 %v1381, 16
    %v1386 = vshrl.u32 %v1381, 16
    %vm1387 = vc.u32 %v1379, %v1383
    %v1388 = vsel %vm1387, 1, 0
    %v1389 = vadd.s32 %v1379, %v1383
    %v1390 = vadd.s32 %v1382, %v1388
    %vm1391 = vc.u32 %v1389, %v1385
    %v1392 = vsel %vm1391, 1, 0
    %v1393 = vadd.s32 %v1389, %v1385
    %v1394 = vadd.s32 %v1390, %v1392
    %v1395 = vadd.s32 %v1394, %v1384
    %v1396 = vadd.s32 %v1395, %v1386
    %v1397 = vand.u32 %v1374, 65535
    %v1398 = vshrl.u32 %v1374, 16
    %v1399 = vand.u32 %v1369, 65535
    %v1400 = vshrl.u32 %v1369, 16
    %v1401 = vmul.u32 %v1397, %v1399
    %v1402 = vmul.u32 %v1397, %v1400
    %v1403 = vmul.u32 %v1398, %v1399
    %v1404 = vmul.u32 %v1398, %v1400
    %v1405 = vshll.u32 %v1402, 16
    %v1406 = vshrl.u32 %v1402, 16
    %v1407 = vshll.u32 %v1403, 16
    %v1408 = vshrl.u32 %v1403, 16
    %vm1409 = vc.u32 %v1401, %v1405
    %v1410 = vsel %vm1409, 1, 0
    %v1411 = vadd.s32 %v1401, %v1405
    %v1412 = vadd.s32 %v1404, %v1410
    %vm1413 = vc.u32 %v1411, %v1407
    %v1414 = vsel %vm1413, 1, 0
    %v1415 = vadd.s32 %v1411, %v1407
    %v1416 = vadd.s32 %v1412, %v1414
    %v1417 = vadd.s32 %v1416, %v1406
    %v1418 = vadd.s32 %v1417, %v1408
    %v1419 = vmul.u32 %v1374, %v1365
    %v1420 = vadd.s32 %v1396, %v1415
    %vm1421 = vc.u32 %v1396, %v1415
    %v1422 = vadd.s32 %v1418, 1
    %v1423 = vsel %vm1421, %v1422, %v1418
    %v1424 = vadd.s32 %v1419, %v1423
    %v1425 = vadd.s32 %v1424, 536870912
    %v1426 = vshrl.u32 %v1425, 30
    %v1427 = vshll.u32 %v1426, 30
    %v1428 = vsub.s32 %v1424, %v1427
    %vm1429 = vcmp.lt.s32.totalorder %v1428, 0
    %v1430 = vsub.s32 0, %v1428
    %v1431 = vsel %vm1429, %v1430, %v1428
    %v1432 = vclz %v1431
    %v1433 = vsub.s32 %v1432, 2
    %vm1434 = vcmp.gt.s32.totalorder 0, %v1433
    %v1435 = vsel %vm1434, 0, %v1433
    %v1436 = vsub.s32 32, %v1435
    %v1437 = vshll.u32 %v1428, %v1435
    %v1438 = vshrl.u32 %v1420, %v1436
    %v1439 = vor.u32 %v1437, %v1438
    %v1440 = vsub.s32 4294967266, %v1435
    %v1441 = vadd.s32 %v1440, 127
    %v1442 = vshll.u32 %v1441, 23
    %v1443 = vor.u32 4788187, %v1442
    %v1444 = vand.u32 2147483647, %v1443
    %v1446 = vcvt.s32.f32 %v1439
    %v1447 = vmul.f32 %v1446, %v1444
    %v1448 = vxor.u32 %v1447, 2147483648
    %v1449 = vsel %vm1328, %v1448, %v1447
    %v1450 = vsub.s32 4, %v1426
    %v1451 = vsel %vm1328, %v1450, %v1426
    %v1452 = vsel %vm1327, %v1322, %v1449
    %v1453 = vsel %vm1327, 0, %v1451
    %v1454 = vmul.f32 %v1452, %v1452
    %v1455 = vmul.f32 %v1454, -0.001358992
    %v1456 = vadd.f32 %v1455, 0.041655596
    %v1457 = vmul.f32 %v1454, %v1456
    %v1458 = vadd.f32 %v1457, -0.4999988
    %v1459 = vmul.f32 %v1454, %v1458
    %v1460 = vadd.f32 1.0, %v1459
    %v1461 = vmul.f32 %v1452, %v1452
    %v1462 = vmul.f32 %v1461, -0.00019511016
    %v1463 = vadd.f32 %v1462, 0.008332121
    %v1464 = vmul.f32 %v1461, %v1463
    %v1465 = vadd.f32 %v1464, -0.16666654
    %v1466 = vmul.f32 %v1461, %v1465
    %v1467 = vadd.f32 %v1466, 1.0
    %v1468 = vmul.f32 %v1467, %v1452
    %vm1469 = vweird.f32 %v1322
    %v1470 = vand.u32 %v1453, 3
    %vm1471 = vcmp.lt.s32.totalorder %v1470, 2
    %vm1472 = vcmp.eq.s32.totalorder %v1470, 0
    %v1473 = vxor.u32 %v1468, 2147483648
    %v1474 = vsel %vm1472, %v1460, %v1473
    %vm1475 = vcmp.eq.s32.totalorder %v1470, 2
    %v1476 = vxor.u32 %v1460, 2147483648
    %v1477 = vsel %vm1475, %v1476, %v1468
    %v1478 = vsel %vm1471, %v1474, %v1477
    %v1479 = vsel %vm1469, nan, %v1478
    %v1480 = vand.u32 2147483647, %v1323
    %vm1481 = vcmp.le.f32.partialorder %v1480, 0.7853982
    %vm1482 = vcmp.lt.s32.totalorder %v1323, 0
    %v1483 = vand.u32 %v1323, 2139095040
    %v1484 = vshrl.u32 %v1483, 23
    %v1485 = vsub.s32 %v1484, 127
    %v1486 = vand.u32 2147483647, %v1323
    %v1487 = vand.u32 %v1486, 8388607
    %v1488 = vor.u32 %v1487, 8388608
    %v1489 = vsub.s32 0, %v1488
    %v1490 = vadd.s32 %v1485, 1
    %vm1491 = vcmp.gt.s32.totalorder %v1490, 0
    %v1492 = vsel %vm1491, %v1490, 0
    %v1493 = vshrl.u32 %v1492, 5
    %v1494 = vand.u32 %v1492, 31
    %v1495 = vsub.s32 32, %v1494
    %v1496 = vshrl.u32 683565275, %v1495
    %v1497 = vshll.u32 683565275, %v1494
    %v1498 = vshrl.u32 2475754826, %v1495
    %v1499 = vor.u32 %v1497, %v1498
    %v1500 = vshll.u32 2475754826, %v1494
    %v1501 = vshrl.u32 2131351028, %v1495
    %v1502 = vor.u32 %v1500, %v1501
    %v1503 = vshll.u32 2131351028, %v1494
    %v1504 = vshrl.u32 2102212464, %v1495
    %v1505 = vor.u32 %v1503, %v1504
    %v1506 = vshll.u32 2102212464, %v1494
    %v1507 = vshrl.u32 920167782, %v1495
    %v1508 = vor.u32 %v1506, %v1507
    %v1509 = vshll.u32 920167782, %v1494
    %v1510 = vshrl.u32 1326507024, %v1495
    %v1511 = vor.u32 %v1509, %v1510
    %vm1512 = vcmp.lt.s32.totalorder %v1493, 1
    %vm1513 = vcmp.lt.s32.totalorder %v1493, 2
    %vm1514 = vcmp.lt.s32.totalorder %v1493, 3
    %vm1515 = vcmp.lt.s32.totalorder %v1493, 4
    %v1516 = vsel %vm1512, %v1496, %v1499
    %v1517 = vsel %vm1515, %v1505, 2102212464
    %v1518 = vsel %vm1514, %v1502, %v1517
    %v1519 = vsel %vm1513, %v1516, %v1518
    %v1520 = vsel %vm1512, %v1499, %v1502
    %v1521 = vsel %vm1515, %v1508, 920167782
    %v1522 = vsel %vm1514, %v1505, %v1521
    %v1523 = vsel %vm1513, %v1520, %v1522
    %v1524 = vsel %vm1512, %v1502, %v1505
    %v1525 = vsel %vm1515, %v1511, 1326507024
    %v1526 = vsel %vm1514, %v1508, %v1525
    %v1527 = vsel %vm1513, %v1524, %v1526
    %v1528 = vshll.u32 %v1488, 8
    %v1529 = vand.u32 %v1528, 65535
    %v1530 = vshrl.u32 %v1528, 16
    %v1531 = vand.u32 %v1527, 65535
    %v1532 = vshrl.u32 %v1527, 16
    %v1533 = vmul.u32 %v1529, %v1531
    %v1534 = vmul.u32 %v1529, %v1532
    %v1535 = vmul.u32 %v1530, %v1531
    %v1536 = vmul.u32 %v1530, %v1532
    %v1537 = vshll.u32 %v1534, 16
    %v1538 = vshrl.u32 %v1534, 16
    %v1539 = vshll.u32 %v1535, 16
    %v1540 = vshrl.u32 %v1535, 16
    %vm1541 = vc.u32 %v1533, %v1537
    %v1542 = vsel %vm1541, 1, 0
    %v1543 = vadd.s32 %v1533, %v1537
    %v1544 = vadd.s32 %v1536, %v1542
    %vm1545 = vc.u32 %v1543, %v1539
    %v1546 = vsel %vm1545, 1, 0
    %v1547 = vadd.s32 %v1543, %v1539
    %v1548 = vadd.s32 %v1544, %v1546
    %v1549 = vadd.s32 %v1548, %v1538
    %v1550 = vadd.s32 %v1549, %v1540
    %v1551 = vand.u32 %v1528, 65535
    %v1552 = vshrl.u32 %v1528, 16
    %v1553 = vand.u32 %v1523, 65535
    %v1554 = vshrl.u32 %v1523, 16
    %v1555 = vmul.u32 %v1551, %v1553
    %v1556 = vmul.u32 %v1551, %v1554
    %v1557 = vmul.u32 %v1552, %v1553
    %v1558 = vmul.u32 %v1552, %v1554
    %v1559 = vshll.u32 %v1556, 16
    %v1560 = vshrl.u32 %v1556, 16
    %v1561 = vshll.u32 %v1557, 16
    %v1562 = vshrl.u32 %v1557, 16
    %vm1563 = vc.u32 %v1555, %v1559
    %v1564 = vsel %vm1563, 1, 0
    %v1565 = vadd.s32 %v1555, %v1559
    %v1566 = vadd.s32 %v1558, %v1564
    %vm1567 = vc.u32 %v1565, %v1561
    %v1568 = vsel %vm1567, 1, 0
    %v1569 = vadd.s32 %v1565, %v1561
    %v1570 = vadd.s32 %v1566, %v1568
    %v1571 = vadd.s32 %v1570, %v1560
    %v1572 = vadd.s32 %v1571, %v1562
    %v1573 = vmul.u32 %v1528, %v1519
    %v1574 = vadd.s32 %v1550, %v1569
    %vm1575 = vc.u32 %v1550, %v1569
    %v1576 = vadd.s32 %v1572, 1
    %v1577 = vsel %vm1575, %v1576, %v1572
    %v1578 = vadd.s32 %v1573, %v1577
    %v1579 = vadd.s32 %v1578, 536870912
    %v1580 = vshrl.u32 %v1579, 30
    %v1581 = vshll.u32 %v1580, 30
    %v1582 = vsub.s32 %v1578, %v1581
    %vm1583 = vcmp.lt.s32.totalorder %v1582, 0
    %v1584 = vsub.s32 0, %v1582
    %v1585 = vsel %vm1583, %v1584, %v1582
    %v1586 = vclz %v1585
    %v1587 = vsub.s32 %v1586, 2
    %vm1588 = vcmp.gt.s32.totalorder 0, %v1587
    %v1589 = vsel %vm1588, 0, %v1587
    %v1590 = vsub.s32 32, %v1589
    %v1591 = vshll.u32 %v1582, %v1589
    %v1592 = vshrl.u32 %v1574, %v1590
    %v1593 = vor.u32 %v1591, %v1592
    %v1594 = vsub.s32 4294967266, %v1589
    %v1595 = vadd.s32 %v1594, 127
    %v1596 = vshll.u32 %v1595, 23
    %v1597 = vor.u32 4788187, %v1596
    %v1598 = vand.u32 2147483647, %v1597
    %v1600 = vcvt.s32.f32 %v1593
    %v1601 = vmul.f32 %v1600, %v1598
    %v1602 = vxor.u32 %v1601, 2147483648
    %v1603 = vsel %vm1482, %v1602, %v1601
    %v1604 = vsub.s32 4, %v1580
    %v1605 = vsel %vm1482, %v1604, %v1580
    %v1606 = vsel %vm1481, %v1323, %v1603
    %v1607 = vsel %vm1481, 0, %v1605
    %v1608 = vmul.f32 %v1606, %v1606
    %v1609 = vmul.f32 %v1608, -0.001358992
    %v1610 = vadd.f32 %v1609, 0.041655596
    %v1611 = vmul.f32 %v1608, %v1610
    %v1612 = vadd.f32 %v1611, -0.4999988
    %v1613 = vmul.f32 %v1608, %v1612
    %v1614 = vadd.f32 1.0, %v1613
    %v1615 = vmul.f32 %v1606, %v1606
    %v1616 = vmul.f32 %v1615, -0.00019511016
    %v1617 = vadd.f32 %v1616, 0.008332121
    %v1618 = vmul.f32 %v1615, %v1617
    %v1619 = vadd.f32 %v1618, -0.16666654
    %v1620 = vmul.f32 %v1615, %v1619
    %v1621 = vadd.f32 %v1620, 1.0
    %v1622 = vmul.f32 %v1621, %v1606
    %vm1623 = vweird.f32 %v1323
    %v1624 = vand.u32 %v1607, 3
    %vm1625 = vcmp.lt.s32.totalorder %v1624, 2
    %vm1626 = vcmp.eq.s32.totalorder %v1624, 0
    %v1627 = vxor.u32 %v1622, 2147483648
    %v1628 = vsel %vm1626, %v1614, %v1627
    %vm1629 = vcmp.eq.s32.totalorder %v1624, 2
    %v1630 = vxor.u32 %v1614, 2147483648
    %v1631 = vsel %vm1629, %v1630, %v1622
    %v1632 = vsel %vm1625, %v1628, %v1631
    %v1633 = vsel %vm1623, nan, %v1632
    %v1634 = vand.u32 2147483647, %v1324
    %vm1635 = vcmp.le.f32.partialorder %v1634, 0.7853982
    %vm1636 = vcmp.lt.s32.totalorder %v1324, 0
    %v1637 = vand.u32 %v1324, 2139095040
    %v1638 = vshrl.u32 %v1637, 23
    %v1639 = vsub.s32 %v1638, 127
    %v1640 = vand.u32 2147483647, %v1324
    %v1641 = vand.u32 %v1640, 8388607
    %v1642 = vor.u32 %v1641, 8388608
    %v1643 = vsub.s32 0, %v1642
    %v1644 = vadd.s32 %v1639, 1
    %vm1645 = vcmp.gt.s32.totalorder %v1644, 0
    %v1646 = vsel %vm1645, %v1644, 0
    %v1647 = vshrl.u32 %v1646, 5
    %v1648 = vand.u32 %v1646, 31
    %v1649 = vsub.s32 32, %v1648
    %v1650 = vshrl.u32 683565275, %v1649
    %v1651 = vshll.u32 683565275, %v1648
    %v1652 = vshrl.u32 2475754826, %v1649
    %v1653 = vor.u32 %v1651, %v1652
    %v1654 = vshll.u32 2475754826, %v1648
    %v1655 = vshrl.u32 2131351028, %v1649
    %v1656 = vor.u32 %v1654, %v1655
    %v1657 = vshll.u32 2131351028, %v1648
    %v1658 = vshrl.u32 2102212464, %v1649
    %v1659 = vor.u32 %v1657, %v1658
    %v1660 = vshll.u32 2102212464, %v1648
    %v1661 = vshrl.u32 920167782, %v1649
    %v1662 = vor.u32 %v1660, %v1661
    %v1663 = vshll.u32 920167782, %v1648
    %v1664 = vshrl.u32 1326507024, %v1649
    %v1665 = vor.u32 %v1663, %v1664
    %vm1666 = vcmp.lt.s32.totalorder %v1647, 1
    %vm1667 = vcmp.lt.s32.totalorder %v1647, 2
    %vm1668 = vcmp.lt.s32.totalorder %v1647, 3
    %vm1669 = vcmp.lt.s32.totalorder %v1647, 4
    %v1670 = vsel %vm1666, %v1650, %v1653
    %v1671 = vsel %vm1669, %v1659, 2102212464
    %v1672 = vsel %vm1668, %v1656, %v1671
    %v1673 = vsel %vm1667, %v1670, %v1672
    %v1674 = vsel %vm1666, %v1653, %v1656
    %v1675 = vsel %vm1669, %v1662, 920167782
    %v1676 = vsel %vm1668, %v1659, %v1675
    %v1677 = vsel %vm1667, %v1674, %v1676
    %v1678 = vsel %vm1666, %v1656, %v1659
    %v1679 = vsel %vm1669, %v1665, 1326507024
    %v1680 = vsel %vm1668, %v1662, %v1679
    %v1681 = vsel %vm1667, %v1678, %v1680
    %v1682 = vshll.u32 %v1642, 8
    %v1683 = vand.u32 %v1682, 65535
    %v1684 = vshrl.u32 %v1682, 16
    %v1685 = vand.u32 %v1681, 65535
    %v1686 = vshrl.u32 %v1681, 16
    %v1687 = vmul.u32 %v1683, %v1685
    %v1688 = vmul.u32 %v1683, %v1686
    %v1689 = vmul.u32 %v1684, %v1685
    %v1690 = vmul.u32 %v1684, %v1686
    %v1691 = vshll.u32 %v1688, 16
    %v1692 = vshrl.u32 %v1688, 16
    %v1693 = vshll.u32 %v1689, 16
    %v1694 = vshrl.u32 %v1689, 16
    %vm1695 = vc.u32 %v1687, %v1691
    %v1696 = vsel %vm1695, 1, 0
    %v1697 = vadd.s32 %v1687, %v1691
    %v1698 = vadd.s32 %v1690, %v1696
    %vm1699 = vc.u32 %v1697, %v1693
    %v1700 = vsel %vm1699, 1, 0
    %v1701 = vadd.s32 %v1697, %v1693
    %v1702 = vadd.s32 %v1698, %v1700
    %v1703 = vadd.s32 %v1702, %v1692
    %v1704 = vadd.s32 %v1703, %v1694
    %v1705 = vand.u32 %v1682, 65535
    %v1706 = vshrl.u32 %v1682, 16
    %v1707 = vand.u32 %v1677, 65535
    %v1708 = vshrl.u32 %v1677, 16
    %v1709 = vmul.u32 %v1705, %v1707
    %v1710 = vmul.u32 %v1705, %v1708
    %v1711 = vmul.u32 %v1706, %v1707
    %v1712 = vmul.u32 %v1706, %v1708
    %v1713 = vshll.u32 %v1710, 16
    %v1714 = vshrl.u32 %v1710, 16
    %v1715 = vshll.u32 %v1711, 16
    %v1716 = vshrl.u32 %v1711, 16
    %vm1717 = vc.u32 %v1709, %v1713
    %v1718 = vsel %vm1717, 1, 0
    %v1719 = vadd.s32 %v1709, %v1713
    %v1720 = vadd.s32 %v1712, %v1718
    %vm1721 = vc.u32 %v1719, %v1715
    %v1722 = vsel %vm1721, 1, 0
    %v1723 = vadd.s32 %v1719, %v1715
    %v1724 = vadd.s32 %v1720, %v1722
    %v1725 = vadd.s32 %v1724, %v1714
    %v1726 = vadd.s32 %v1725, %v1716
    %v1727 = vmul.u32 %v1682, %v1673
    %v1728 = vadd.s32 %v1704, %v1723
    %vm1729 = vc.u32 %v1704, %v1723
    %v1730 = vadd.s32 %v1726, 1
    %v1731 = vsel %vm1729, %v1730, %v1726
    %v1732 = vadd.s32 %v1727, %v1731
    %v1733 = vadd.s32 %v1732, 536870912
    %v1734 = vshrl.u32 %v1733, 30
    %v1735 = vshll.u32 %v1734, 30
    %v1736 = vsub.s32 %v1732, %v1735
    %vm1737 = vcmp.lt.s32.totalorder %v1736, 0
    %v1738 = vsub.s32 0, %v1736
    %v1739 = vsel %vm1737, %v1738, %v1736
    %v1740 = vclz %v1739
    %v1741 = vsub.s32 %v1740, 2
    %vm1742 = vcmp.gt.s32.totalorder 0, %v1741
    %v1743 = vsel %vm1742, 0, %v1741
    %v1744 = vsub.s32 32, %v1743
    %v1745 = vshll.u32 %v1736, %v1743
    %v1746 = vshrl.u32 %v1728, %v1744
    %v1747 = vor.u32 %v1745, %v1746
    %v1748 = vsub.s32 4294967266, %v1743
    %v1749 = vadd.s32 %v1748, 127
    %v1750 = vshll.u32 %v1749, 23
    %v1751 = vor.u32 4788187, %v1750
    %v1752 = vand.u32 2147483647, %v1751
    %v1754 = vcvt.s32.f32 %v1747
    %v1755 = vmul.f32 %v1754, %v1752
    %v1756 = vxor.u32 %v1755, 2147483648
    %v1757 = vsel %vm1636, %v1756, %v1755
    %v1758 = vsub.s32 4, %v1734
    %v1759 = vsel %vm1636, %v1758, %v1734
    %v1760 = vsel %vm1635, %v1324, %v1757
    %v1761 = vsel %vm1635, 0, %v1759
    %v1762 = vmul.f32 %v1760, %v1760
    %v1763 = vmul.f32 %v1762, -0.001358992
    %v1764 = vadd.f32 %v1763, 0.041655596
    %v1765 = vmul.f32 %v1762, %v1764
    %v1766 = vadd.f32 %v1765, -0.4999988
    %v1767 = vmul.f32 %v1762, %v1766
    %v1768 = vadd.f32 1.0, %v1767
    %v1769 = vmul.f32 %v1760, %v1760
    %v1770 = vmul.f32 %v1769, -0.00019511016
    %v1771 = vadd.f32 %v1770, 0.008332121
    %v1772 = vmul.f32 %v1769, %v1771
    %v1773 = vadd.f32 %v1772, -0.16666654
    %v1774 = vmul.f32 %v1769, %v1773
    %v1775 = vadd.f32 %v1774, 1.0
    %v1776 = vmul.f32 %v1775, %v1760
    %vm1777 = vweird.f32 %v1324
    %v1778 = vand.u32 %v1761, 3
    %vm1779 = vcmp.lt.s32.totalorder %v1778, 2
    %vm1780 = vcmp.eq.s32.totalorder %v1778, 0
    %v1781 = vxor.u32 %v1776, 2147483648
    %v1782 = vsel %vm1780, %v1768, %v1781
    %vm1783 = vcmp.eq.s32.totalorder %v1778, 2
    %v1784 = vxor.u32 %v1768, 2147483648
    %v1785 = vsel %vm1783, %v1784, %v1776
    %v1786 = vsel %vm1779, %v1782, %v1785
    %v1787 = vsel %vm1777, nan, %v1786
    %v1788 = vand.u32 2147483647, %v1325
    %vm1789 = vcmp.le.f32.partialorder %v1788, 0.7853982
    %vm1790 = vcmp.lt.s32.totalorder %v1325, 0
    %v1791 = vand.u32 %v1325, 2139095040
    %v1792 = vshrl.u32 %v1791, 23
    %v1793 = vsub.s32 %v1792, 127
    %v1794 = vand.u32 2147483647, %v1325
    %v1795 = vand.u32 %v1794, 8388607
    %v1796 = vor.u32 %v1795, 8388608
    %v1797 = vsub.s32 0, %v1796
    %v1798 = vadd.s32 %v1793, 1
    %vm1799 = vcmp.gt.s32.totalorder %v1798, 0
    %v1800 = vsel %vm1799, %v1798, 0
    %v1801 = vshrl.u32 %v1800, 5
    %v1802 = vand.u32 %v1800, 31
    %v1803 = vsub.s32 32, %v1802
    %v1804 = vshrl.u32 683565275, %v1803
    %v1805 = vshll.u32 683565275, %v1802
    %v1806 = vshrl.u32 2475754826, %v1803
    %v1807 = vor.u32 %v1805, %v1806
    %v1808 = vshll.u32 2475754826, %v1802
    %v1809 = vshrl.u32 2131351028, %v1803
    %v1810 = vor.u32 %v1808, %v1809
    %v1811 = vshll.u32 2131351028, %v1802
    %v1812 = vshrl.u32 2102212464, %v1803
    %v1813 = vor.u32 %v1811, %v1812
    %v1814 = vshll.u32 2102212464, %v1802
    %v1815 = vshrl.u32 920167782, %v1803
    %v1816 = vor.u32 %v1814, %v1815
    %v1817 = vshll.u32 920167782, %v1802
    %v1818 = vshrl.u32 1326507024, %v1803
    %v1819 = vor.u32 %v1817, %v1818
    %vm1820 = vcmp.lt.s32.totalorder %v1801, 1
    %vm1821 = vcmp.lt.s32.totalorder %v1801, 2
    %vm1822 = vcmp.lt.s32.totalorder %v1801, 3
    %vm1823 = vcmp.lt.s32.totalorder %v1801, 4
    %v1824 = vsel %vm1820, %v1804, %v1807
    %v1825 = vsel %vm1823, %v1813, 2102212464
    %v1826 = vsel %vm1822, %v1810, %v1825
    %v1827 = vsel %vm1821, %v1824, %v1826
    %v1828 = vsel %vm1820, %v1807, %v1810
    %v1829 = vsel %vm1823, %v1816, 920167782
    %v1830 = vsel %vm1822, %v1813, %v1829
    %v1831 = vsel %vm1821, %v1828, %v1830
    %v1832 = vsel %vm1820, %v1810, %v1813
    %v1833 = vsel %vm1823, %v1819, 1326507024
    %v1834 = vsel %vm1822, %v1816, %v1833
    %v1835 = vsel %vm1821, %v1832, %v1834
    %v1836 = vshll.u32 %v1796, 8
    %v1837 = vand.u32 %v1836, 65535
    %v1838 = vshrl.u32 %v1836, 16
    %v1839 = vand.u32 %v1835, 65535
    %v1840 = vshrl.u32 %v1835, 16
    %v1841 = vmul.u32 %v1837, %v1839
    %v1842 = vmul.u32 %v1837, %v1840
    %v1843 = vmul.u32 %v1838, %v1839
    %v1844 = vmul.u32 %v1838, %v1840
    %v1845 = vshll.u32 %v1842, 16
    %v1846 = vshrl.u32 %v1842, 16
    %v1847 = vshll.u32 %v1843, 16
    %v1848 = vshrl.u32 %v1843, 16
    %vm1849 = vc.u32 %v1841, %v1845
    %v1850 = vsel %vm1849, 1, 0
    %v1851 = vadd.s32 %v1841, %v1845
    %v1852 = vadd.s32 %v1844, %v1850
    %vm1853 = vc.u32 %v1851, %v1847
    %v1854 = vsel %vm1853, 1, 0
    %v1855 = vadd.s32 %v1851, %v1847
    %v1856 = vadd.s32 %v1852, %v1854
    %v1857 = vadd.s32 %v1856, %v1846
    %v1858 = vadd.s32 %v1857, %v1848
    %v1859 = vand.u32 %v1836, 65535
    %v1860 = vshrl.u32 %v1836, 16
    %v1861 = vand.u32 %v1831, 65535
    %v1862 = vshrl.u32 %v1831, 16
    %v1863 = vmul.u32 %v1859, %v1861
    %v1864 = vmul.u32 %v1859, %v1862
    %v1865 = vmul.u32 %v1860, %v1861
    %v1866 = vmul.u32 %v1860, %v1862
    %v1867 = vshll.u32 %v1864, 16
    %v1868 = vshrl.u32 %v1864, 16
    %v1869 = vshll.u32 %v1865, 16
    %v1870 = vshrl.u32 %v1865, 16
    %vm1871 = vc.u32 %v1863, %v1867
    %v1872 = vsel %vm1871, 1, 0
    %v1873 = vadd.s32 %v1863, %v1867
    %v1874 = vadd.s32 %v1866, %v1872
    %vm1875 = vc.u32 %v1873, %v1869
    %v1876 = vsel %vm1875, 1, 0
    %v1877 = vadd.s32 %v1873, %v1869
    %v1878 = vadd.s32 %v1874, %v1876
    %v1879 = vadd.s32 %v1878, %v1868
    %v1880 = vadd.s32 %v1879, %v1870
    %v1881 = vmul.u32 %v1836, %v1827
    %v1882 = vadd.s32 %v1858, %v1877
    %vm1883 = vc.u32 %v1858, %v1877
    %v1884 = vadd.s32 %v1880, 1
    %v1885 = vsel %vm1883, %v1884, %v1880
    %v1886 = vadd.s32 %v1881, %v1885
    %v1887 = vadd.s32 %v1886, 536870912
    %v1888 = vshrl.u32 %v1887, 30
    %v1889 = vshll.u32 %v1888, 30
    %v1890 = vsub.s32 %v1886, %v1889
    %vm1891 = vcmp.lt.s32.totalorder %v1890, 0
    %v1892 = vsub.s32 0, %v1890
    %v1893 = vsel %vm1891, %v1892, %v1890
    %v1894 = vclz %v1893
    %v1895 = vsub.s32 %v1894, 2
    %vm1896 = vcmp.gt.s32.totalorder 0, %v1895
    %v1897 = vsel %vm1896, 0, %v1895
    %v1898 = vsub.s32 32, %v1897
    %v1899 = vshll.u32 %v1890, %v1897
    %v1900 = vshrl.u32 %v1882, %v1898
    %v1901 = vor.u32 %v1899, %v1900
    %v1902 = vsub.s32 4294967266, %v1897
    %v1903 = vadd.s32 %v1902, 127
    %v1904 = vshll.u32 %v1903, 23
    %v1905 = vor.u32 4788187, %v1904
    %v1906 = vand.u32 2147483647, %v1905
    %v1908 = vcvt.s32.f32 %v1901
    %v1909 = vmul.f32 %v1908, %v1906
    %v1910 = vxor.u32 %v1909, 2147483648
    %v1911 = vsel %vm1790, %v1910, %v1909
    %v1912 = vsub.s32 4, %v1888
    %v1913 = vsel %vm1790, %v1912, %v1888
    %v1914 = vsel %vm1789, %v1325, %v1911
    %v1915 = vsel %vm1789, 0, %v1913
    %v1916 = vmul.f32 %v1914, %v1914
    %v1917 = vmul.f32 %v1916, -0.001358992
    %v1918 = vadd.f32 %v1917, 0.041655596
    %v1919 = vmul.f32 %v1916, %v1918
    %v1920 = vadd.f32 %v1919, -0.4999988
    %v1921 = vmul.f32 %v1916, %v1920
    %v1922 = vadd.f32 1.0, %v1921
    %v1923 = vmul.f32 %v1914, %v1914
    %v1924 = vmul.f32 %v1923, -0.00019511016
    %v1925 = vadd.f32 %v1924, 0.008332121
    %v1926 = vmul.f32 %v1923, %v1925
    %v1927 = vadd.f32 %v1926, -0.16666654
    %v1928 = vmul.f32 %v1923, %v1927
    %v1929 = vadd.f32 %v1928, 1.0
    %v1930 = vmul.f32 %v1929, %v1914
    %vm1931 = vweird.f32 %v1325
    %v1932 = vand.u32 %v1915, 3
    %vm1933 = vcmp.lt.s32.totalorder %v1932, 2
    %vm1934 = vcmp.eq.s32.totalorder %v1932, 0
    %v1935 = vxor.u32 %v1930, 2147483648
    %v1936 = vsel %vm1934, %v1922, %v1935
    %vm1937 = vcmp.eq.s32.totalorder %v1932, 2
    %v1938 = vxor.u32 %v1922, 2147483648
    %v1939 = vsel %vm1937, %v1938, %v1930
    %v1940 = vsel %vm1933, %v1936, %v1939
    %v1941 = vsel %vm1931, nan, %v1940
    %v1942 = vand.u32 2147483647, %v1322
    %vm1943 = vcmp.le.f32.partialorder %v1942, 0.7853982
    %vm1944 = vcmp.lt.s32.totalorder %v1322, 0
    %v1945 = vand.u32 %v1322, 2139095040
    %v1946 = vshrl.u32 %v1945, 23
    %v1947 = vsub.s32 %v1946, 127
    %v1948 = vand.u32 2147483647, %v1322
    %v1949 = vand.u32 %v1948, 8388607
    %v1950 = vor.u32 %v1949, 8388608
    %v1951 = vsub.s32 0, %v1950
    %v1952 = vadd.s32 %v1947, 1
    %vm1953 = vcmp.gt.s32.totalorder %v1952, 0
    %v1954 = vsel %vm1953, %v1952, 0
    %v1955 = vshrl.u32 %v1954, 5
    %v1956 = vand.u32 %v1954, 31
    %v1957 = vsub.s32 32, %v1956
    %v1958 = vshrl.u32 683565275, %v1957
    %v1959 = vshll.u32 683565275, %v1956
    %v1960 = vshrl.u32 2475754826, %v1957
    %v1961 = vor.u32 %v1959, %v1960
    %v1962 = vshll.u32 2475754826, %v1956
    %v1963 = vshrl.u32 2131351028, %v1957
    %v1964 = vor.u32 %v1962, %v1963
    %v1965 = vshll.u32 2131351028, %v1956
    %v1966 = vshrl.u32 2102212464, %v1957
    %v1967 = vor.u32 %v1965, %v1966
    %v1968 = vshll.u32 2102212464, %v1956
    %v1969 = vshrl.u32 920167782, %v1957
    %v1970 = vor.u32 %v1968, %v1969
    %v1971 = vshll.u32 920167782, %v1956
    %v1972 = vshrl.u32 1326507024, %v1957
    %v1973 = vor.u32 %v1971, %v1972
    %vm1974 = vcmp.lt.s32.totalorder %v1955, 1
    %vm1975 = vcmp.lt.s32.totalorder %v1955, 2
    %vm1976 = vcmp.lt.s32.totalorder %v1955, 3
    %vm1977 = vcmp.lt.s32.totalorder %v1955, 4
    %v1978 = vsel %vm1974, %v1958, %v1961
    %v1979 = vsel %vm1977, %v1967, 2102212464
    %v1980 = vsel %vm1976, %v1964, %v1979
    %v1981 = vsel %vm1975, %v1978, %v1980
    %v1982 = vsel %vm1974, %v1961, %v1964
    %v1983 = vsel %vm1977, %v1970, 920167782
    %v1984 = vsel %vm1976, %v1967, %v1983
    %v1985 = vsel %vm1975, %v1982, %v1984
    %v1986 = vsel %vm1974, %v1964, %v1967
    %v1987 = vsel %vm1977, %v1973, 1326507024
    %v1988 = vsel %vm1976, %v1970, %v1987
    %v1989 = vsel %vm1975, %v1986, %v1988
    %v1990 = vshll.u32 %v1950, 8
    %v1991 = vand.u32 %v1990, 65535
    %v1992 = vshrl.u32 %v1990, 16
    %v1993 = vand.u32 %v1989, 65535
    %v1994 = vshrl.u32 %v1989, 16
    %v1995 = vmul.u32 %v1991, %v1993
    %v1996 = vmul.u32 %v1991, %v1994
    %v1997 = vmul.u32 %v1992, %v1993
    %v1998 = vmul.u32 %v1992, %v1994
    %v1999 = vshll.u32 %v1996, 16
    %v2000 = vshrl.u32 %v1996, 16
    %v2001 = vshll.u32 %v1997, 16
    %v2002 = vshrl.u32 %v1997, 16
    %vm2003 = vc.u32 %v1995, %v1999
    %v2004 = vsel %vm2003, 1, 0
    %v2005 = vadd.s32 %v1995, %v1999
    %v2006 = vadd.s32 %v1998, %v2004
    %vm2007 = vc.u32 %v2005, %v2001
    %v2008 = vsel %vm2007, 1, 0
    %v2009 = vadd.s32 %v2005, %v2001
    %v2010 = vadd.s32 %v2006, %v2008
    %v2011 = vadd.s32 %v2010, %v2000
    %v2012 = vadd.s32 %v2011, %v2002
    %v2013 = vand.u32 %v1990, 65535
    %v2014 = vshrl.u32 %v1990, 16
    %v2015 = vand.u32 %v1985, 65535
    %v2016 = vshrl.u32 %v1985, 16
    %v2017 = vmul.u32 %v2013, %v2015
    %v2018 = vmul.u32 %v2013, %v2016
    %v2019 = vmul.u32 %v2014, %v2015
    %v2020 = vmul.u32 %v2014, %v2016
    %v2021 = vshll.u32 %v2018, 16
    %v2022 = vshrl.u32 %v2018, 16
    %v2023 = vshll.u32 %v2019, 16
    %v2024 = vshrl.u32 %v2019, 16
    %vm2025 = vc.u32 %v2017, %v2021
    %v2026 = vsel %vm2025, 1, 0
    %v2027 = vadd.s32 %v2017, %v2021
    %v2028 = vadd.s32 %v2020, %v2026
    %vm2029 = vc.u32 %v2027, %v2023
    %v2030 = vsel %vm2029, 1, 0
    %v2031 = vadd.s32 %v2027, %v2023
    %v2032 = vadd.s32 %v2028, %v2030
    %v2033 = vadd.s32 %v2032, %v2022
    %v2034 = vadd.s32 %v2033, %v2024
    %v2035 = vmul.u32 %v1990, %v1981
    %v2036 = vadd.s32 %v2012, %v2031
    %vm2037 = vc.u32 %v2012, %v2031
    %v2038 = vadd.s32 %v2034, 1
    %v2039 = vsel %vm2037, %v2038, %v2034
    %v2040 = vadd.s32 %v2035, %v2039
    %v2041 = vadd.s32 %v2040, 536870912
    %v2042 = vshrl.u32 %v2041, 30
    %v2043 = vshll.u32 %v2042, 30
    %v2044 = vsub.s32 %v2040, %v2043
    %vm2045 = vcmp.lt.s32.totalorder %v2044, 0
    %v2046 = vsub.s32 0, %v2044
    %v2047 = vsel %vm2045, %v2046, %v2044
    %v2048 = vclz %v2047
    %v2049 = vsub.s32 %v2048, 2
    %vm2050 = vcmp.gt.s32.totalorder 0, %v2049
    %v2051 = vsel %vm2050, 0, %v2049
    %v2052 = vsub.s32 32, %v2051
    %v2053 = vshll.u32 %v2044, %v2051
    %v2054 = vshrl.u32 %v2036, %v2052
    %v2055 = vor.u32 %v2053, %v2054
    %v2056 = vsub.s32 4294967266, %v2051
    %v2057 = vadd.s32 %v2056, 127
    %v2058 = vshll.u32 %v2057, 23
    %v2059 = vor.u32 4788187, %v2058
    %v2060 = vand.u32 2147483647, %v2059
    %v2062 = vcvt.s32.f32 %v2055
    %v2063 = vmul.f32 %v2062, %v2060
    %v2064 = vxor.u32 %v2063, 2147483648
    %v2065 = vsel %vm1944, %v2064, %v2063
    %v2066 = vsub.s32 4, %v2042
    %v2067 = vsel %vm1944, %v2066, %v2042
    %v2068 = vsel %vm1943, %v1322, %v2065
    %v2069 = vsel %vm1943, 0, %v2067
    %v2070 = vmul.f32 %v2068, %v2068
    %v2071 = vmul.f32 %v2070, -0.001358992
    %v2072 = vadd.f32 %v2071, 0.041655596
    %v2073 = vmul.f32 %v2070, %v2072
    %v2074 = vadd.f32 %v2073, -0.4999988
    %v2075 = vmul.f32 %v2070, %v2074
    %v2076 = vadd.f32 1.0, %v2075
    %v2077 = vmul.f32 %v2068, %v2068
    %v2078 = vmul.f32 %v2077, -0.00019511016
    %v2079 = vadd.f32 %v2078, 0.008332121
    %v2080 = vmul.f32 %v2077, %v2079
    %v2081 = vadd.f32 %v2080, -0.16666654
    %v2082 = vmul.f32 %v2077, %v2081
    %v2083 = vadd.f32 %v2082, 1.0
    %v2084 = vmul.f32 %v2083, %v2068
    %vm2085 = vweird.f32 %v1322
    %v2086 = vadd.s32 %v2069, 3
    %v2087 = vand.u32 %v2086, 3
    %vm2088 = vcmp.lt.s32.totalorder %v2087, 2
    %vm2089 = vcmp.eq.s32.totalorder %v2087, 0
    %v2090 = vxor.u32 %v2084, 2147483648
    %v2091 = vsel %vm2089, %v2076, %v2090
    %vm2092 = vcmp.eq.s32.totalorder %v2087, 2
    %v2093 = vxor.u32 %v2076, 2147483648
    %v2094 = vsel %vm2092, %v2093, %v2084
    %v2095 = vsel %vm2088, %v2091, %v2094
    %v2096 = vsel %vm2085, nan, %v2095
    %v2097 = vand.u32 2147483647, %v1323
    %vm2098 = vcmp.le.f32.partialorder %v2097, 0.7853982
    %vm2099 = vcmp.lt.s32.totalorder %v1323, 0
    %v2100 = vand.u32 %v1323, 2139095040
    %v2101 = vshrl.u32 %v2100, 23
    %v2102 = vsub.s32 %v2101, 127
    %v2103 = vand.u32 2147483647, %v1323
    %v2104 = vand.u32 %v2103, 8388607
    %v2105 = vor.u32 %v2104, 8388608
    %v2106 = vsub.s32 0, %v2105
    %v2107 = vadd.s32 %v2102, 1
    %vm2108 = vcmp.gt.s32.totalorder %v2107, 0
    %v2109 = vsel %vm2108, %v2107, 0
    %v2110 = vshrl.u32 %v2109, 5
    %v2111 = vand.u32 %v2109, 31
    %v2112 = vsub.s32 32, %v2111
    %v2113 = vshrl.u32 683565275, %v2112
    %v2114 = vshll.u32 683565275, %v2111
    %v2115 = vshrl.u32 2475754826, %v2112
    %v2116 = vor.u32 %v2114, %v2115
    %v2117 = vshll.u32 2475754826, %v2111
    %v2118 = vshrl.u32 2131351028, %v2112
    %v2119 = vor.u32 %v2117, %v2118
    %v2120 = vshll.u32 2131351028, %v2111
    %v2121 = vshrl.u32 2102212464, %v2112
    %v2122 = vor.u32 %v2120, %v2121
    %v2123 = vshll.u32 2102212464, %v2111
    %v2124 = vshrl.u32 920167782, %v2112
    %v2125 = vor.u32 %v2123, %v2124
    %v2126 = vshll.u32 920167782, %v2111
    %v2127 = vshrl.u32 1326507024, %v2112
    %v2128 = vor.u32 %v2126, %v2127
    %vm2129 = vcmp.lt.s32.totalorder %v2110, 1
    %vm2130 = vcmp.lt.s32.totalorder %v2110, 2
    %vm2131 = vcmp.lt.s32.totalorder %v2110, 3
    %vm2132 = vcmp.lt.s32.totalorder %v2110, 4
    %v2133 = vsel %vm2129, %v2113, %v2116
    %v2134 = vsel %vm2132, %v2122, 2102212464
    %v2135 = vsel %vm2131, %v2119, %v2134
    %v2136 = vsel %vm2130, %v2133, %v2135
    %v2137 = vsel %vm2129, %v2116, %v2119
    %v2138 = vsel %vm2132, %v2125, 920167782
    %v2139 = vsel %vm2131, %v2122, %v2138
    %v2140 = vsel %vm2130, %v2137, %v2139
    %v2141 = vsel %vm2129, %v2119, %v2122
    %v2142 = vsel %vm2132, %v2128, 1326507024
    %v2143 = vsel %vm2131, %v2125, %v2142
    %v2144 = vsel %vm2130, %v2141, %v2143
    %v2145 = vshll.u32 %v2105, 8
    %v2146 = vand.u32 %v2145, 65535
    %v2147 = vshrl.u32 %v2145, 16
    %v2148 = vand.u32 %v2144, 65535
    %v2149 = vshrl.u32 %v2144, 16
    %v2150 = vmul.u32 %v2146, %v2148
    %v2151 = vmul.u32 %v2146, %v2149
    %v2152 = vmul.u32 %v2147, %v2148
    %v2153 = vmul.u32 %v2147, %v2149
    %v2154 = vshll.u32 %v2151, 16
    %v2155 = vshrl.u32 %v2151, 16
    %v2156 = vshll.u32 %v2152, 16
    %v2157 = vshrl.u32 %v2152, 16
    %vm2158 = vc.u32 %v2150, %v2154
    %v2159 = vsel %vm2158, 1, 0
    %v2160 = vadd.s32 %v2150, %v2154
    %v2161 = vadd.s32 %v2153, %v2159
    %vm2162 = vc.u32 %v2160, %v2156
    %v2163 = vsel %vm2162, 1, 0
    %v2164 = vadd.s32 %v2160, %v2156
    %v2165 = vadd.s32 %v2161, %v2163
    %v2166 = vadd.s32 %v2165, %v2155
    %v2167 = vadd.s32 %v2166, %v2157
    %v2168 = vand.u32 %v2145, 65535
    %v2169 = vshrl.u32 %v2145, 16
    %v2170 = vand.u32 %v2140, 65535
    %v2171 = vshrl.u32 %v2140, 16
    %v2172 = vmul.u32 %v2168, %v2170
    %v2173 = vmul.u32 %v2168, %v2171
    %v2174 = vmul.u32 %v2169, %v2170
    %v2175 = vmul.u32 %v2169, %v2171
    %v2176 = vshll.u32 %v2173, 16
    %v2177 = vshrl.u32 %v2173, 16
    %v2178 = vshll.u32 %v2174, 16
    %v2179 = vshrl.u32 %v2174, 16
    %vm2180 = vc.u32 %v2172, %v2176
    %v2181 = vsel %vm2180, 1, 0
    %v2182 = vadd.s32 %v2172, %v2176
    %v2183 = vadd.s32 %v2175, %v2181
    %vm2184 = vc.u32 %v2182, %v2178
    %v2185 = vsel %vm2184, 1, 0
    %v2186 = vadd.s32 %v2182, %v2178
    %v2187 = vadd.s32 %v2183, %v2185
    %v2188 = vadd.s32 %v2187, %v2177
    %v2189 = vadd.s32 %v2188, %v2179
    %v2190 = vmul.u32 %v2145, %v2136
    %v2191 = vadd.s32 %v2167, %v2186
    %vm2192 = vc.u32 %v2167, %v2186
    %v2193 = vadd.s32 %v2189, 1
    %v2194 = vsel %vm2192, %v2193, %v2189
    %v2195 = vadd.s32 %v2190, %v2194
    %v2196 = vadd.s32 %v2195, 536870912
    %v2197 = vshrl.u32 %v2196, 30
    %v2198 = vshll.u32 %v2197, 30
    %v2199 = vsub.s32 %v2195, %v2198
    %vm2200 = vcmp.lt.s32.totalorder %v2199, 0
    %v2201 = vsub.s32 0, %v2199
    %v2202 = vsel %vm2200, %v2201, %v2199
    %v2203 = vclz %v2202
    %v2204 = vsub.s32 %v2203, 2
    %vm2205 = vcmp.gt.s32.totalorder 0, %v2204
    %v2206 = vsel %vm2205, 0, %v2204
    %v2207 = vsub.s32 32, %v2206
    %v2208 = vshll.u32 %v2199, %v2206
    %v2209 = vshrl.u32 %v2191, %v2207
    %v2210 = vor.u32 %v2208, %v2209
    %v2211 = vsub.s32 4294967266, %v2206
    %v2212 = vadd.s32 %v2211, 127
    %v2213 = vshll.u32 %v2212, 23
    %v2214 = vor.u32 4788187, %v2213
    %v2215 = vand.u32 2147483647, %v2214
    %v2217 = vcvt.s32.f32 %v2210
    %v2218 = vmul.f32 %v2217, %v2215
    %v2219 = vxor.u32 %v2218, 2147483648
    %v2220 = vsel %vm2099, %v2219, %v2218
    %v2221 = vsub.s32 4, %v2197
    %v2222 = vsel %vm2099, %v2221, %v2197
    %v2223 = vsel %vm2098, %v1323, %v2220
    %v2224 = vsel %vm2098, 0, %v2222
    %v2225 = vmul.f32 %v2223, %v2223
    %v2226 = vmul.f32 %v2225, -0.001358992
    %v2227 = vadd.f32 %v2226, 0.041655596
    %v2228 = vmul.f32 %v2225, %v2227
    %v2229 = vadd.f32 %v2228, -0.4999988
    %v2230 = vmul.f32 %v2225, %v2229
    %v2231 = vadd.f32 1.0, %v2230
    %v2232 = vmul.f32 %v2223, %v2223
    %v2233 = vmul.f32 %v2232, -0.00019511016
    %v2234 = vadd.f32 %v2233, 0.008332121
    %v2235 = vmul.f32 %v2232, %v2234
    %v2236 = vadd.f32 %v2235, -0.16666654
    %v2237 = vmul.f32 %v2232, %v2236
    %v2238 = vadd.f32 %v2237, 1.0
    %v2239 = vmul.f32 %v2238, %v2223
    %vm2240 = vweird.f32 %v1323
    %v2241 = vadd.s32 %v2224, 3
    %v2242 = vand.u32 %v2241, 3
    %vm2243 = vcmp.lt.s32.totalorder %v2242, 2
    %vm2244 = vcmp.eq.s32.totalorder %v2242, 0
    %v2245 = vxor.u32 %v2239, 2147483648
    %v2246 = vsel %vm2244, %v2231, %v2245
    %vm2247 = vcmp.eq.s32.totalorder %v2242, 2
    %v2248 = vxor.u32 %v2231, 2147483648
    %v2249 = vsel %vm2247, %v2248, %v2239
    %v2250 = vsel %vm2243, %v2246, %v2249
    %v2251 = vsel %vm2240, nan, %v2250
    %v2252 = vand.u32 2147483647, %v1324
    %vm2253 = vcmp.le.f32.partialorder %v2252, 0.7853982
    %vm2254 = vcmp.lt.s32.totalorder %v1324, 0
    %v2255 = vand.u32 %v1324, 2139095040
    %v2256 = vshrl.u32 %v2255, 23
    %v2257 = vsub.s32 %v2256, 127
    %v2258 = vand.u32 2147483647, %v1324
    %v2259 = vand.u32 %v2258, 8388607
    %v2260 = vor.u32 %v2259, 8388608
    %v2261 = vsub.s32 0, %v2260
    %v2262 = vadd.s32 %v2257, 1
    %vm2263 = vcmp.gt.s32.totalorder %v2262, 0
    %v2264 = vsel %vm2263, %v2262, 0
    %v2265 = vshrl.u32 %v2264, 5
    %v2266 = vand.u32 %v2264, 31
    %v2267 = vsub.s32 32, %v2266
    %v2268 = vshrl.u32 683565275, %v2267
    %v2269 = vshll.u32 683565275, %v2266
    %v2270 = vshrl.u32 2475754826, %v2267
    %v2271 = vor.u32 %v2269, %v2270
    %v2272 = vshll.u32 2475754826, %v2266
    %v2273 = vshrl.u32 2131351028, %v2267
    %v2274 = vor.u32 %v2272, %v2273
    %v2275 = vshll.u32 2131351028, %v2266
    %v2276 = vshrl.u32 2102212464, %v2267
    %v2277 = vor.u32 %v2275, %v2276
    %v2278 = vshll.u32 2102212464, %v2266
    %v2279 = vshrl.u32 920167782, %v2267
    %v2280 = vor.u32 %v2278, %v2279
    %v2281 = vshll.u32 920167782, %v2266
    %v2282 = vshrl.u32 1326507024, %v2267
    %v2283 = vor.u32 %v2281, %v2282
    %vm2284 = vcmp.lt.s32.totalorder %v2265, 1
    %vm2285 = vcmp.lt.s32.totalorder %v2265, 2
    %vm2286 = vcmp.lt.s32.totalorder %v2265, 3
    %vm2287 = vcmp.lt.s32.totalorder %v2265, 4
    %v2288 = vsel %vm2284, %v2268, %v2271
    %v2289 = vsel %vm2287, %v2277, 2102212464
    %v2290 = vsel %vm2286, %v2274, %v2289
    %v2291 = vsel %vm2285, %v2288, %v2290
    %v2292 = vsel %vm2284, %v2271, %v2274
    %v2293 = vsel %vm2287, %v2280, 920167782
    %v2294 = vsel %vm2286, %v2277, %v2293
    %v2295 = vsel %vm2285, %v2292, %v2294
    %v2296 = vsel %vm2284, %v2274, %v2277
    %v2297 = vsel %vm2287, %v2283, 1326507024
    %v2298 = vsel %vm2286, %v2280, %v2297
    %v2299 = vsel %vm2285, %v2296, %v2298
    %v2300 = vshll.u32 %v2260, 8
    %v2301 = vand.u32 %v2300, 65535
    %v2302 = vshrl.u32 %v2300, 16
    %v2303 = vand.u32 %v2299, 65535
    %v2304 = vshrl.u32 %v2299, 16
    %v2305 = vmul.u32 %v2301, %v2303
    %v2306 = vmul.u32 %v2301, %v2304
    %v2307 = vmul.u32 %v2302, %v2303
    %v2308 = vmul.u32 %v2302, %v2304
    %v2309 = vshll.u32 %v2306, 16
    %v2310 = vshrl.u32 %v2306, 16
    %v2311 = vshll.u32 %v2307, 16
    %v2312 = vshrl.u32 %v2307, 16
    %vm2313 = vc.u32 %v2305, %v2309
    %v2314 = vsel %vm2313, 1, 0
    %v2315 = vadd.s32 %v2305, %v2309
    %v2316 = vadd.s32 %v2308, %v2314
    %vm2317 = vc.u32 %v2315, %v2311
    %v2318 = vsel %vm2317, 1, 0
    %v2319 = vadd.s32 %v2315, %v2311
    %v2320 = vadd.s32 %v2316, %v2318
    %v2321 = vadd.s32 %v2320, %v2310
    %v2322 = vadd.s32 %v2321, %v2312
    %v2323 = vand.u32 %v2300, 65535
    %v2324 = vshrl.u32 %v2300, 16
    %v2325 = vand.u32 %v2295, 65535
    %v2326 = vshrl.u32 %v2295, 16
    %v2327 = vmul.u32 %v2323, %v2325
    %v2328 = vmul.u32 %v2323, %v2326
    %v2329 = vmul.u32 %v2324, %v2325
    %v2330 = vmul.u32 %v2324, %v2326
    %v2331 = vshll.u32 %v2328, 16
    %v2332 = vshrl.u32 %v2328, 16
    %v2333 = vshll.u32 %v2329, 16
    %v2334 = vshrl.u32 %v2329, 16
    %vm2335 = vc.u32 %v2327, %v2331
    %v2336 = vsel %vm2335, 1, 0
    %v2337 = vadd.s32 %v2327, %v2331
    %v2338 = vadd.s32 %v2330, %v2336
    %vm2339 = vc.u32 %v2337, %v2333
    %v2340 = vsel %vm2339, 1, 0
    %v2341 = vadd.s32 %v2337, %v2333
    %v2342 = vadd.s32 %v2338, %v2340
    %v2343 = vadd.s32 %v2342, %v2332
    %v2344 = vadd.s32 %v2343, %v2334
    %v2345 = vmul.u32 %v2300, %v2291
    %v2346 = vadd.s32 %v2322, %v2341
    %vm2347 = vc.u32 %v2322, %v2341
    %v2348 = vadd.s32 %v2344, 1
    %v2349 = vsel %vm2347, %v2348, %v2344
    %v2350 = vadd.s32 %v2345, %v2349
    %v2351 = vadd.s32 %v2350, 536870912
    %v2352 = vshrl.u32 %v2351, 30
    %v2353 = vshll.u32 %v2352, 30
    %v2354 = vsub.s32 %v2350, %v2353
    %vm2355 = vcmp.lt.s32.totalorder %v2354, 0
    %v2356 = vsub.s32 0, %v2354
    %v2357 = vsel %vm2355, %v2356, %v2354
    %v2358 = vclz %v2357
    %v2359 = vsub.s32 %v2358, 2
    %vm2360 = vcmp.gt.s32.totalorder 0, %v2359
    %v2361 = vsel %vm2360, 0, %v2359
    %v2362 = vsub.s32 32, %v2361
    %v2363 = vshll.u32 %v2354, %v2361
    %v2364 = vshrl.u32 %v2346, %v2362
    %v2365 = vor.u32 %v2363, %v2364
    %v2366 = vsub.s32 4294967266, %v2361
    %v2367 = vadd.s32 %v2366, 127
    %v2368 = vshll.u32 %v2367, 23
    %v2369 = vor.u32 4788187, %v2368
    %v2370 = vand.u32 2147483647, %v2369
    %v2372 = vcvt.s32.f32 %v2365
    %v2373 = vmul.f32 %v2372, %v2370
    %v2374 = vxor.u32 %v2373, 2147483648
    %v2375 = vsel %vm2254, %v2374, %v2373
    %v2376 = vsub.s32 4, %v2352
    %v2377 = vsel %vm2254, %v2376, %v2352
    %v2378 = vsel %vm2253, %v1324, %v2375
    %v2379 = vsel %vm2253, 0, %v2377
    %v2380 = vmul.f32 %v2378, %v2378
    %v2381 = vmul.f32 %v2380, -0.001358992
    %v2382 = vadd.f32 %v2381, 0.041655596
    %v2383 = vmul.f32 %v2380, %v2382
    %v2384 = vadd.f32 %v2383, -0.4999988
    %v2385 = vmul.f32 %v2380, %v2384
    %v2386 = vadd.f32 1.0, %v2385
    %v2387 = vmul.f32 %v2378, %v2378
    %v2388 = vmul.f32 %v2387, -0.00019511016
    %v2389 = vadd.f32 %v2388, 0.008332121
    %v2390 = vmul.f32 %v2387, %v2389
    %v2391 = vadd.f32 %v2390, -0.16666654
    %v2392 = vmul.f32 %v2387, %v2391
    %v2393 = vadd.f32 %v2392, 1.0
    %v2394 = vmul.f32 %v2393, %v2378
    %vm2395 = vweird.f32 %v1324
    %v2396 = vadd.s32 %v2379, 3
    %v2397 = vand.u32 %v2396, 3
    %vm2398 = vcmp.lt.s32.totalorder %v2397, 2
    %vm2399 = vcmp.eq.s32.totalorder %v2397, 0
    %v2400 = vxor.u32 %v2394, 2147483648
    %v2401 = vsel %vm2399, %v2386, %v2400
    %vm2402 = vcmp.eq.s32.totalorder %v2397, 2
    %v2403 = vxor.u32 %v2386, 2147483648
    %v2404 = vsel %vm2402, %v2403, %v2394
    %v2405 = vsel %vm2398, %v2401, %v2404
    %v2406 = vsel %vm2395, nan, %v2405
    %v2407 = vand.u32 2147483647, %v1325
    %vm2408 = vcmp.le.f32.partialorder %v2407, 0.7853982
    %vm2409 = vcmp.lt.s32.totalorder %v1325, 0
    %v2410 = vand.u32 %v1325, 2139095040
    %v2411 = vshrl.u32 %v2410, 23
    %v2412 = vsub.s32 %v2411, 127
    %v2413 = vand.u32 2147483647, %v1325
    %v2414 = vand.u32 %v2413, 8388607
    %v2415 = vor.u32 %v2414, 8388608
    %v2416 = vsub.s32 0, %v2415
    %v2417 = vadd.s32 %v2412, 1
    %vm2418 = vcmp.gt.s32.totalorder %v2417, 0
    %v2419 = vsel %vm2418, %v2417, 0
    %v2420 = vshrl.u32 %v2419, 5
    %v2421 = vand.u32 %v2419, 31
    %v2422 = vsub.s32 32, %v2421
    %v2423 = vshrl.u32 683565275, %v2422
    %v2424 = vshll.u32 683565275, %v2421
    %v2425 = vshrl.u32 2475754826, %v2422
    %v2426 = vor.u32 %v2424, %v2425
    %v2427 = vshll.u32 2475754826, %v2421
    %v2428 = vshrl.u32 2131351028, %v2422
    %v2429 = vor.u32 %v2427, %v2428
    %v2430 = vshll.u32 2131351028, %v2421
    %v2431 = vshrl.u32 2102212464, %v2422
    %v2432 = vor.u32 %v2430, %v2431
    %v2433 = vshll.u32 2102212464, %v2421
    %v2434 = vshrl.u32 920167782, %v2422
    %v2435 = vor.u32 %v2433, %v2434
    %v2436 = vshll.u32 920167782, %v2421
    %v2437 = vshrl.u32 1326507024, %v2422
    %v2438 = vor.u32 %v2436, %v2437
    %vm2439 = vcmp.lt.s32.totalorder %v2420, 1
    %vm2440 = vcmp.lt.s32.totalorder %v2420, 2
    %vm2441 = vcmp.lt.s32.totalorder %v2420, 3
    %vm2442 = vcmp.lt.s32.totalorder %v2420, 4
    %v2443 = vsel %vm2439, %v2423, %v2426
    %v2444 = vsel %vm2442, %v2432, 2102212464
    %v2445 = vsel %vm2441, %v2429, %v2444
    %v2446 = vsel %vm2440, %v2443, %v2445
    %v2447 = vsel %vm2439, %v2426, %v2429
    %v2448 = vsel %vm2442, %v2435, 920167782
    %v2449 = vsel %vm2441, %v2432, %v2448
    %v2450 = vsel %vm2440, %v2447, %v2449
    %v2451 = vsel %vm2439, %v2429, %v2432
    %v2452 = vsel %vm2442, %v2438, 1326507024
    %v2453 = vsel %vm2441, %v2435, %v2452
    %v2454 = vsel %vm2440, %v2451, %v2453
    %v2455 = vshll.u32 %v2415, 8
    %v2456 = vand.u32 %v2455, 65535
    %v2457 = vshrl.u32 %v2455, 16
    %v2458 = vand.u32 %v2454, 65535
    %v2459 = vshrl.u32 %v2454, 16
    %v2460 = vmul.u32 %v2456, %v2458
    %v2461 = vmul.u32 %v2456, %v2459
    %v2462 = vmul.u32 %v2457, %v2458
    %v2463 = vmul.u32 %v2457, %v2459
    %v2464 = vshll.u32 %v2461, 16
    %v2465 = vshrl.u32 %v2461, 16
    %v2466 = vshll.u32 %v2462, 16
    %v2467 = vshrl.u32 %v2462, 16
    %vm2468 = vc.u32 %v2460, %v2464
    %v2469 = vsel %vm2468, 1, 0
    %v2470 = vadd.s32 %v2460, %v2464
    %v2471 = vadd.s32 %v2463, %v2469
    %vm2472 = vc.u32 %v2470, %v2466
    %v2473 = vsel %vm2472, 1, 0
    %v2474 = vadd.s32 %v2470, %v2466
    %v2475 = vadd.s32 %v2471, %v2473
    %v2476 = vadd.s32 %v2475, %v2465
    %v2477 = vadd.s32 %v2476, %v2467
    %v2478 = vand.u32 %v2455, 65535
    %v2479 = vshrl.u32 %v2455, 16
    %v2480 = vand.u32 %v2450, 65535
    %v2481 = vshrl.u32 %v2450, 16
    %v2482 = vmul.u32 %v2478, %v2480
    %v2483 = vmul.u32 %v2478, %v2481
    %v2484 = vmul.u32 %v2479, %v2480
    %v2485 = vmul.u32 %v2479, %v2481
    %v2486 = vshll.u32 %v2483, 16
    %v2487 = vshrl.u32 %v2483, 16
    %v2488 = vshll.u32 %v2484, 16
    %v2489 = vshrl.u32 %v2484, 16
    %vm2490 = vc.u32 %v2482, %v2486
    %v2491 = vsel %vm2490, 1, 0
    %v2492 = vadd.s32 %v2482, %v2486
    %v2493 = vadd.s32 %v2485, %v2491
    %vm2494 = vc.u32 %v2492, %v2488
    %v2495 = vsel %vm2494, 1, 0
    %v2496 = vadd.s32 %v2492, %v2488
    %v2497 = vadd.s32 %v2493, %v2495
    %v2498 = vadd.s32 %v2497, %v2487
    %v2499 = vadd.s32 %v2498, %v2489
    %v2500 = vmul.u32 %v2455, %v2446
    %v2501 = vadd.s32 %v2477, %v2496
    %vm2502 = vc.u32 %v2477, %v2496
    %v2503 = vadd.s32 %v2499, 1
    %v2504 = vsel %vm2502, %v2503, %v2499
    %v2505 = vadd.s32 %v2500, %v2504
    %v2506 = vadd.s32 %v2505, 536870912
    %v2507 = vshrl.u32 %v2506, 30
    %v2508 = vshll.u32 %v2507, 30
    %v2509 = vsub.s32 %v2505, %v2508
    %vm2510 = vcmp.lt.s32.totalorder %v2509, 0
    %v2511 = vsub.s32 0, %v2509
    %v2512 = vsel %vm2510, %v2511, %v2509
    %v2513 = vclz %v2512
    %v2514 = vsub.s32 %v2513, 2
    %vm2515 = vcmp.gt.s32.totalorder 0, %v2514
    %v2516 = vsel %vm2515, 0, %v2514
    %v2517 = vsub.s32 32, %v2516
    %v2518 = vshll.u32 %v2509, %v2516
    %v2519 = vshrl.u32 %v2501, %v2517
    %v2520 = vor.u32 %v2518, %v2519
    %v2521 = vsub.s32 4294967266, %v2516
    %v2522 = vadd.s32 %v2521, 127
    %v2523 = vshll.u32 %v2522, 23
    %v2524 = vor.u32 4788187, %v2523
    %v2525 = vand.u32 2147483647, %v2524
    %v2527 = vcvt.s32.f32 %v2520
    %v2528 = vmul.f32 %v2527, %v2525
    %v2529 = vxor.u32 %v2528, 2147483648
    %v2530 = vsel %vm2409, %v2529, %v2528
    %v2531 = vsub.s32 4, %v2507
    %v2532 = vsel %vm2409, %v2531, %v2507
    %v2533 = vsel %vm2408, %v1325, %v2530
    %v2534 = vsel %vm2408, 0, %v2532
    %v2535 = vmul.f32 %v2533, %v2533
    %v2536 = vmul.f32 %v2535, -0.001358992
    %v2537 = vadd.f32 %v2536, 0.041655596
    %v2538 = vmul.f32 %v2535, %v2537
    %v2539 = vadd.f32 %v2538, -0.4999988
    %v2540 = vmul.f32 %v2535, %v2539
    %v2541 = vadd.f32 1.0, %v2540
    %v2542 = vmul.f32 %v2533, %v2533
    %v2543 = vmul.f32 %v2542, -0.00019511016
    %v2544 = vadd.f32 %v2543, 0.008332121
    %v2545 = vmul.f32 %v2542, %v2544
    %v2546 = vadd.f32 %v2545, -0.16666654
    %v2547 = vmul.f32 %v2542, %v2546
    %v2548 = vadd.f32 %v2547, 1.0
    %v2549 = vmul.f32 %v2548, %v2533
    %vm2550 = vweird.f32 %v1325
    %v2551 = vadd.s32 %v2534, 3
    %v2552 = vand.u32 %v2551, 3
    %vm2553 = vcmp.lt.s32.totalorder %v2552, 2
    %vm2554 = vcmp.eq.s32.totalorder %v2552, 0
    %v2555 = vxor.u32 %v2549, 2147483648
    %v2556 = vsel %vm2554, %v2541, %v2555
    %vm2557 = vcmp.eq.s32.totalorder %v2552, 2
    %v2558 = vxor.u32 %v2541, 2147483648
    %v2559 = vsel %vm2557, %v2558, %v2549
    %v2560 = vsel %vm2553, %v2556, %v2559
    %v2561 = vsel %vm2550, nan, %v2560
    %2566 = vrot.lane.b32.xlu0 %v1479, 4
    %v2567 = vpop.permute.xlu0 %2566
    %2568 = vrot.lane.b32.xlu0 %v1633, 4
    %v2569 = vpop.permute.xlu0 %2568
    %2570 = vrot.lane.b32.xlu0 %v1787, 4
    %v2571 = vpop.permute.xlu0 %2570
    %2572 = vrot.lane.b32.xlu0 %v1941, 4
    %v2573 = vpop.permute.xlu0 %2572
    %vm2578 = vcmask 31744
    %v2579 = vsel %vm2578, %v239, %v2567
    %v2580 = vsel %vm2578, %v393, %v2569
    %v2581 = vsel %vm2578, %v547, %v2571
    %v2582 = vsel %vm2578, %v701, %v2573
    %2587 = vrot.lane.b32.xlu0 %v2096, 4
    %v2588 = vpop.permute.xlu0 %2587
    %2589 = vrot.lane.b32.xlu0 %v2251, 4
    %v2590 = vpop.permute.xlu0 %2589
    %2591 = vrot.lane.b32.xlu0 %v2406, 4
    %v2592 = vpop.permute.xlu0 %2591
    %2593 = vrot.lane.b32.xlu0 %v2561, 4
    %v2594 = vpop.permute.xlu0 %2593
    %v2599 = vsel %vm2578, %v856, %v2588
    %v2600 = vsel %vm2578, %v1011, %v2590
    %v2601 = vsel %vm2578, %v1166, %v2592
    %v2602 = vsel %vm2578, %v1321, %v2594
    %v2603 = vld [vmem:[%s1] sm:$0xff]
    %s2604 = scalar_lea.vmem %s1, 8
    %v2605 = vld [vmem:[%s2604] sm:$0xff]
    %vm2606 = vcmask 64512
    %v2608 = vsel %vm2606, %v2599, 0
    %v2611 = vsel %vm2606, %v2600, 0
    %v2614 = vsel %vm2606, %v2601, 0
    %v2617 = vsel %vm2606, %v2602, 0
    %2619 = vmatpush.msra.mxu0 0.0
    %2620 = vmatpush.msra.mxu0 0.0
    %2621 = vmatpush.msra.mxu0 0.0
    %2622 = vmatpush.msra.mxu0 0.0
    %2623 = vmatpush.msra.mxu0 0.0
    %2624 = vmatpush.msra.mxu0 0.0
    %2625 = vmatpush.msra.mxu0 0.0
    %2626 = vmatpush.msra.mxu0 0.0
    %2627 = vmatpush.msra.mxu0 0.0
    %2628 = vmatpush.msra.mxu0 0.0
    %2629 = vmatpush.msra.mxu0 0.0
    %2630 = vmatpush.msra.mxu0 0.0
    %2631 = vmatpush.msra.mxu0 0.0
    %2632 = vmatpush.msra.mxu0 0.0
    %2633 = vmatpush.msra.mxu0 0.0
    %2634 = vmatpush.msra.mxu0 %v2605
    %2635 = vmatmul.f32.gmra.mxu0 %v2608
    %v2636 = vpop.f32.mrf.mxu0
    %v2637 = vadd.f32 0.0, %v2636
    %2638 = vmatmul.f32.gmra.mxu0 %v2611
    %v2639 = vpop.f32.mrf.mxu0
    %v2640 = vadd.f32 0.0, %v2639
    %2641 = vmatmul.f32.gmra.mxu0 %v2614
    %v2642 = vpop.f32.mrf.mxu0
    %v2643 = vadd.f32 0.0, %v2642
    %2644 = vmatmul.f32.gmra.mxu0 %v2617
    %v2645 = vpop.f32.mrf.mxu0
    %v2646 = vadd.f32 0.0, %v2645
    %2647 = vdwg.mxu0
    %v2649 = vsel %vm2606, %v2579, 0
    %v2652 = vsel %vm2606, %v2580, 0
    %v2655 = vsel %vm2606, %v2581, 0
    %v2658 = vsel %vm2606, %v2582, 0
    %2660 = vmatpush.msra.mxu0 0.0
    %2661 = vmatpush.msra.mxu0 0.0
    %2662 = vmatpush.msra.mxu0 0.0
    %2663 = vmatpush.msra.mxu0 0.0
    %2664 = vmatpush.msra.mxu0 0.0
    %2665 = vmatpush.msra.mxu0 0.0
    %2666 = vmatpush.msra.mxu0 0.0
    %2667 = vmatpush.msra.mxu0 0.0
    %2668 = vmatpush.msra.mxu0 0.0
    %2669 = vmatpush.msra.mxu0 0.0
    %2670 = vmatpush.msra.mxu0 0.0
    %2671 = vmatpush.msra.mxu0 0.0
    %2672 = vmatpush.msra.mxu0 0.0
    %2673 = vmatpush.msra.mxu0 0.0
    %2674 = vmatpush.msra.mxu0 0.0
    %2675 = vmatpush.msra.mxu0 %v2603
    %2676 = vmatmul.f32.gmra.mxu0 %v2649
    %v2677 = vpop.f32.mrf.mxu0
    %v2678 = vadd.f32 %v2637, %v2677
    %2679 = vmatmul.f32.gmra.mxu0 %v2652
    %v2680 = vpop.f32.mrf.mxu0
    %v2681 = vadd.f32 %v2640, %v2680
    %2682 = vmatmul.f32.gmra.mxu0 %v2655
    %v2683 = vpop.f32.mrf.mxu0
    %v2684 = vadd.f32 %v2643, %v2683
    %2685 = vmatmul.f32.gmra.mxu0 %v2658
    %v2686 = vpop.f32.mrf.mxu0
    %v2687 = vadd.f32 %v2646, %v2686
    %2688 = vdwg.mxu0
    %v2689 = vperm.slane %v71, 0
    %v2690 = vadd.f32 %v2678, %v2689
    %v2691 = vadd.f32 %v2681, %v2689
    %v2692 = vadd.f32 %v2684, %v2689
    %v2693 = vadd.f32 %v2687, %v2689
    %v2694 = vpack.c.bf16 %v2691, %v2690
    %v2695 = vpack.c.bf16 %v2693, %v2692
    %v2696 = vld [vmem:[#allocation2] sm:$0xff]
    %v2697 = vld [vmem:[#allocation2 + $0x8] sm:$0xf]
    %v2698 = vld [vmem:[#allocation2 + $0xc] sm:$0xff]
    %v2699 = vld [vmem:[#allocation2 + $0x14] sm:$0xf]
    %v2700 = vld [vmem:[#allocation2 + $0x18] sm:$0xff]
    %v2701 = vld [vmem:[#allocation2 + $0x20] sm:$0xf]
    %v2702 = vld [vmem:[#allocation2 + $0x24] sm:$0xff]
    %v2703 = vld [vmem:[#allocation2 + $0x2c] sm:$0xf]
    %v2704 = vld [vmem:[#allocation2 + $0x30] sm:$0xff]
    %v2705 = vld [vmem:[#allocation2 + $0x38] sm:$0xf]
    %v2706 = vld [vmem:[#allocation2 + $0x3c] sm:$0xff]
    %v2707 = vld [vmem:[#allocation2 + $0x44] sm:$0xf]
    %v2708 = vld [vmem:[#allocation2 + $0x48] sm:$0xff]
    %v2709 = vld [vmem:[#allocation2 + $0x50] sm:$0xf]
    %v2710 = vld [vmem:[#allocation2 + $0x54] sm:$0xff]
    %v2711 = vld [vmem:[#allocation2 + $0x5c] sm:$0xf]
    %v2712 = vld [vmem:[#allocation2 + $0x60] sm:$0xff]
    %v2713 = vld [vmem:[#allocation2 + $0x68] sm:$0xf]
    %v2714 = vld [vmem:[#allocation2 + $0x6c] sm:$0xff]
    %v2715 = vld [vmem:[#allocation2 + $0x74] sm:$0xf]
    %v2716 = vld [vmem:[#allocation2 + $0x78] sm:$0xff]
    %v2717 = vld [vmem:[#allocation2 + $0x80] sm:$0xf]
    %v2718 = vld [vmem:[#allocation2 + $0x84] sm:$0xff]
    %v2719 = vld [vmem:[#allocation2 + $0x8c] sm:$0xf]
    %v2720 = vld [vmem:[#allocation2 + $0x90] sm:$0xff]
    %v2721 = vld [vmem:[#allocation2 + $0x98] sm:$0xf]
    %v2722 = vld [vmem:[#allocation2 + $0x9c] sm:$0xff]
    %v2723 = vld [vmem:[#allocation2 + $0xa4] sm:$0xf]
    %v2724 = vld [vmem:[#allocation2 + $0xa8] sm:$0xff]
    %v2725 = vld [vmem:[#allocation2 + $0xb0] sm:$0xf]
    %v2726 = vld [vmem:[#allocation2 + $0xb4] sm:$0xff]
    %v2727 = vld [vmem:[#allocation2 + $0xbc] sm:$0xf]
    %v2760 = vunpack.c.l.b16 %v2696
    %v2761 = vunpack.c.h.b16 %v2696
    %v2762 = vunpack.c.l.b16 %v2697
    %v2763 = vunpack.c.l.b16 %v2698
    %v2764 = vunpack.c.h.b16 %v2698
    %v2765 = vunpack.c.l.b16 %v2699
    %v2766 = vunpack.c.l.b16 %v2700
    %v2767 = vunpack.c.h.b16 %v2700
    %v2768 = vunpack.c.l.b16 %v2701
    %v2769 = vunpack.c.l.b16 %v2702
    %v2770 = vunpack.c.h.b16 %v2702
    %v2771 = vunpack.c.l.b16 %v2703
    %v2772 = vunpack.c.l.b16 %v2704
    %v2773 = vunpack.c.h.b16 %v2704
    %v2774 = vunpack.c.l.b16 %v2705
    %v2775 = vunpack.c.l.b16 %v2706
    %v2776 = vunpack.c.h.b16 %v2706
    %v2777 = vunpack.c.l.b16 %v2707
    %v2778 = vunpack.c.l.b16 %v2708
    %v2779 = vunpack.c.h.b16 %v2708
    %v2780 = vunpack.c.l.b16 %v2709
    %v2781 = vunpack.c.l.b16 %v2710
    %v2782 = vunpack.c.h.b16 %v2710
    %v2783 = vunpack.c.l.b16 %v2711
    %v2784 = vunpack.c.l.b16 %v2712
    %v2785 = vunpack.c.h.b16 %v2712
    %v2786 = vunpack.c.l.b16 %v2713
    %v2787 = vunpack.c.l.b16 %v2714
    %v2788 = vunpack.c.h.b16 %v2714
    %v2789 = vunpack.c.l.b16 %v2715
    %v2790 = vunpack.c.l.b16 %v2716
    %v2791 = vunpack.c.h.b16 %v2716
    %v2792 = vunpack.c.l.b16 %v2717
    %v2793 = vunpack.c.l.b16 %v2718
    %v2794 = vunpack.c.h.b16 %v2718
    %v2795 = vunpack.c.l.b16 %v2719
    %v2796 = vunpack.c.l.b16 %v2720
    %v2797 = vunpack.c.h.b16 %v2720
    %v2798 = vunpack.c.l.b16 %v2721
    %v2799 = vunpack.c.l.b16 %v2722
    %v2800 = vunpack.c.h.b16 %v2722
    %v2801 = vunpack.c.l.b16 %v2723
    %v2802 = vunpack.c.l.b16 %v2724
    %v2803 = vunpack.c.h.b16 %v2724
    %v2804 = vunpack.c.l.b16 %v2725
    %v2805 = vunpack.c.l.b16 %v2726
    %v2806 = vunpack.c.h.b16 %v2726
    %v2807 = vunpack.c.l.b16 %v2727
    %v2808 = vpack.c.b16 %v2763, %v2760
    %v2809 = vpack.c.b16 %v2764, %v2761
    %v2810 = vpack.c.b16 %v2765, %v2762
    %v2811 = vpack.c.b16 %v2769, %v2766
    %v2812 = vpack.c.b16 %v2770, %v2767
    %v2813 = vpack.c.b16 %v2771, %v2768
    %v2814 = vpack.c.b16 %v2775, %v2772
    %v2815 = vpack.c.b16 %v2776, %v2773
    %v2816 = vpack.c.b16 %v2777, %v2774
    %v2817 = vpack.c.b16 %v2781, %v2778
    %v2818 = vpack.c.b16 %v2782, %v2779
    %v2819 = vpack.c.b16 %v2783, %v2780
    %v2820 = vpack.c.b16 %v2787, %v2784
    %v2821 = vpack.c.b16 %v2788, %v2785
    %v2822 = vpack.c.b16 %v2789, %v2786
    %v2823 = vpack.c.b16 %v2793, %v2790
    %v2824 = vpack.c.b16 %v2794, %v2791
    %v2825 = vpack.c.b16 %v2795, %v2792
    %v2826 = vpack.c.b16 %v2799, %v2796
    %v2827 = vpack.c.b16 %v2800, %v2797
    %v2828 = vpack.c.b16 %v2801, %v2798
    %v2829 = vpack.c.b16 %v2805, %v2802
    %v2830 = vpack.c.b16 %v2806, %v2803
    %v2831 = vpack.c.b16 %v2807, %v2804
    %2856 = vmatpush.bf16.msra.mxu0 %v2829
    %2857 = vmatpush.bf16.msra.mxu0 %v2826
    %2858 = vmatpush.bf16.msra.mxu0 %v2823
    %2859 = vmatpush.bf16.msra.mxu0 %v2820
    %2860 = vmatpush.bf16.msra.mxu0 %v2817
    %2861 = vmatpush.bf16.msra.mxu0 %v2814
    %2862 = vmatpush.bf16.msra.mxu0 %v2811
    %2863 = vmatpush.bf16.msra.mxu0 %v2808
    %2864 = vmatmul.bf16.gmra.mxu0 %v2694
    %v2865 = vpop.f32.mrf.mxu0
    %v2866 = vadd.f32 0.0, %v2865
    %v2867 = vpop.f32.mrf.mxu0
    %v2868 = vadd.f32 0.0, %v2867
    %2869 = vmatmul.bf16.gmra.mxu0 %v2695
    %v2870 = vpop.f32.mrf.mxu0
    %v2871 = vadd.f32 0.0, %v2870
    %v2872 = vpop.f32.mrf.mxu0
    %v2873 = vadd.f32 0.0, %v2872
    %2874 = vdwg.mxu0
    %2875 = vmatpush.bf16.msra.mxu0 %v2830
    %2876 = vmatpush.bf16.msra.mxu0 %v2827
    %2877 = vmatpush.bf16.msra.mxu0 %v2824
    %2878 = vmatpush.bf16.msra.mxu0 %v2821
    %2879 = vmatpush.bf16.msra.mxu0 %v2818
    %2880 = vmatpush.bf16.msra.mxu0 %v2815
    %2881 = vmatpush.bf16.msra.mxu0 %v2812
    %2882 = vmatpush.bf16.msra.mxu0 %v2809
    %2883 = vmatmul.bf16.gmra.mxu0 %v2694
    %v2884 = vpop.f32.mrf.mxu0
    %v2885 = vadd.f32 0.0, %v2884
    %v2886 = vpop.f32.mrf.mxu0
    %v2887 = vadd.f32 0.0, %v2886
    %2888 = vmatmul.bf16.gmra.mxu0 %v2695
    %v2889 = vpop.f32.mrf.mxu0
    %v2890 = vadd.f32 0.0, %v2889
    %v2891 = vpop.f32.mrf.mxu0
    %v2892 = vadd.f32 0.0, %v2891
    %2893 = vdwg.mxu0
    %2894 = vmatpush.bf16.msra.mxu0 %v2831
    %2895 = vmatpush.bf16.msra.mxu0 %v2828
    %2896 = vmatpush.bf16.msra.mxu0 %v2825
    %2897 = vmatpush.bf16.msra.mxu0 %v2822
    %2898 = vmatpush.bf16.msra.mxu0 %v2819
    %2899 = vmatpush.bf16.msra.mxu0 %v2816
    %2900 = vmatpush.bf16.msra.mxu0 %v2813
    %2901 = vmatpush.bf16.msra.mxu0 %v2810
    %2902 = vmatmul.bf16.gmra.mxu0 %v2694
    %v2903 = vpop.f32.mrf.mxu0
    %v2904 = vadd.f32 0.0, %v2903
    %v2905 = vpop.f32.mrf.mxu0
    %v2906 = vadd.f32 0.0, %v2905
    %2907 = vmatmul.bf16.gmra.mxu0 %v2695
    %v2908 = vpop.f32.mrf.mxu0
    %v2909 = vadd.f32 0.0, %v2908
    %v2910 = vpop.f32.mrf.mxu0
    %v2911 = vadd.f32 0.0, %v2910
    %2912 = vdwg.mxu0
    %v2913 = vmul.f32 %v2866, 0.17677669
    %v2914 = vmul.f32 %v2868, 0.17677669
    %v2915 = vmul.f32 %v2871, 0.17677669
    %v2916 = vmul.f32 %v2873, 0.17677669
    %v2917 = vpack.c.bf16 %v2913, %v2913
    %v2918 = vpack.c.bf16 %v2914, %v2914
    %v2919 = vpack.c.bf16 %v2915, %v2915
    %v2920 = vpack.c.bf16 %v2916, %v2916
    %v2921 = vpack.c.bf16 %v2885, %v2885
    %v2922 = vpack.c.bf16 %v2887, %v2887
    %v2923 = vpack.c.bf16 %v2890, %v2890
    %v2924 = vpack.c.bf16 %v2892, %v2892
    %v2925 = vpack.c.bf16 %v2904, %v2904
    %v2926 = vpack.c.bf16 %v2906, %v2906
    %v2927 = vpack.c.bf16 %v2909, %v2909
    %v2928 = vpack.c.bf16 %v2911, %v2911
    %2929 = vmatpush.bf16.xpose.msra.mxu0 0
    %2930 = vmatpush.bf16.xpose.msra.mxu0 0
    %2931 = vmatpush.bf16.xpose.msra.mxu0 0
    %2932 = vmatpush.bf16.xpose.msra.mxu0 0
    %2933 = vmatpush.bf16.xpose.msra.mxu0 0
    %2934 = vmatpush.bf16.xpose.msra.mxu0 0
    %2935 = vmatpush.bf16.xpose.msra.mxu0 0
    %2936 = vmatpush.bf16.xpose.msra.mxu0 %v2921
    %2937 = vmatmul.bf16.gmra.mxu0 %v2917
    %v2938 = vpop.f32.mrf.mxu0
    %v2939 = vadd.f32 0.0, %v2938
    %v2940 = vpop.f32.mrf.mxu0
    %2941 = vdwg.mxu0
    %2942 = vmatpush.bf16.xpose.msra.mxu0 0
    %2943 = vmatpush.bf16.xpose.msra.mxu0 0
    %2944 = vmatpush.bf16.xpose.msra.mxu0 0
    %2945 = vmatpush.bf16.xpose.msra.mxu0 0
    %2946 = vmatpush.bf16.xpose.msra.mxu0 0
    %2947 = vmatpush.bf16.xpose.msra.mxu0 0
    %2948 = vmatpush.bf16.xpose.msra.mxu0 0
    %2949 = vmatpush.bf16.xpose.msra.mxu0 %v2922
    %2950 = vmatmul.bf16.gmra.mxu0 %v2918
    %v2951 = vpop.f32.mrf.mxu0
    %v2952 = vadd.f32 0.0, %v2951
    %v2953 = vpop.f32.mrf.mxu0
    %2954 = vdwg.mxu0
    %2955 = vmatpush.bf16.xpose.msra.mxu0 0
    %2956 = vmatpush.bf16.xpose.msra.mxu0 0
    %2957 = vmatpush.bf16.xpose.msra.mxu0 0
    %2958 = vmatpush.bf16.xpose.msra.mxu0 0
    %2959 = vmatpush.bf16.xpose.msra.mxu0 0
    %2960 = vmatpush.bf16.xpose.msra.mxu0 0
    %2961 = vmatpush.bf16.xpose.msra.mxu0 0
    %2962 = vmatpush.bf16.xpose.msra.mxu0 %v2923
    %2963 = vmatmul.bf16.gmra.mxu0 %v2919
    %v2964 = vpop.f32.mrf.mxu0
    %v2965 = vadd.f32 0.0, %v2964
    %v2966 = vpop.f32.mrf.mxu0
    %2967 = vdwg.mxu0
    %2968 = vmatpush.bf16.xpose.msra.mxu0 0
    %2969 = vmatpush.bf16.xpose.msra.mxu0 0
    %2970 = vmatpush.bf16.xpose.msra.mxu0 0
    %2971 = vmatpush.bf16.xpose.msra.mxu0 0
    %2972 = vmatpush.bf16.xpose.msra.mxu0 0
    %2973 = vmatpush.bf16.xpose.msra.mxu0 0
    %2974 = vmatpush.bf16.xpose.msra.mxu0 0
    %2975 = vmatpush.bf16.xpose.msra.mxu0 %v2924
    %2976 = vmatmul.bf16.gmra.mxu0 %v2920
    %v2977 = vpop.f32.mrf.mxu0
    %v2978 = vadd.f32 0.0, %v2977
    %v2979 = vpop.f32.mrf.mxu0
    %2980 = vdwg.mxu0
    %v2981 = vsel %vm2606, %v2939, -inf
    %2982 = vmax.xlane.f32.xlu0 %v2981
    %v2983 = vpop.xlane.xlu0 %2982
    %v2984 = vsel %vm2606, %v2952, -inf
    %2985 = vmax.xlane.f32.xlu0 %v2984
    %v2986 = vpop.xlane.xlu0 %2985
    %v2987 = vsel %vm2606, %v2965, -inf
    %2988 = vmax.xlane.f32.xlu0 %v2987
    %v2989 = vpop.xlane.xlu0 %2988
    %v2990 = vsel %vm2606, %v2978, -inf
    %2991 = vmax.xlane.f32.xlu0 %v2990
    %v2992 = vpop.xlane.xlu0 %2991
    %v2993 = vsub.f32 %v2939, %v2983
    %v2994 = vsub.f32 %v2952, %v2986
    %v2995 = vsub.f32 %v2965, %v2989
    %v2996 = vsub.f32 %v2978, %v2992
    %v2997 = vmul.f32 %v2993, 1.442695
    %v2998 = vpow.pop %v2997
    %v2999 = vmul.f32 %v2994, 1.442695
    %v3000 = vpow.pop %v2999
    %v3001 = vmul.f32 %v2995, 1.442695
    %v3002 = vpow.pop %v3001
    %v3003 = vmul.f32 %v2996, 1.442695
    %v3004 = vpow.pop %v3003
    %v3005 = vsel %vm2606, %v2998, 0.0
    %3006 = vadd.xlane.f32.xlu0 %v3005
    %v3007 = vpop.xlane.xlu0 %3006
    %v3008 = vsel %vm2606, %v3000, 0.0
    %3009 = vadd.xlane.f32.xlu0 %v3008
    %v3010 = vpop.xlane.xlu0 %3009
    %v3011 = vsel %vm2606, %v3002, 0.0
    %3012 = vadd.xlane.f32.xlu0 %v3011
    %v3013 = vpop.xlane.xlu0 %3012
    %v3014 = vsel %vm2606, %v3004, 0.0
    %3015 = vadd.xlane.f32.xlu0 %v3014
    %v3016 = vpop.xlane.xlu0 %3015
    %v3017 = vrcp.pop %v3007
    %v3018 = vmul.f32 %v3007, %v3017
    %v3019 = vsub.f32 1.0, %v3018
    %v3020 = vmul.f32 %v3017, %v3019
    %v3021 = vadd.f32 %v3017, %v3020
    %vm3022 = vweird.f32 %v3007
    %vm3023 = vweird.f32 %v3017
    %vm3024 = vmor %vm3022, %vm3023
    %v3025 = vsel %vm3024, %v3017, %v3021
    %v3026 = vand.u32 2147483647, %v3007
    %vm3027 = vcmp.eq.f32.partialorder %v3026, 8.507059e+37
    %v3028 = vand.u32 %v3007, 2147483648
    %v3029 = vor.u32 1.1754944e-38, %v3028
    %v3030 = vsel %vm3027, %v3029, %v3025
    %v3031 = vrcp.pop %v3010
    %v3032 = vmul.f32 %v3010, %v3031
    %v3033 = vsub.f32 1.0, %v3032
    %v3034 = vmul.f32 %v3031, %v3033
    %v3035 = vadd.f32 %v3031, %v3034
    %vm3036 = vweird.f32 %v3010
    %vm3037 = vweird.f32 %v3031
    %vm3038 = vmor %vm3036, %vm3037
    %v3039 = vsel %vm3038, %v3031, %v3035
    %v3040 = vand.u32 2147483647, %v3010
    %vm3041 = vcmp.eq.f32.partialorder %v3040, 8.507059e+37
    %v3042 = vand.u32 %v3010, 2147483648
    %v3043 = vor.u32 1.1754944e-38, %v3042
    %v3044 = vsel %vm3041, %v3043, %v3039
    %v3045 = vrcp.pop %v3013
    %v3046 = vmul.f32 %v3013, %v3045
    %v3047 = vsub.f32 1.0, %v3046
    %v3048 = vmul.f32 %v3045, %v3047
    %v3049 = vadd.f32 %v3045, %v3048
    %vm3050 = vweird.f32 %v3013
    %vm3051 = vweird.f32 %v3045
    %vm3052 = vmor %vm3050, %vm3051
    %v3053 = vsel %vm3052, %v3045, %v3049
    %v3054 = vand.u32 2147483647, %v3013
    %vm3055 = vcmp.eq.f32.partialorder %v3054, 8.507059e+37
    %v3056 = vand.u32 %v3013, 2147483648
    %v3057 = vor.u32 1.1754944e-38, %v3056
    %v3058 = vsel %vm3055, %v3057, %v3053
    %v3059 = vrcp.pop %v3016
    %v3060 = vmul.f32 %v3016, %v3059
    %v3061 = vsub.f32 1.0, %v3060
    %v3062 = vmul.f32 %v3059, %v3061
    %v3063 = vadd.f32 %v3059, %v3062
    %vm3064 = vweird.f32 %v3016
    %vm3065 = vweird.f32 %v3059
    %vm3066 = vmor %vm3064, %vm3065
    %v3067 = vsel %vm3066, %v3059, %v3063
    %v3068 = vand.u32 2147483647, %v3016
    %vm3069 = vcmp.eq.f32.partialorder %v3068, 8.507059e+37
    %v3070 = vand.u32 %v3016, 2147483648
    %v3071 = vor.u32 1.1754944e-38, %v3070
    %v3072 = vsel %vm3069, %v3071, %v3067
    %v3073 = vmul.f32 %v2998, %v3030
    %v3074 = vmul.f32 %v3000, %v3044
    %v3075 = vmul.f32 %v3002, %v3058
    %v3076 = vmul.f32 %v3004, %v3072
    %v3077 = vpack.c.bf16 %v3073, %v3073
    %v3078 = vpack.c.bf16 %v3074, %v3074
    %v3079 = vpack.c.bf16 %v3075, %v3075
    %v3080 = vpack.c.bf16 %v3076, %v3076
    %v3082 = vsel %vm2606, %v3077, 0
    %vm3084 = vcmask 1043456
    %v3086 = vsel %vm3084, %v2925, 0
    %3088 = vmatpush.bf16.msra.mxu0 0
    %3089 = vmatpush.bf16.msra.mxu0 0
    %3090 = vmatpush.bf16.msra.mxu0 0
    %3091 = vmatpush.bf16.msra.mxu0 0
    %3092 = vmatpush.bf16.msra.mxu0 0
    %3093 = vmatpush.bf16.msra.mxu0 0
    %3094 = vmatpush.bf16.msra.mxu0 0
    %3095 = vmatpush.bf16.msra.mxu0 %v3086
    %3096 = vmatmul.bf16.gmra.mxu0 %v3082
    %v3097 = vpop.f32.mrf.mxu0
    %v3098 = vadd.f32 0.0, %v3097
    %v3099 = vpop.f32.mrf.mxu0
    %3100 = vdwg.mxu0
    %v3102 = vsel %vm2606, %v3078, 0
    %v3105 = vsel %vm3084, %v2926, 0
    %3107 = vmatpush.bf16.msra.mxu0 0
    %3108 = vmatpush.bf16.msra.mxu0 0
    %3109 = vmatpush.bf16.msra.mxu0 0
    %3110 = vmatpush.bf16.msra.mxu0 0
    %3111 = vmatpush.bf16.msra.mxu0 0
    %3112 = vmatpush.bf16.msra.mxu0 0
    %3113 = vmatpush.bf16.msra.mxu0 0
    %3114 = vmatpush.bf16.msra.mxu0 %v3105
    %3115 = vmatmul.bf16.gmra.mxu0 %v3102
    %v3116 = vpop.f32.mrf.mxu0
    %v3117 = vadd.f32 0.0, %v3116
    %v3118 = vpop.f32.mrf.mxu0
    %3119 = vdwg.mxu0
    %v3121 = vsel %vm2606, %v3079, 0
    %v3124 = vsel %vm3084, %v2927, 0
    %3126 = vmatpush.bf16.msra.mxu0 0
    %3127 = vmatpush.bf16.msra.mxu0 0
    %3128 = vmatpush.bf16.msra.mxu0 0
    %3129 = vmatpush.bf16.msra.mxu0 0
    %3130 = vmatpush.bf16.msra.mxu0 0
    %3131 = vmatpush.bf16.msra.mxu0 0
    %3132 = vmatpush.bf16.msra.mxu0 0
    %3133 = vmatpush.bf16.msra.mxu0 %v3124
    %3134 = vmatmul.bf16.gmra.mxu0 %v3121
    %v3135 = vpop.f32.mrf.mxu0
    %v3136 = vadd.f32 0.0, %v3135
    %v3137 = vpop.f32.mrf.mxu0
    %3138 = vdwg.mxu0
    %v3140 = vsel %vm2606, %v3080, 0
    %v3143 = vsel %vm3084, %v2928, 0
    %3145 = vmatpush.bf16.msra.mxu0 0
    %3146 = vmatpush.bf16.msra.mxu0 0
    %3147 = vmatpush.bf16.msra.mxu0 0
    %3148 = vmatpush.bf16.msra.mxu0 0
    %3149 = vmatpush.bf16.msra.mxu0 0
    %3150 = vmatpush.bf16.msra.mxu0 0
    %3151 = vmatpush.bf16.msra.mxu0 0
    %3152 = vmatpush.bf16.msra.mxu0 %v3143
    %3153 = vmatmul.bf16.gmra.mxu0 %v3140
    %v3154 = vpop.f32.mrf.mxu0
    %v3155 = vadd.f32 0.0, %v3154
    %v3156 = vpop.f32.mrf.mxu0
    %3157 = vdwg.mxu0
    %v3158 = vpack.c.bf16 %v3117, %v3098
    %v3159 = vpack.c.bf16 %v3155, %v3136
    %v3160 = vld [vmem:[#allocation4] sm:$0xf]
    %v3161 = vld [vmem:[#allocation4 + $0x4] sm:$0xf]
    %v3162 = vld [vmem:[#allocation4 + $0x8] sm:$0xf]
    %v3163 = vld [vmem:[#allocation4 + $0xc] sm:$0xf]
    %v3164 = vld [vmem:[#allocation4 + $0x10] sm:$0xf]
    %v3165 = vld [vmem:[#allocation4 + $0x14] sm:$0xf]
    %v3166 = vld [vmem:[#allocation4 + $0x18] sm:$0xf]
    %v3167 = vld [vmem:[#allocation4 + $0x1c] sm:$0xf]
    %v3168 = vld [vmem:[#allocation4 + $0x20] sm:$0xf]
    %v3169 = vld [vmem:[#allocation4 + $0x24] sm:$0xf]
    %v3170 = vld [vmem:[#allocation4 + $0x28] sm:$0xf]
    %v3171 = vld [vmem:[#allocation4 + $0x2c] sm:$0xf]
    %v3172 = vld [vmem:[#allocation4 + $0x30] sm:$0xf]
    %v3173 = vld [vmem:[#allocation4 + $0x34] sm:$0xf]
    %v3174 = vld [vmem:[#allocation4 + $0x38] sm:$0xf]
    %v3175 = vld [vmem:[#allocation4 + $0x3c] sm:$0xf]
    %v3176 = vperm.slane %v72, 0
    %v3193 = vunpack.c.l.b16 %v3160
    %v3194 = vunpack.c.l.b16 %v3161
    %v3195 = vunpack.c.l.b16 %v3162
    %v3196 = vunpack.c.l.b16 %v3163
    %v3197 = vunpack.c.l.b16 %v3164
    %v3198 = vunpack.c.l.b16 %v3165
    %v3199 = vunpack.c.l.b16 %v3166
    %v3200 = vunpack.c.l.b16 %v3167
    %v3201 = vunpack.c.l.b16 %v3168
    %v3202 = vunpack.c.l.b16 %v3169
    %v3203 = vunpack.c.l.b16 %v3170
    %v3204 = vunpack.c.l.b16 %v3171
    %v3205 = vunpack.c.l.b16 %v3172
    %v3206 = vunpack.c.l.b16 %v3173
    %v3207 = vunpack.c.l.b16 %v3174
    %v3208 = vunpack.c.l.b16 %v3175
    %v3209 = vpack.c.b16 %v3194, %v3193
    %v3210 = vpack.c.b16 %v3196, %v3195
    %v3211 = vpack.c.b16 %v3198, %v3197
    %v3212 = vpack.c.b16 %v3200, %v3199
    %v3213 = vpack.c.b16 %v3202, %v3201
    %v3214 = vpack.c.b16 %v3204, %v3203
    %v3215 = vpack.c.b16 %v3206, %v3205
    %v3216 = vpack.c.b16 %v3208, %v3207
    %3225 = vmatpush.bf16.msra.mxu0 %v3216
    %3226 = vmatpush.bf16.msra.mxu0 %v3215
    %3227 = vmatpush.bf16.msra.mxu0 %v3214
    %3228 = vmatpush.bf16.msra.mxu0 %v3213
    %3229 = vmatpush.bf16.msra.mxu0 %v3212
    %3230 = vmatpush.bf16.msra.mxu0 %v3211
    %3231 = vmatpush.bf16.msra.mxu0 %v3210
    %3232 = vmatpush.bf16.msra.mxu0 %v3209
    %3233 = vmatmul.bf16.gmra.mxu0 %v3158
    %v3234 = vpop.f32.mrf.mxu0
    %v3235 = vadd.f32 %v3176, %v3234
    %v3236 = vpop.f32.mrf.mxu0
    %v3237 = vadd.f32 %v3176, %v3236
    %3238 = vmatmul.bf16.gmra.mxu0 %v3159
    %v3239 = vpop.f32.mrf.mxu0
    %v3240 = vadd.f32 %v3176, %v3239
    %v3241 = vpop.f32.mrf.mxu0
    %v3242 = vadd.f32 %v3176, %v3241
    %3243 = vdwg.mxu0
    %v3244 = vadd.f32 %v3235, %v2690
    %v3245 = vadd.f32 %v3237, %v2691
    %v3246 = vadd.f32 %v3240, %v2692
    %v3247 = vadd.f32 %v3242, %v2693
    %v3248 = vpack.c.bf16 %v3245, %v3244
    %v3249 = vpack.c.bf16 %v3247, %v3246
    %v3250 = vld [vmem:[#allocation6] sm:$0xf]
    %v3251 = vld [vmem:[#allocation6 + $0x4] sm:$0xf]
    %v3252 = vld [vmem:[#allocation6 + $0x8] sm:$0xf]
    %v3253 = vld [vmem:[#allocation6 + $0xc] sm:$0xf]
    %v3254 = vld [vmem:[#allocation6 + $0x10] sm:$0xf]
    %v3255 = vld [vmem:[#allocation6 + $0x14] sm:$0xf]
    %v3256 = vld [vmem:[#allocation6 + $0x18] sm:$0xf]
    %v3257 = vld [vmem:[#allocation6 + $0x1c] sm:$0xf]
    %v3258 = vld [vmem:[#allocation6 + $0x20] sm:$0xf]
    %v3259 = vld [vmem:[#allocation6 + $0x24] sm:$0xf]
    %v3260 = vld [vmem:[#allocation6 + $0x28] sm:$0xf]
    %v3261 = vld [vmem:[#allocation6 + $0x2c] sm:$0xf]
    %v3262 = vld [vmem:[#allocation6 + $0x30] sm:$0xf]
    %v3263 = vld [vmem:[#allocation6 + $0x34] sm:$0xf]
    %v3264 = vld [vmem:[#allocation6 + $0x38] sm:$0xf]
    %v3265 = vld [vmem:[#allocation6 + $0x3c] sm:$0xf]
    %v3266 = vperm.slane %v73, 0
    %v3283 = vunpack.c.l.b16 %v3250
    %v3284 = vunpack.c.l.b16 %v3251
    %v3285 = vunpack.c.l.b16 %v3252
    %v3286 = vunpack.c.l.b16 %v3253
    %v3287 = vunpack.c.l.b16 %v3254
    %v3288 = vunpack.c.l.b16 %v3255
    %v3289 = vunpack.c.l.b16 %v3256
    %v3290 = vunpack.c.l.b16 %v3257
    %v3291 = vunpack.c.l.b16 %v3258
    %v3292 = vunpack.c.l.b16 %v3259
    %v3293 = vunpack.c.l.b16 %v3260
    %v3294 = vunpack.c.l.b16 %v3261
    %v3295 = vunpack.c.l.b16 %v3262
    %v3296 = vunpack.c.l.b16 %v3263
    %v3297 = vunpack.c.l.b16 %v3264
    %v3298 = vunpack.c.l.b16 %v3265
    %v3299 = vpack.c.b16 %v3284, %v3283
    %v3300 = vpack.c.b16 %v3286, %v3285
    %v3301 = vpack.c.b16 %v3288, %v3287
    %v3302 = vpack.c.b16 %v3290, %v3289
    %v3303 = vpack.c.b16 %v3292, %v3291
    %v3304 = vpack.c.b16 %v3294, %v3293
    %v3305 = vpack.c.b16 %v3296, %v3295
    %v3306 = vpack.c.b16 %v3298, %v3297
    %3315 = vmatpush.bf16.msra.mxu0 %v3306
    %3316 = vmatpush.bf16.msra.mxu0 %v3305
    %3317 = vmatpush.bf16.msra.mxu0 %v3304
    %3318 = vmatpush.bf16.msra.mxu0 %v3303
    %3319 = vmatpush.bf16.msra.mxu0 %v3302
    %3320 = vmatpush.bf16.msra.mxu0 %v3301
    %3321 = vmatpush.bf16.msra.mxu0 %v3300
    %3322 = vmatpush.bf16.msra.mxu0 %v3299
    %3323 = vmatmul.bf16.gmra.mxu0 %v3248
    %v3324 = vpop.f32.mrf.mxu0
    %v3325 = vadd.f32 %v3266, %v3324
    %v3326 = vpop.f32.mrf.mxu0
    %v3327 = vadd.f32 %v3266, %v3326
    %3328 = vmatmul.bf16.gmra.mxu0 %v3249
    %v3329 = vpop.f32.mrf.mxu0
    %v3330 = vadd.f32 %v3266, %v3329
    %v3331 = vpop.f32.mrf.mxu0
    %v3332 = vadd.f32 %v3266, %v3331
    %3333 = vdwg.mxu0
    %3334 = vst [vmem:[%s6] sm:$0xff] %v3325
    %3335 = vst [vmem:[%s6 + $0x8] sm:$0xff] %v3327
    %3336 = vst [vmem:[%s6 + $0x10] sm:$0xff] %v3330
    %3337 = vst [vmem:[%s6 + $0x18] sm:$0xff] %v3332
    // Predicated region
    $region38: #{conditioner_forward.1} parent=1 // pred_check
      _
    $region39: #{conditioner_forward.1} parent=1 // pred_check_branch
      %3339 = sbr.rel (0) target = $region41
    $region40: #{conditioner_forward.1} parent=1 // pred_region
      _
    $region41: #{conditioner_forward.1} parent=1 // pred_fallthru
      _
    // Predicated region
    $region42: #{conditioner_forward.1} parent=1 // pred_check
      _
    $region43: #{conditioner_forward.1} parent=1 // pred_check_branch
      %3341 = sbr.rel (0) target = $region45
    $region44: #{conditioner_forward.1} parent=1 // pred_region
      _
    $region45: #{conditioner_forward.1} parent=1 // pred_fallthru
      _
    %3342 = vsyncpa [#allocation3], 1
    %3343 = vsyncpa [#allocation5], 1

</llo_original>
